<compile_context>
chip_gen: v7x
topology: tpu7x:2x2x1
jax: 0.10.0
libtpu: 0.0.40
codegen_flags: <defaults>
</compile_context>

<pallas_src>
import functools

import jax
import jax.numpy as jnp
from jax.experimental import pallas as pl
from jax.experimental.pallas import tpu as pltpu

LANE = 128                       # TPU lane width; everything is padded lane-dense
_HI = jax.lax.Precision.HIGHEST

_dot = functools.partial(jnp.dot, preferred_element_type=jnp.float32, precision=_HI)


# ----------------------------- fused kernel -------------------------------- #

def _fused_kernel(ids_ref, mask_ref, slab_ref, out_ref, *, B, S):
    """Entire forward pass in one grid-less kernel invocation.

    ids_ref  : (B*S, 1) int32   flattened token ids
    mask_ref : (B, S)   float32 attention mask
    slab_ref : (4*128+8, 128) float32 packed constants (see __init__):
        rows   0..127  embedW = embed @ W_backbone + b_backbone   (vocab/lane padded)
        rows 128..255  a_cat  = concat_t adapter_down_t           (zero padded)
        rows 256..383  b_cat  = concat_t (1/T) * adapter_up_t     (zero padded)
        rows 384..511  head_w = concat_t head_w_t                 (zero padded)
        row  512       head_b = concat_t head_b_t
    out_ref  : (B, 128) float32, first T*C lanes are the real logits
    """
    BS = B * S

    # Static, sublane-aligned sub-views of the constant slab (cost-free).
    embed_w = slab_ref[0 * LANE:1 * LANE, :]       # (128, 128)
    a_cat   = slab_ref[1 * LANE:2 * LANE, :]       # (128, 128)
    b_cat   = slab_ref[2 * LANE:3 * LANE, :]       # (128, 128)
    head_w  = slab_ref[3 * LANE:4 * LANE, :]       # (128, 128)
    head_b  = slab_ref[4 * LANE:4 * LANE + 1, :]   # (1, 128)

    # --- backbone: embedding gather as a one-hot MXU matmul ----------------- #
    # (backbone dense + bias were folded into embed_w at init; tanh is applied
    #  after the lookup, so this is exact)
    ids = ids_ref[...]                                              # (BS, 1)
    vocab_iota = jax.lax.broadcasted_iota(jnp.int32, (BS, LANE), 1)
    onehot = (vocab_iota == ids).astype(jnp.float32)                # (BS, Vpad)
    h = jnp.tanh(_dot(onehot, embed_w))                             # (BS, Hpad)

    # --- uniform-routing adapter mix (T-collapsed, 1/T folded into b_cat) --- #
    down = jnp.maximum(_dot(h, a_cat), 0.0)                         # (BS, 128)
    mixed = h + _dot(down, b_cat)                                   # (BS, Hpad)

    # --- masked mean pool over the sequence (built in-kernel) --------------- #
    mask = mask_ref[...]                                            # (B, S)
    # TODO(synk): clamp floor 1e-9 assumed; match the original adapter impl if
    # it clamps the denominator differently (e.g. clamp(min=1)).
    denom = jnp.maximum(jnp.sum(mask, axis=1, keepdims=True), 1e-9)
    wnorm = mask / denom                                            # (B, S)
    row = jax.lax.broadcasted_iota(jnp.int32, (B, BS), 0)
    col = jax.lax.broadcasted_iota(jnp.int32, (B, BS), 1)
    in_block = jnp.logical_and(col >= row * S, col < row * S + S)
    wnorm_rep = jnp.concatenate([wnorm] * B, axis=1)                # (B, BS)
    mask_mat = jnp.where(in_block, wnorm_rep, 0.0)                  # (B, BS)
    pooled = _dot(mask_mat, mixed)                                  # (B, Hpad)

    # --- all classification heads at once ------------------------------------ #
    out_ref[...] = _dot(pooled, head_w) + head_b                    # (B, 128)


def fused_forward(ids_flat, mask, slab, *, B, S):
    BS = B * S
    flops = 3 * 2 * BS * LANE * LANE + 2 * B * BS * LANE + 2 * B * LANE * LANE
    bytes_accessed = 4 * (slab.size + ids_flat.size + mask.size + B * LANE)
    return pl.pallas_call(
        functools.partial(_fused_kernel, B=B, S=S),
        out_shape=jax.ShapeDtypeStruct((B, LANE), jnp.float32),
        in_specs=[pl.BlockSpec(memory_space=pltpu.MemorySpace.VMEM)] * 3,
        out_specs=pl.BlockSpec(memory_space=pltpu.MemorySpace.VMEM),
        cost_estimate=pl.CostEstimate(flops=flops,
                                      transcendentals=BS * LANE,
                                      bytes_accessed=bytes_accessed),
        # TODO(synk): if ever run at real batch sizes, add a grid over the B*S
        # row axis with dimension_semantics=("parallel",) so v7x's second
        # TensorCore is used; at B*S=16 the per-step overhead isn't worth it.
    )(ids_flat, mask, slab)


# ----------------------------- module --------------------------------------- #

class UniformRoutingBaseline:
    """Uniform routing baseline: equal routing weight for every task adapter."""

    def __init__(self, vocab_size=101, hidden_size=32, adapter_rank=8,
                 num_classes=4,
                 task_names=("sentiment", "qa", "summarization")):
        self.task_names = list(task_names)
        self.num_tasks = len(self.task_names)
        self.num_classes = num_classes
        H, R, C, T, V = hidden_size, adapter_rank, num_classes, self.num_tasks, vocab_size
        assert V <= LANE and H <= LANE and T * R <= LANE and T * C <= LANE

        # Deterministic synthetic parameters (no checkpoint load).
        keys = jax.random.split(jax.random.PRNGKey(42), 6)
        s = 0.02
        self.embed = jax.random.normal(keys[0], (V, H), jnp.float32) * s
        self.w_backbone = jax.random.normal(keys[1], (H, H), jnp.float32) * s
        self.b_backbone = jnp.zeros((1, H), jnp.float32)
        # Raw per-task parameters (kept for the pure-JAX reference check).
        self._adapter_down = jax.random.normal(keys[2], (T, H, R), jnp.float32) * s
        self._adapter_up = jax.random.normal(keys[3], (T, R, H), jnp.float32) * s
        self._head_w = jax.random.normal(keys[4], (T, H, C), jnp.float32) * s
        self._head_b = jnp.zeros((T, C), jnp.float32)

        # ---- trace-time folding + lane padding + single constant slab ------ #
        # All exact:
        #  * backbone dense folded into the embedding table (lookup is linear,
        #    tanh applied after),
        #  * uniform-routing T-collapse with p_t = 1/T folded into b_cat,
        #  * zero padding to (128,128): relu(0)=0, tanh(0)=0 contribute nothing.
        p = 1.0 / T
        embed_w = jnp.dot(self.embed, self.w_backbone, precision=_HI) + self.b_backbone
        a_cat = jnp.transpose(self._adapter_down, (1, 0, 2)).reshape(H, T * R)
        b_cat = (self._adapter_up * p).reshape(T * R, H)
        head_w = jnp.transpose(self._head_w, (1, 0, 2)).reshape(H, T * C)
        head_b = self._head_b.reshape(T * C)

        def zpad():
            return jnp.zeros((LANE, LANE), jnp.float32)

        self.slab = jnp.concatenate([
            zpad().at[:V, :H].set(embed_w),        # rows   0..127
            zpad().at[:H, :T * R].set(a_cat),      # rows 128..255
            zpad().at[:T * R, :H].set(b_cat),      # rows 256..383
            zpad().at[:H, :T * C].set(head_w),     # rows 384..511
            jnp.zeros((8, LANE), jnp.float32).at[0, :T * C].set(head_b),  # row 512
        ], axis=0)                                  # (520, 128) ≈ 260 KiB f32

        self._jit_forward = jax.jit(self._forward_impl)

    # Jitted: one pallas_call plus trivial casts / output slicing.
    def _forward_impl(self, input_ids, attention_mask):
        B, S = input_ids.shape
        T, C = self.num_tasks, self.num_classes
        ids_flat = input_ids.reshape(B * S, 1).astype(jnp.int32)
        mask = attention_mask.astype(jnp.float32)
        logits = fused_forward(ids_flat, mask, self.slab, B=B, S=S)   # (B, 128)
        routing_probs = jnp.full((B, T), 1.0 / T, jnp.float32)
        task_outputs = {name: logits[:, i * C:(i + 1) * C]
                        for i, name in enumerate(self.task_names)}
        return {"task_outputs": task_outputs, "routing_probs": routing_probs}

    def __call__(self, input_ids, attention_mask=None):
        if attention_mask is None:
            attention_mask = jnp.ones(input_ids.shape, jnp.float32)
        return self._jit_forward(input_ids, attention_mask)

    # Pure-JAX reference (unfused, per-task loop) for tolerance checking.
    def _reference(self, input_ids, attention_mask):
        mask = attention_mask.astype(jnp.float32)
        emb = self.embed[input_ids]                                        # (B,S,H)
        h = jnp.tanh(jnp.einsum("bsh,hk->bsk", emb, self.w_backbone,
                                precision=_HI) + self.b_backbone)
        p = 1.0 / self.num_tasks
        mixed = h
        for t in range(self.num_tasks):
            down = jnp.maximum(jnp.einsum("bsh,hr->bsr", h, self._adapter_down[t],
                                          precision=_HI), 0.0)
            mixed = mixed + p * jnp.einsum("bsr,rh->bsh", down, self._adapter_up[t],
                                           precision=_HI)
        denom = jnp.maximum(mask.sum(axis=1, keepdims=True), 1e-9)
        pooled = (mixed * mask[:, :, None]).sum(axis=1) / denom
        return {name: jnp.einsum("bh,hc->bc", pooled, self._head_w[t],
                                 precision=_HI) + self._head_b[t]
                for t, name in enumerate(self.task_names)}


# ----------------------------- demo ------------------------------------------ #

if __name__ == "__main__":
    B, S, V = 2, 8, 101
    k_ids, _ = jax.random.split(jax.random.PRNGKey(0))
    input_ids = jax.random.randint(k_ids, (B, S), 0, V, dtype=jnp.int32)
    attention_mask = jnp.ones((B, S), jnp.float32).at[1, 6:].set(0.0)

    model = UniformRoutingBaseline()
    out = model(input_ids, attention_mask)
    out = jax.block_until_ready(out)

    # Shape / finiteness checks.
    assert out["routing_probs"].shape == (B, model.num_tasks)
    assert bool(jnp.allclose(out["routing_probs"], 1.0 / model.num_tasks))
    for name in model.task_names:
        assert out["task_outputs"][name].shape == (B, model.num_classes)
        assert bool(jnp.all(jnp.isfinite(out["task_outputs"][name])))

    # Numerical check against the unfused pure-JAX reference.
    ref = model._reference(input_ids, attention_mask)
    for name in model.task_names:
        assert bool(jnp.allclose(out["task_outputs"][name], ref[name],
                                 atol=1e-5, rtol=1e-5)), name

    print("KERNEL_OK")
</pallas_src>

<mosaic_0001>
module attributes {stable_mosaic.version = 11 : i64} {
  func.func @_fused_kernel(%arg0: memref<16x1xi32, #tpu.memory_space<vmem>>, %arg1: memref<2x8xf32, #tpu.memory_space<vmem>>, %arg2: memref<520x128xf32, #tpu.memory_space<vmem>>, %arg3: memref<2x128xf32, #tpu.memory_space<vmem>>) attributes {dimension_semantics = [], scalar_prefetch = 0 : i64, scratch_operands = 0 : i64, tpu.core_type = #tpu.core_type<tc>} {
    %c0 = arith.constant 0 : index
    %c0_0 = arith.constant 0 : index
    %0 = vector.load %arg2[%c0, %c0_0] : memref<520x128xf32, #tpu.memory_space<vmem>>, vector<128x128xf32>
    %c128 = arith.constant 128 : index
    %c0_1 = arith.constant 0 : index
    %1 = vector.load %arg2[%c128, %c0_1] : memref<520x128xf32, #tpu.memory_space<vmem>>, vector<128x128xf32>
    %c256 = arith.constant 256 : index
    %c0_2 = arith.constant 0 : index
    %2 = vector.load %arg2[%c256, %c0_2] : memref<520x128xf32, #tpu.memory_space<vmem>>, vector<128x128xf32>
    %c384 = arith.constant 384 : index
    %c0_3 = arith.constant 0 : index
    %3 = vector.load %arg2[%c384, %c0_3] : memref<520x128xf32, #tpu.memory_space<vmem>>, vector<128x128xf32>
    %c512 = arith.constant 512 : index
    %c0_4 = arith.constant 0 : index
    %4 = vector.load %arg2[%c512, %c0_4] : memref<520x128xf32, #tpu.memory_space<vmem>>, vector<1x128xf32>
    %c0_5 = arith.constant 0 : index
    %c0_6 = arith.constant 0 : index
    %5 = vector.load %arg0[%c0_5, %c0_6] : memref<16x1xi32, #tpu.memory_space<vmem>>, vector<16x1xi32>
    %6 = tpu.iota {dimensions = array<i32: 1>} : vector<16x128xi32>
    %7 = vector.broadcast %5 : vector<16x1xi32> to vector<16x128xi32>
    %8 = arith.cmpi eq, %6, %7 : vector<16x128xi32>
    %9 = arith.extui %8 : vector<16x128xi1> to vector<16x128xi32>
    %10 = arith.sitofp %9 : vector<16x128xi32> to vector<16x128xf32>
    %cst = arith.constant dense<0.000000e+00> : vector<16x128xf32>
    %11 = tpu.matmul %10, %0, %cst {dimension_numbers = #tpu.dot_dimension_numbers<[1], [0], [0], [1], [0, 0, 1, 1], [], []>, precision = #tpu.contract_precision<fp32>} : vector<16x128xf32>, vector<128x128xf32>, vector<16x128xf32> -> vector<16x128xf32>
    %12 = math.tanh %11 : vector<16x128xf32>
    %cst_7 = arith.constant dense<0.000000e+00> : vector<16x128xf32>
    %13 = tpu.matmul %12, %1, %cst_7 {dimension_numbers = #tpu.dot_dimension_numbers<[1], [0], [0], [1], [0, 0, 1, 1], [], []>, precision = #tpu.contract_precision<fp32>} : vector<16x128xf32>, vector<128x128xf32>, vector<16x128xf32> -> vector<16x128xf32>
    %cst_8 = arith.constant 0.000000e+00 : f32
    %14 = vector.broadcast %cst_8 : f32 to vector<16x128xf32>
    %15 = arith.maximumf %13, %14 : vector<16x128xf32>
    %cst_9 = arith.constant dense<0.000000e+00> : vector<16x128xf32>
    %16 = tpu.matmul %15, %2, %cst_9 {dimension_numbers = #tpu.dot_dimension_numbers<[1], [0], [0], [1], [0, 0, 1, 1], [], []>, precision = #tpu.contract_precision<fp32>} : vector<16x128xf32>, vector<128x128xf32>, vector<16x128xf32> -> vector<16x128xf32>
    %17 = arith.addf %12, %16 : vector<16x128xf32>
    %c0_10 = arith.constant 0 : index
    %c0_11 = arith.constant 0 : index
    %18 = vector.load %arg1[%c0_10, %c0_11] : memref<2x8xf32, #tpu.memory_space<vmem>>, vector<2x8xf32>
    %cst_12 = arith.constant dense<0.000000e+00> : vector<2xf32>
    %19 = vector.multi_reduction <add>, %18, %cst_12 [1] : vector<2x8xf32> to vector<2xf32>
    %20 = vector.shape_cast %19 : vector<2xf32> to vector<2x1xf32>
    %cst_13 = arith.constant 9.99999971E-10 : f32
    %21 = vector.broadcast %cst_13 : f32 to vector<2x1xf32>
    %22 = arith.maximumf %20, %21 : vector<2x1xf32>
    %23 = vector.broadcast %22 : vector<2x1xf32> to vector<2x8xf32>
    %24 = arith.divf %18, %23 : vector<2x8xf32>
    %25 = tpu.iota {dimensions = array<i32: 0>} : vector<2x16xi32>
    %26 = tpu.iota {dimensions = array<i32: 1>} : vector<2x16xi32>
    %c8_i32 = arith.constant 8 : i32
    %27 = vector.broadcast %c8_i32 : i32 to vector<2x16xi32>
    %28 = arith.muli %25, %27 : vector<2x16xi32>
    %29 = arith.cmpi sge, %26, %28 : vector<2x16xi32>
    %c8_i32_14 = arith.constant 8 : i32
    %30 = vector.broadcast %c8_i32_14 : i32 to vector<2x16xi32>
    %31 = arith.muli %25, %30 : vector<2x16xi32>
    %c8_i32_15 = arith.constant 8 : i32
    %32 = vector.broadcast %c8_i32_15 : i32 to vector<2x16xi32>
    %33 = arith.addi %31, %32 : vector<2x16xi32>
    %34 = arith.cmpi slt, %26, %33 : vector<2x16xi32>
    %35 = arith.andi %29, %34 : vector<2x16xi1>
    %36 = tpu.concatenate %24, %24 in 1 : vector<2x8xf32>, vector<2x8xf32> -> vector<2x16xf32>
    %cst_16 = arith.constant 0.000000e+00 : f32
    %37 = vector.broadcast %cst_16 : f32 to vector<2x16xf32>
    %38 = arith.select %35, %36, %37 : vector<2x16xi1>, vector<2x16xf32>
    %cst_17 = arith.constant dense<0.000000e+00> : vector<2x128xf32>
    %39 = tpu.matmul %38, %17, %cst_17 {dimension_numbers = #tpu.dot_dimension_numbers<[1], [0], [0], [1], [0, 0, 1, 1], [], []>, precision = #tpu.contract_precision<fp32>} : vector<2x16xf32>, vector<16x128xf32>, vector<2x128xf32> -> vector<2x128xf32>
    %cst_18 = arith.constant dense<0.000000e+00> : vector<2x128xf32>
    %40 = tpu.matmul %39, %3, %cst_18 {dimension_numbers = #tpu.dot_dimension_numbers<[1], [0], [0], [1], [0, 0, 1, 1], [], []>, precision = #tpu.contract_precision<fp32>} : vector<2x128xf32>, vector<128x128xf32>, vector<2x128xf32> -> vector<2x128xf32>
    %41 = vector.broadcast %4 : vector<1x128xf32> to vector<2x128xf32>
    %42 = arith.addf %40, %41 : vector<2x128xf32>
    %c0_19 = arith.constant 0 : index
    %c0_20 = arith.constant 0 : index
    %43 = vector.load %arg3[%c0_19, %c0_20] : memref<2x128xf32, #tpu.memory_space<vmem>>, vector<2x128xf32>
    tpu.vector_store %arg3[%c0_19, %c0_20], %42 {strides = array<i32>} : memref<2x128xf32, #tpu.memory_space<vmem>>, vector<2x128xf32>,
    return
  }
}

</mosaic_0001>

<llo_original>
// kernel: _forward_impl.1
$region0: #{_forward_impl.1}
  #allocation0 [shape = 'u32[]', space=smem, size = 0x4, offset = 0x4, fixed_abs, tag = 'smem constant byte address 0x4 - core index']
  #allocation1 [shape = 'u32[144,128]{1,0:T(1,128)}', space=vmem, size = 0x12000, scoped, tag = 'internal scratch']
  %s0 = inlined_call_operand.vmem [shape: s32[16,1], index: 0, kind: input, shape index: {}]
  %s1 = inlined_call_operand.vmem [shape: f32[2,8], index: 1, kind: input, shape index: {}]
  %s2 = inlined_call_operand.hbm [shape: f32[520,128], index: 2, kind: input, shape index: {}]
  %s3 = inlined_call_operand.vmem [shape: f32[2,128], index: 3, kind: output, shape index: {}]
  %s4 = sld [smem:[#allocation0]]
  $region26: #{_forward_impl.1} parent=0
    _
  %s6 = ssub.s32 1, %s4
  %s7 = scalar_select 0, %s6, %s4
  $region1: #{_forward_impl.1} parent=0
    #allocation2 [shape = 'u8[266240]{0}', space=vmem, size = 0x41000, scoped, tag = 'input window, operand 2, single buffered']
    #allocation3 [shape = 's32[1]{0}', space=sflag, size = 0x4, scoped, tag = 'scoped memory for _forward_impl.1']
    %8 = vsyncpa [#allocation3], 0
    // Predicated region
    $region2: #{_forward_impl.1} parent=1 // pred_check
      _
    $region3: #{_forward_impl.1} parent=1 // pred_check_branch
      %10 = sbr.rel (0) target = $region5
    $region4: #{_forward_impl.1} parent=1 // pred_region
      _
    $region5: #{_forward_impl.1} parent=1 // pred_fallthru
      _
    // Predicated region
    $region6: #{_forward_impl.1} parent=1 // pred_check
      _
    $region7: #{_forward_impl.1} parent=1 // pred_check_branch
      %12 = sbr.rel (0) target = $region9
    $region8: #{_forward_impl.1} parent=1 // pred_region
      _
    $region9: #{_forward_impl.1} parent=1 // pred_fallthru
      _
    // Predicated region
    $region10: #{_forward_impl.1} parent=1 // pred_check
      _
    $region11: #{_forward_impl.1} parent=1 // pred_check_branch
      %14 = sbr.rel (0) target = $region13
    $region12: #{_forward_impl.1} parent=1 // pred_region
      %s16 = ssub.s32 8320, 8320
      %17 = vsyncadd [#allocation3], %s16
      %s18 = sshll.u32 [#allocation2], 4
      %s19 = int_to_ptr.vmem [resolvable:$true] %s18
      %24 = dma.hbm_to_vmem [thread:$0]  %s2, 8320, %s19, [#allocation3], 128, 128, 8
    $region13: #{_forward_impl.1} parent=1 // pred_fallthru
      _
    // Predicated region
    $region14: #{_forward_impl.1} parent=1 // pred_check
      _
    $region15: #{_forward_impl.1} parent=1 // pred_check_branch
      %26 = sbr.rel (0) target = $region17
    $region16: #{_forward_impl.1} parent=1 // pred_region
      %27 = dma.done [#allocation3], 8320
    $region17: #{_forward_impl.1} parent=1 // pred_fallthru
      _
    %v28 = vld [vmem:[#allocation2] sm:$0xff]
    %v29 = vld [vmem:[#allocation2 + $0x8] sm:$0xff]
    %v30 = vld [vmem:[#allocation2 + $0x10] sm:$0xff]
    %v31 = vld [vmem:[#allocation2 + $0x18] sm:$0xff]
    %v32 = vld [vmem:[#allocation2 + $0x20] sm:$0xff]
    %v33 = vld [vmem:[#allocation2 + $0x28] sm:$0xff]
    %v34 = vld [vmem:[#allocation2 + $0x30] sm:$0xff]
    %v35 = vld [vmem:[#allocation2 + $0x38] sm:$0xff]
    %v36 = vld [vmem:[#allocation2 + $0x40] sm:$0xff]
    %v37 = vld [vmem:[#allocation2 + $0x48] sm:$0xff]
    %v38 = vld [vmem:[#allocation2 + $0x50] sm:$0xff]
    %v39 = vld [vmem:[#allocation2 + $0x58] sm:$0xff]
    %v40 = vld [vmem:[#allocation2 + $0x60] sm:$0xff]
    %v41 = vld [vmem:[#allocation2 + $0x68] sm:$0xff]
    %v42 = vld [vmem:[#allocation2 + $0x70] sm:$0xff]
    %v43 = vld [vmem:[#allocation2 + $0x78] sm:$0xff]
    %v44 = vld [vmem:[#allocation2 + $0x80] sm:$0xff]
    %v45 = vld [vmem:[#allocation2 + $0x88] sm:$0xff]
    %v46 = vld [vmem:[#allocation2 + $0x90] sm:$0xff]
    %v47 = vld [vmem:[#allocation2 + $0x98] sm:$0xff]
    %v48 = vld [vmem:[#allocation2 + $0xa0] sm:$0xff]
    %v49 = vld [vmem:[#allocation2 + $0xa8] sm:$0xff]
    %v50 = vld [vmem:[#allocation2 + $0xb0] sm:$0xff]
    %v51 = vld [vmem:[#allocation2 + $0xb8] sm:$0xff]
    %v52 = vld [vmem:[#allocation2 + $0xc0] sm:$0xff]
    %v53 = vld [vmem:[#allocation2 + $0xc8] sm:$0xff]
    %v54 = vld [vmem:[#allocation2 + $0xd0] sm:$0xff]
    %v55 = vld [vmem:[#allocation2 + $0xd8] sm:$0xff]
    %v56 = vld [vmem:[#allocation2 + $0xe0] sm:$0xff]
    %v57 = vld [vmem:[#allocation2 + $0xe8] sm:$0xff]
    %v58 = vld [vmem:[#allocation2 + $0xf0] sm:$0xff]
    %v59 = vld [vmem:[#allocation2 + $0xf8] sm:$0xff]
    %v60 = vld [vmem:[#allocation2 + $0x100] sm:$0xff]
    %v61 = vld [vmem:[#allocation2 + $0x108] sm:$0xff]
    %v62 = vld [vmem:[#allocation2 + $0x110] sm:$0xff]
    %v63 = vld [vmem:[#allocation2 + $0x118] sm:$0xff]
    %v64 = vld [vmem:[#allocation2 + $0x120] sm:$0xff]
    %v65 = vld [vmem:[#allocation2 + $0x128] sm:$0xff]
    %v66 = vld [vmem:[#allocation2 + $0x130] sm:$0xff]
    %v67 = vld [vmem:[#allocation2 + $0x138] sm:$0xff]
    %v68 = vld [vmem:[#allocation2 + $0x140] sm:$0xff]
    %v69 = vld [vmem:[#allocation2 + $0x148] sm:$0xff]
    %v70 = vld [vmem:[#allocation2 + $0x150] sm:$0xff]
    %v71 = vld [vmem:[#allocation2 + $0x158] sm:$0xff]
    %v72 = vld [vmem:[#allocation2 + $0x160] sm:$0xff]
    %v73 = vld [vmem:[#allocation2 + $0x168] sm:$0xff]
    %v74 = vld [vmem:[#allocation2 + $0x170] sm:$0xff]
    %v75 = vld [vmem:[#allocation2 + $0x178] sm:$0xff]
    %v76 = vld [vmem:[#allocation2 + $0x180] sm:$0xff]
    %v77 = vld [vmem:[#allocation2 + $0x188] sm:$0xff]
    %v78 = vld [vmem:[#allocation2 + $0x190] sm:$0xff]
    %v79 = vld [vmem:[#allocation2 + $0x198] sm:$0xff]
    %v80 = vld [vmem:[#allocation2 + $0x1a0] sm:$0xff]
    %v81 = vld [vmem:[#allocation2 + $0x1a8] sm:$0xff]
    %v82 = vld [vmem:[#allocation2 + $0x1b0] sm:$0xff]
    %v83 = vld [vmem:[#allocation2 + $0x1b8] sm:$0xff]
    %v84 = vld [vmem:[#allocation2 + $0x1c0] sm:$0xff]
    %v85 = vld [vmem:[#allocation2 + $0x1c8] sm:$0xff]
    %v86 = vld [vmem:[#allocation2 + $0x1d0] sm:$0xff]
    %v87 = vld [vmem:[#allocation2 + $0x1d8] sm:$0xff]
    %v88 = vld [vmem:[#allocation2 + $0x1e0] sm:$0xff]
    %v89 = vld [vmem:[#allocation2 + $0x1e8] sm:$0xff]
    %v90 = vld [vmem:[#allocation2 + $0x1f0] sm:$0xff]
    %v91 = vld [vmem:[#allocation2 + $0x1f8] sm:$0xff]
    %v92 = vld [vmem:[#allocation2 + $0x200] sm:$0x1]
    %v93 = vld [vmem:[%s0] sm:$0xff]
    %v94 = vld [vmem:[%s0 + $0x8] sm:$0xff]
    %v95 = vlaneseq
    %v96 = vand.u32 %v95, 127
    %97 = vset.pattern.permute.xlu0 0
    %98 = vperm.xlu0 %97, %v93
    %v99 = vpop.permute.xlu0 %98
    %100 = vset.pattern.permute.xlu0 0
    %101 = vperm.xlu0 %100, %v94
    %v102 = vpop.permute.xlu0 %101
    %vm103 = vcmp.eq.s32.totalorder %v96, %v99
    %vm104 = vcmp.eq.s32.totalorder %v96, %v102
    %v105 = vsel %vm103, 1, 0
    %v106 = vsel %vm104, 1, 0
    %v107 = vcvt.s32.f32 %v105
    %v108 = vcvt.s32.f32 %v106
    %109 = vmatprep.subr.mxu0 0.0
    %v110 = vand.u32 %v28, 4294901760
    %111 = vmatpush1.msra.mxu0 %v110
    %112 = vmatprep.subr.mxu0 0.0
    %v113 = vand.u32 %v29, 4294901760
    %114 = vmatpush1.msra.mxu0 %v113
    %115 = vmatprep.subr.mxu0 0.0
    %v116 = vand.u32 %v30, 4294901760
    %117 = vmatpush1.msra.mxu0 %v116
    %118 = vmatprep.subr.mxu0 0.0
    %v119 = vand.u32 %v31, 4294901760
    %120 = vmatpush1.msra.mxu0 %v119
    %121 = vmatprep.subr.mxu0 0.0
    %v122 = vand.u32 %v32, 4294901760
    %123 = vmatpush1.msra.mxu0 %v122
    %124 = vmatprep.subr.mxu0 0.0
    %v125 = vand.u32 %v33, 4294901760
    %126 = vmatpush1.msra.mxu0 %v125
    %127 = vmatprep.subr.mxu0 0.0
    %v128 = vand.u32 %v34, 4294901760
    %129 = vmatpush1.msra.mxu0 %v128
    %130 = vmatprep.subr.mxu0 0.0
    %v131 = vand.u32 %v35, 4294901760
    %132 = vmatpush1.msra.mxu0 %v131
    %133 = vmatprep.subr.mxu0 0.0
    %v134 = vand.u32 %v36, 4294901760
    %135 = vmatpush1.msra.mxu0 %v134
    %136 = vmatprep.subr.mxu0 0.0
    %v137 = vand.u32 %v37, 4294901760
    %138 = vmatpush1.msra.mxu0 %v137
    %139 = vmatprep.subr.mxu0 0.0
    %v140 = vand.u32 %v38, 4294901760
    %141 = vmatpush1.msra.mxu0 %v140
    %142 = vmatprep.subr.mxu0 0.0
    %v143 = vand.u32 %v39, 4294901760
    %144 = vmatpush1.msra.mxu0 %v143
    %145 = vmatprep.subr.mxu0 0.0
    %v146 = vand.u32 %v40, 4294901760
    %147 = vmatpush1.msra.mxu0 %v146
    %148 = vmatprep.subr.mxu0 0.0
    %v149 = vand.u32 %v41, 4294901760
    %150 = vmatpush1.msra.mxu0 %v149
    %151 = vmatprep.subr.mxu0 0.0
    %v152 = vand.u32 %v42, 4294901760
    %153 = vmatpush1.msra.mxu0 %v152
    %154 = vmatprep.subr.mxu0 0.0
    %v155 = vand.u32 %v43, 4294901760
    %156 = vmatpush1.msra.mxu0 %v155
    %157 = vmatprep.subr.mxu0 0.0
    %158 = vmatpush1.msra.mxu0 0.0
    %159 = vmatprep.subr.mxu0 0.0
    %160 = vmatpush1.msra.mxu0 0.0
    %161 = vmatprep.subr.mxu0 0.0
    %162 = vmatpush1.msra.mxu0 0.0
    %163 = vmatprep.subr.mxu0 0.0
    %164 = vmatpush1.msra.mxu0 0.0
    %165 = vmatprep.subr.mxu0 0.0
    %166 = vmatpush1.msra.mxu0 0.0
    %167 = vmatprep.subr.mxu0 0.0
    %168 = vmatpush1.msra.mxu0 0.0
    %169 = vmatprep.subr.mxu0 0.0
    %170 = vmatpush1.msra.mxu0 0.0
    %171 = vmatprep.subr.mxu0 0.0
    %172 = vmatpush1.msra.mxu0 0.0
    %173 = vmatprep.subr.mxu0 0.0
    %174 = vmatpush1.msra.mxu0 0.0
    %175 = vmatprep.subr.mxu0 0.0
    %176 = vmatpush1.msra.mxu0 0.0
    %177 = vmatprep.subr.mxu0 0.0
    %178 = vmatpush1.msra.mxu0 0.0
    %179 = vmatprep.subr.mxu0 0.0
    %180 = vmatpush1.msra.mxu0 0.0
    %181 = vmatprep.subr.mxu0 0.0
    %182 = vmatpush1.msra.mxu0 0.0
    %183 = vmatprep.subr.mxu0 0.0
    %184 = vmatpush1.msra.mxu0 0.0
    %185 = vmatprep.subr.mxu0 0.0
    %186 = vmatpush1.msra.mxu0 0.0
    %187 = vmatprep.subr.mxu0 0.0
    %188 = vmatpush1.msra.mxu0 0.0
    %189 = vmatprep.mubr.f32.mxu0 0.0
    %v190 = vand.u32 %v107, 4294901760
    %v191 = vsub.f32 %v107, %v190
    %v192 = vand.u32 %v191, 4294901760
    %v193 = vsub.f32 %v191, %v192
    %v194 = vand.u32 %v193, 4294901760
    %195 = vmatmul.mubr.f32.gmra.mrb[0].mxu0 %v194
    %v196 = vpop.f32.mrb[0].mxu0
    %v197 = vadd.f32 0.0, %v196
    %v198 = vpop.f32.mrb[0].mxu0
    %199 = vmatprep.mubr.f32.mxu0 0.0
    %v200 = vand.u32 %v108, 4294901760
    %v201 = vsub.f32 %v108, %v200
    %v202 = vand.u32 %v201, 4294901760
    %v203 = vsub.f32 %v201, %v202
    %v204 = vand.u32 %v203, 4294901760
    %205 = vmatmul.mubr.f32.gmra.mrb[0].mxu0 %v204
    %v206 = vpop.f32.mrb[0].mxu0
    %v207 = vadd.f32 0.0, %v206
    %v208 = vpop.f32.mrb[0].mxu0
    %209 = vdwg.mxu0
    %210 = vmatprep.subr.mxu0 0.0
    %v211 = vand.u32 %v28, 4294901760
    %v212 = vsub.f32 %v28, %v211
    %v213 = vand.u32 %v212, 4294901760
    %v214 = vsub.f32 %v212, %v213
    %v215 = vand.u32 %v214, 4294901760
    %216 = vmatpush1.msra.mxu0 %v215
    %217 = vmatprep.subr.mxu0 0.0
    %v218 = vand.u32 %v29, 4294901760
    %v219 = vsub.f32 %v29, %v218
    %v220 = vand.u32 %v219, 4294901760
    %v221 = vsub.f32 %v219, %v220
    %v222 = vand.u32 %v221, 4294901760
    %223 = vmatpush1.msra.mxu0 %v222
    %224 = vmatprep.subr.mxu0 0.0
    %v225 = vand.u32 %v30, 4294901760
    %v226 = vsub.f32 %v30, %v225
    %v227 = vand.u32 %v226, 4294901760
    %v228 = vsub.f32 %v226, %v227
    %v229 = vand.u32 %v228, 4294901760
    %230 = vmatpush1.msra.mxu0 %v229
    %231 = vmatprep.subr.mxu0 0.0
    %v232 = vand.u32 %v31, 4294901760
    %v233 = vsub.f32 %v31, %v232
    %v234 = vand.u32 %v233, 4294901760
    %v235 = vsub.f32 %v233, %v234
    %v236 = vand.u32 %v235, 4294901760
    %237 = vmatpush1.msra.mxu0 %v236
    %238 = vmatprep.subr.mxu0 0.0
    %v239 = vand.u32 %v32, 4294901760
    %v240 = vsub.f32 %v32, %v239
    %v241 = vand.u32 %v240, 4294901760
    %v242 = vsub.f32 %v240, %v241
    %v243 = vand.u32 %v242, 4294901760
    %244 = vmatpush1.msra.mxu0 %v243
    %245 = vmatprep.subr.mxu0 0.0
    %v246 = vand.u32 %v33, 4294901760
    %v247 = vsub.f32 %v33, %v246
    %v248 = vand.u32 %v247, 4294901760
    %v249 = vsub.f32 %v247, %v248
    %v250 = vand.u32 %v249, 4294901760
    %251 = vmatpush1.msra.mxu0 %v250
    %252 = vmatprep.subr.mxu0 0.0
    %v253 = vand.u32 %v34, 4294901760
    %v254 = vsub.f32 %v34, %v253
    %v255 = vand.u32 %v254, 4294901760
    %v256 = vsub.f32 %v254, %v255
    %v257 = vand.u32 %v256, 4294901760
    %258 = vmatpush1.msra.mxu0 %v257
    %259 = vmatprep.subr.mxu0 0.0
    %v260 = vand.u32 %v35, 4294901760
    %v261 = vsub.f32 %v35, %v260
    %v262 = vand.u32 %v261, 4294901760
    %v263 = vsub.f32 %v261, %v262
    %v264 = vand.u32 %v263, 4294901760
    %265 = vmatpush1.msra.mxu0 %v264
    %266 = vmatprep.subr.mxu0 0.0
    %v267 = vand.u32 %v36, 4294901760
    %v268 = vsub.f32 %v36, %v267
    %v269 = vand.u32 %v268, 4294901760
    %v270 = vsub.f32 %v268, %v269
    %v271 = vand.u32 %v270, 4294901760
    %272 = vmatpush1.msra.mxu0 %v271
    %273 = vmatprep.subr.mxu0 0.0
    %v274 = vand.u32 %v37, 4294901760
    %v275 = vsub.f32 %v37, %v274
    %v276 = vand.u32 %v275, 4294901760
    %v277 = vsub.f32 %v275, %v276
    %v278 = vand.u32 %v277, 4294901760
    %279 = vmatpush1.msra.mxu0 %v278
    %280 = vmatprep.subr.mxu0 0.0
    %v281 = vand.u32 %v38, 4294901760
    %v282 = vsub.f32 %v38, %v281
    %v283 = vand.u32 %v282, 4294901760
    %v284 = vsub.f32 %v282, %v283
    %v285 = vand.u32 %v284, 4294901760
    %286 = vmatpush1.msra.mxu0 %v285
    %287 = vmatprep.subr.mxu0 0.0
    %v288 = vand.u32 %v39, 4294901760
    %v289 = vsub.f32 %v39, %v288
    %v290 = vand.u32 %v289, 4294901760
    %v291 = vsub.f32 %v289, %v290
    %v292 = vand.u32 %v291, 4294901760
    %293 = vmatpush1.msra.mxu0 %v292
    %294 = vmatprep.subr.mxu0 0.0
    %v295 = vand.u32 %v40, 4294901760
    %v296 = vsub.f32 %v40, %v295
    %v297 = vand.u32 %v296, 4294901760
    %v298 = vsub.f32 %v296, %v297
    %v299 = vand.u32 %v298, 4294901760
    %300 = vmatpush1.msra.mxu0 %v299
    %301 = vmatprep.subr.mxu0 0.0
    %v302 = vand.u32 %v41, 4294901760
    %v303 = vsub.f32 %v41, %v302
    %v304 = vand.u32 %v303, 4294901760
    %v305 = vsub.f32 %v303, %v304
    %v306 = vand.u32 %v305, 4294901760
    %307 = vmatpush1.msra.mxu0 %v306
    %308 = vmatprep.subr.mxu0 0.0
    %v309 = vand.u32 %v42, 4294901760
    %v310 = vsub.f32 %v42, %v309
    %v311 = vand.u32 %v310, 4294901760
    %v312 = vsub.f32 %v310, %v311
    %v313 = vand.u32 %v312, 4294901760
    %314 = vmatpush1.msra.mxu0 %v313
    %315 = vmatprep.subr.mxu0 0.0
    %v316 = vand.u32 %v43, 4294901760
    %v317 = vsub.f32 %v43, %v316
    %v318 = vand.u32 %v317, 4294901760
    %v319 = vsub.f32 %v317, %v318
    %v320 = vand.u32 %v319, 4294901760
    %321 = vmatpush1.msra.mxu0 %v320
    %322 = vmatprep.subr.mxu0 0.0
    %323 = vmatpush1.msra.mxu0 0.0
    %324 = vmatprep.subr.mxu0 0.0
    %325 = vmatpush1.msra.mxu0 0.0
    %326 = vmatprep.subr.mxu0 0.0
    %327 = vmatpush1.msra.mxu0 0.0
    %328 = vmatprep.subr.mxu0 0.0
    %329 = vmatpush1.msra.mxu0 0.0
    %330 = vmatprep.subr.mxu0 0.0
    %331 = vmatpush1.msra.mxu0 0.0
    %332 = vmatprep.subr.mxu0 0.0
    %333 = vmatpush1.msra.mxu0 0.0
    %334 = vmatprep.subr.mxu0 0.0
    %335 = vmatpush1.msra.mxu0 0.0
    %336 = vmatprep.subr.mxu0 0.0
    %337 = vmatpush1.msra.mxu0 0.0
    %338 = vmatprep.subr.mxu0 0.0
    %339 = vmatpush1.msra.mxu0 0.0
    %340 = vmatprep.subr.mxu0 0.0
    %341 = vmatpush1.msra.mxu0 0.0
    %342 = vmatprep.subr.mxu0 0.0
    %343 = vmatpush1.msra.mxu0 0.0
    %344 = vmatprep.subr.mxu0 0.0
    %345 = vmatpush1.msra.mxu0 0.0
    %346 = vmatprep.subr.mxu0 0.0
    %347 = vmatpush1.msra.mxu0 0.0
    %348 = vmatprep.subr.mxu0 0.0
    %349 = vmatpush1.msra.mxu0 0.0
    %350 = vmatprep.subr.mxu0 0.0
    %351 = vmatpush1.msra.mxu0 0.0
    %352 = vmatprep.subr.mxu0 0.0
    %353 = vmatpush1.msra.mxu0 0.0
    %354 = vmatprep.mubr.f32.mxu0 0.0
    %v355 = vand.u32 %v107, 4294901760
    %356 = vmatmul.mubr.f32.gmra.mrb[0].mxu0 %v355
    %v357 = vpop.f32.mrb[0].mxu0
    %v358 = vadd.f32 %v197, %v357
    %v359 = vpop.f32.mrb[0].mxu0
    %360 = vmatprep.mubr.f32.mxu0 0.0
    %v361 = vand.u32 %v108, 4294901760
    %362 = vmatmul.mubr.f32.gmra.mrb[0].mxu0 %v361
    %v363 = vpop.f32.mrb[0].mxu0
    %v364 = vadd.f32 %v207, %v363
    %v365 = vpop.f32.mrb[0].mxu0
    %366 = vdwg.mxu0
    %367 = vmatprep.subr.mxu0 0.0
    %v368 = vand.u32 %v28, 4294901760
    %v369 = vsub.f32 %v28, %v368
    %370 = vmatpush1.msra.mxu0 %v369
    %371 = vmatprep.subr.mxu0 0.0
    %v372 = vand.u32 %v29, 4294901760
    %v373 = vsub.f32 %v29, %v372
    %374 = vmatpush1.msra.mxu0 %v373
    %375 = vmatprep.subr.mxu0 0.0
    %v376 = vand.u32 %v30, 4294901760
    %v377 = vsub.f32 %v30, %v376
    %378 = vmatpush1.msra.mxu0 %v377
    %379 = vmatprep.subr.mxu0 0.0
    %v380 = vand.u32 %v31, 4294901760
    %v381 = vsub.f32 %v31, %v380
    %382 = vmatpush1.msra.mxu0 %v381
    %383 = vmatprep.subr.mxu0 0.0
    %v384 = vand.u32 %v32, 4294901760
    %v385 = vsub.f32 %v32, %v384
    %386 = vmatpush1.msra.mxu0 %v385
    %387 = vmatprep.subr.mxu0 0.0
    %v388 = vand.u32 %v33, 4294901760
    %v389 = vsub.f32 %v33, %v388
    %390 = vmatpush1.msra.mxu0 %v389
    %391 = vmatprep.subr.mxu0 0.0
    %v392 = vand.u32 %v34, 4294901760
    %v393 = vsub.f32 %v34, %v392
    %394 = vmatpush1.msra.mxu0 %v393
    %395 = vmatprep.subr.mxu0 0.0
    %v396 = vand.u32 %v35, 4294901760
    %v397 = vsub.f32 %v35, %v396
    %398 = vmatpush1.msra.mxu0 %v397
    %399 = vmatprep.subr.mxu0 0.0
    %v400 = vand.u32 %v36, 4294901760
    %v401 = vsub.f32 %v36, %v400
    %402 = vmatpush1.msra.mxu0 %v401
    %403 = vmatprep.subr.mxu0 0.0
    %v404 = vand.u32 %v37, 4294901760
    %v405 = vsub.f32 %v37, %v404
    %406 = vmatpush1.msra.mxu0 %v405
    %407 = vmatprep.subr.mxu0 0.0
    %v408 = vand.u32 %v38, 4294901760
    %v409 = vsub.f32 %v38, %v408
    %410 = vmatpush1.msra.mxu0 %v409
    %411 = vmatprep.subr.mxu0 0.0
    %v412 = vand.u32 %v39, 4294901760
    %v413 = vsub.f32 %v39, %v412
    %414 = vmatpush1.msra.mxu0 %v413
    %415 = vmatprep.subr.mxu0 0.0
    %v416 = vand.u32 %v40, 4294901760
    %v417 = vsub.f32 %v40, %v416
    %418 = vmatpush1.msra.mxu0 %v417
    %419 = vmatprep.subr.mxu0 0.0
    %v420 = vand.u32 %v41, 4294901760
    %v421 = vsub.f32 %v41, %v420
    %422 = vmatpush1.msra.mxu0 %v421
    %423 = vmatprep.subr.mxu0 0.0
    %v424 = vand.u32 %v42, 4294901760
    %v425 = vsub.f32 %v42, %v424
    %426 = vmatpush1.msra.mxu0 %v425
    %427 = vmatprep.subr.mxu0 0.0
    %v428 = vand.u32 %v43, 4294901760
    %v429 = vsub.f32 %v43, %v428
    %430 = vmatpush1.msra.mxu0 %v429
    %431 = vmatprep.subr.mxu0 0.0
    %432 = vmatpush1.msra.mxu0 0.0
    %433 = vmatprep.subr.mxu0 0.0
    %434 = vmatpush1.msra.mxu0 0.0
    %435 = vmatprep.subr.mxu0 0.0
    %436 = vmatpush1.msra.mxu0 0.0
    %437 = vmatprep.subr.mxu0 0.0
    %438 = vmatpush1.msra.mxu0 0.0
    %439 = vmatprep.subr.mxu0 0.0
    %440 = vmatpush1.msra.mxu0 0.0
    %441 = vmatprep.subr.mxu0 0.0
    %442 = vmatpush1.msra.mxu0 0.0
    %443 = vmatprep.subr.mxu0 0.0
    %444 = vmatpush1.msra.mxu0 0.0
    %445 = vmatprep.subr.mxu0 0.0
    %446 = vmatpush1.msra.mxu0 0.0
    %447 = vmatprep.subr.mxu0 0.0
    %448 = vmatpush1.msra.mxu0 0.0
    %449 = vmatprep.subr.mxu0 0.0
    %450 = vmatpush1.msra.mxu0 0.0
    %451 = vmatprep.subr.mxu0 0.0
    %452 = vmatpush1.msra.mxu0 0.0
    %453 = vmatprep.subr.mxu0 0.0
    %454 = vmatpush1.msra.mxu0 0.0
    %455 = vmatprep.subr.mxu0 0.0
    %456 = vmatpush1.msra.mxu0 0.0
    %457 = vmatprep.subr.mxu0 0.0
    %458 = vmatpush1.msra.mxu0 0.0
    %459 = vmatprep.subr.mxu0 0.0
    %460 = vmatpush1.msra.mxu0 0.0
    %461 = vmatprep.subr.mxu0 0.0
    %462 = vmatpush1.msra.mxu0 0.0
    %463 = vmatprep.mubr.f32.mxu0 0.0
    %v464 = vand.u32 %v107, 4294901760
    %v465 = vsub.f32 %v107, %v464
    %466 = vmatmul.mubr.f32.gmra.mrb[0].mxu0 %v465
    %v467 = vpop.f32.mrb[0].mxu0
    %v468 = vadd.f32 %v358, %v467
    %v469 = vpop.f32.mrb[0].mxu0
    %470 = vmatprep.mubr.f32.mxu0 0.0
    %v471 = vand.u32 %v108, 4294901760
    %v472 = vsub.f32 %v108, %v471
    %473 = vmatmul.mubr.f32.gmra.mrb[0].mxu0 %v472
    %v474 = vpop.f32.mrb[0].mxu0
    %v475 = vadd.f32 %v364, %v474
    %v476 = vpop.f32.mrb[0].mxu0
    %477 = vdwg.mxu0
    %478 = vmatprep.subr.mxu0 0.0
    %v479 = vand.u32 %v28, 4294901760
    %480 = vmatpush1.msra.mxu0 %v479
    %481 = vmatprep.subr.mxu0 0.0
    %v482 = vand.u32 %v29, 4294901760
    %483 = vmatpush1.msra.mxu0 %v482
    %484 = vmatprep.subr.mxu0 0.0
    %v485 = vand.u32 %v30, 4294901760
    %486 = vmatpush1.msra.mxu0 %v485
    %487 = vmatprep.subr.mxu0 0.0
    %v488 = vand.u32 %v31, 4294901760
    %489 = vmatpush1.msra.mxu0 %v488
    %490 = vmatprep.subr.mxu0 0.0
    %v491 = vand.u32 %v32, 4294901760
    %492 = vmatpush1.msra.mxu0 %v491
    %493 = vmatprep.subr.mxu0 0.0
    %v494 = vand.u32 %v33, 4294901760
    %495 = vmatpush1.msra.mxu0 %v494
    %496 = vmatprep.subr.mxu0 0.0
    %v497 = vand.u32 %v34, 4294901760
    %498 = vmatpush1.msra.mxu0 %v497
    %499 = vmatprep.subr.mxu0 0.0
    %v500 = vand.u32 %v35, 4294901760
    %501 = vmatpush1.msra.mxu0 %v500
    %502 = vmatprep.subr.mxu0 0.0
    %v503 = vand.u32 %v36, 4294901760
    %504 = vmatpush1.msra.mxu0 %v503
    %505 = vmatprep.subr.mxu0 0.0
    %v506 = vand.u32 %v37, 4294901760
    %507 = vmatpush1.msra.mxu0 %v506
    %508 = vmatprep.subr.mxu0 0.0
    %v509 = vand.u32 %v38, 4294901760
    %510 = vmatpush1.msra.mxu0 %v509
    %511 = vmatprep.subr.mxu0 0.0
    %v512 = vand.u32 %v39, 4294901760
    %513 = vmatpush1.msra.mxu0 %v512
    %514 = vmatprep.subr.mxu0 0.0
    %v515 = vand.u32 %v40, 4294901760
    %516 = vmatpush1.msra.mxu0 %v515
    %517 = vmatprep.subr.mxu0 0.0
    %v518 = vand.u32 %v41, 4294901760
    %519 = vmatpush1.msra.mxu0 %v518
    %520 = vmatprep.subr.mxu0 0.0
    %v521 = vand.u32 %v42, 4294901760
    %522 = vmatpush1.msra.mxu0 %v521
    %523 = vmatprep.subr.mxu0 0.0
    %v524 = vand.u32 %v43, 4294901760
    %525 = vmatpush1.msra.mxu0 %v524
    %526 = vmatprep.subr.mxu0 0.0
    %527 = vmatpush1.msra.mxu0 0.0
    %528 = vmatprep.subr.mxu0 0.0
    %529 = vmatpush1.msra.mxu0 0.0
    %530 = vmatprep.subr.mxu0 0.0
    %531 = vmatpush1.msra.mxu0 0.0
    %532 = vmatprep.subr.mxu0 0.0
    %533 = vmatpush1.msra.mxu0 0.0
    %534 = vmatprep.subr.mxu0 0.0
    %535 = vmatpush1.msra.mxu0 0.0
    %536 = vmatprep.subr.mxu0 0.0
    %537 = vmatpush1.msra.mxu0 0.0
    %538 = vmatprep.subr.mxu0 0.0
    %539 = vmatpush1.msra.mxu0 0.0
    %540 = vmatprep.subr.mxu0 0.0
    %541 = vmatpush1.msra.mxu0 0.0
    %542 = vmatprep.subr.mxu0 0.0
    %543 = vmatpush1.msra.mxu0 0.0
    %544 = vmatprep.subr.mxu0 0.0
    %545 = vmatpush1.msra.mxu0 0.0
    %546 = vmatprep.subr.mxu0 0.0
    %547 = vmatpush1.msra.mxu0 0.0
    %548 = vmatprep.subr.mxu0 0.0
    %549 = vmatpush1.msra.mxu0 0.0
    %550 = vmatprep.subr.mxu0 0.0
    %551 = vmatpush1.msra.mxu0 0.0
    %552 = vmatprep.subr.mxu0 0.0
    %553 = vmatpush1.msra.mxu0 0.0
    %554 = vmatprep.subr.mxu0 0.0
    %555 = vmatpush1.msra.mxu0 0.0
    %556 = vmatprep.subr.mxu0 0.0
    %557 = vmatpush1.msra.mxu0 0.0
    %558 = vmatprep.mubr.f32.mxu0 0.0
    %v559 = vand.u32 %v107, 4294901760
    %v560 = vsub.f32 %v107, %v559
    %v561 = vand.u32 %v560, 4294901760
    %562 = vmatmul.mubr.f32.gmra.mrb[0].mxu0 %v561
    %v563 = vpop.f32.mrb[0].mxu0
    %v564 = vadd.f32 %v468, %v563
    %v565 = vpop.f32.mrb[0].mxu0
    %566 = vmatprep.mubr.f32.mxu0 0.0
    %v567 = vand.u32 %v108, 4294901760
    %v568 = vsub.f32 %v108, %v567
    %v569 = vand.u32 %v568, 4294901760
    %570 = vmatmul.mubr.f32.gmra.mrb[0].mxu0 %v569
    %v571 = vpop.f32.mrb[0].mxu0
    %v572 = vadd.f32 %v475, %v571
    %v573 = vpop.f32.mrb[0].mxu0
    %574 = vdwg.mxu0
    %575 = vmatprep.subr.mxu0 0.0
    %v576 = vand.u32 %v28, 4294901760
    %v577 = vsub.f32 %v28, %v576
    %v578 = vand.u32 %v577, 4294901760
    %579 = vmatpush1.msra.mxu0 %v578
    %580 = vmatprep.subr.mxu0 0.0
    %v581 = vand.u32 %v29, 4294901760
    %v582 = vsub.f32 %v29, %v581
    %v583 = vand.u32 %v582, 4294901760
    %584 = vmatpush1.msra.mxu0 %v583
    %585 = vmatprep.subr.mxu0 0.0
    %v586 = vand.u32 %v30, 4294901760
    %v587 = vsub.f32 %v30, %v586
    %v588 = vand.u32 %v587, 4294901760
    %589 = vmatpush1.msra.mxu0 %v588
    %590 = vmatprep.subr.mxu0 0.0
    %v591 = vand.u32 %v31, 4294901760
    %v592 = vsub.f32 %v31, %v591
    %v593 = vand.u32 %v592, 4294901760
    %594 = vmatpush1.msra.mxu0 %v593
    %595 = vmatprep.subr.mxu0 0.0
    %v596 = vand.u32 %v32, 4294901760
    %v597 = vsub.f32 %v32, %v596
    %v598 = vand.u32 %v597, 4294901760
    %599 = vmatpush1.msra.mxu0 %v598
    %600 = vmatprep.subr.mxu0 0.0
    %v601 = vand.u32 %v33, 4294901760
    %v602 = vsub.f32 %v33, %v601
    %v603 = vand.u32 %v602, 4294901760
    %604 = vmatpush1.msra.mxu0 %v603
    %605 = vmatprep.subr.mxu0 0.0
    %v606 = vand.u32 %v34, 4294901760
    %v607 = vsub.f32 %v34, %v606
    %v608 = vand.u32 %v607, 4294901760
    %609 = vmatpush1.msra.mxu0 %v608
    %610 = vmatprep.subr.mxu0 0.0
    %v611 = vand.u32 %v35, 4294901760
    %v612 = vsub.f32 %v35, %v611
    %v613 = vand.u32 %v612, 4294901760
    %614 = vmatpush1.msra.mxu0 %v613
    %615 = vmatprep.subr.mxu0 0.0
    %v616 = vand.u32 %v36, 4294901760
    %v617 = vsub.f32 %v36, %v616
    %v618 = vand.u32 %v617, 4294901760
    %619 = vmatpush1.msra.mxu0 %v618
    %620 = vmatprep.subr.mxu0 0.0
    %v621 = vand.u32 %v37, 4294901760
    %v622 = vsub.f32 %v37, %v621
    %v623 = vand.u32 %v622, 4294901760
    %624 = vmatpush1.msra.mxu0 %v623
    %625 = vmatprep.subr.mxu0 0.0
    %v626 = vand.u32 %v38, 4294901760
    %v627 = vsub.f32 %v38, %v626
    %v628 = vand.u32 %v627, 4294901760
    %629 = vmatpush1.msra.mxu0 %v628
    %630 = vmatprep.subr.mxu0 0.0
    %v631 = vand.u32 %v39, 4294901760
    %v632 = vsub.f32 %v39, %v631
    %v633 = vand.u32 %v632, 4294901760
    %634 = vmatpush1.msra.mxu0 %v633
    %635 = vmatprep.subr.mxu0 0.0
    %v636 = vand.u32 %v40, 4294901760
    %v637 = vsub.f32 %v40, %v636
    %v638 = vand.u32 %v637, 4294901760
    %639 = vmatpush1.msra.mxu0 %v638
    %640 = vmatprep.subr.mxu0 0.0
    %v641 = vand.u32 %v41, 4294901760
    %v642 = vsub.f32 %v41, %v641
    %v643 = vand.u32 %v642, 4294901760
    %644 = vmatpush1.msra.mxu0 %v643
    %645 = vmatprep.subr.mxu0 0.0
    %v646 = vand.u32 %v42, 4294901760
    %v647 = vsub.f32 %v42, %v646
    %v648 = vand.u32 %v647, 4294901760
    %649 = vmatpush1.msra.mxu0 %v648
    %650 = vmatprep.subr.mxu0 0.0
    %v651 = vand.u32 %v43, 4294901760
    %v652 = vsub.f32 %v43, %v651
    %v653 = vand.u32 %v652, 4294901760
    %654 = vmatpush1.msra.mxu0 %v653
    %655 = vmatprep.subr.mxu0 0.0
    %656 = vmatpush1.msra.mxu0 0.0
    %657 = vmatprep.subr.mxu0 0.0
    %658 = vmatpush1.msra.mxu0 0.0
    %659 = vmatprep.subr.mxu0 0.0
    %660 = vmatpush1.msra.mxu0 0.0
    %661 = vmatprep.subr.mxu0 0.0
    %662 = vmatpush1.msra.mxu0 0.0
    %663 = vmatprep.subr.mxu0 0.0
    %664 = vmatpush1.msra.mxu0 0.0
    %665 = vmatprep.subr.mxu0 0.0
    %666 = vmatpush1.msra.mxu0 0.0
    %667 = vmatprep.subr.mxu0 0.0
    %668 = vmatpush1.msra.mxu0 0.0
    %669 = vmatprep.subr.mxu0 0.0
    %670 = vmatpush1.msra.mxu0 0.0
    %671 = vmatprep.subr.mxu0 0.0
    %672 = vmatpush1.msra.mxu0 0.0
    %673 = vmatprep.subr.mxu0 0.0
    %674 = vmatpush1.msra.mxu0 0.0
    %675 = vmatprep.subr.mxu0 0.0
    %676 = vmatpush1.msra.mxu0 0.0
    %677 = vmatprep.subr.mxu0 0.0
    %678 = vmatpush1.msra.mxu0 0.0
    %679 = vmatprep.subr.mxu0 0.0
    %680 = vmatpush1.msra.mxu0 0.0
    %681 = vmatprep.subr.mxu0 0.0
    %682 = vmatpush1.msra.mxu0 0.0
    %683 = vmatprep.subr.mxu0 0.0
    %684 = vmatpush1.msra.mxu0 0.0
    %685 = vmatprep.subr.mxu0 0.0
    %686 = vmatpush1.msra.mxu0 0.0
    %687 = vmatprep.mubr.f32.mxu0 0.0
    %v688 = vand.u32 %v107, 4294901760
    %689 = vmatmul.mubr.f32.gmra.mrb[0].mxu0 %v688
    %v690 = vpop.f32.mrb[0].mxu0
    %v691 = vadd.f32 %v564, %v690
    %v692 = vpop.f32.mrb[0].mxu0
    %693 = vmatprep.mubr.f32.mxu0 0.0
    %v694 = vand.u32 %v108, 4294901760
    %695 = vmatmul.mubr.f32.gmra.mrb[0].mxu0 %v694
    %v696 = vpop.f32.mrb[0].mxu0
    %v697 = vadd.f32 %v572, %v696
    %v698 = vpop.f32.mrb[0].mxu0
    %699 = vdwg.mxu0
    %700 = vmatprep.subr.mxu0 0.0
    %v701 = vand.u32 %v28, 4294901760
    %702 = vmatpush1.msra.mxu0 %v701
    %703 = vmatprep.subr.mxu0 0.0
    %v704 = vand.u32 %v29, 4294901760
    %705 = vmatpush1.msra.mxu0 %v704
    %706 = vmatprep.subr.mxu0 0.0
    %v707 = vand.u32 %v30, 4294901760
    %708 = vmatpush1.msra.mxu0 %v707
    %709 = vmatprep.subr.mxu0 0.0
    %v710 = vand.u32 %v31, 4294901760
    %711 = vmatpush1.msra.mxu0 %v710
    %712 = vmatprep.subr.mxu0 0.0
    %v713 = vand.u32 %v32, 4294901760
    %714 = vmatpush1.msra.mxu0 %v713
    %715 = vmatprep.subr.mxu0 0.0
    %v716 = vand.u32 %v33, 4294901760
    %717 = vmatpush1.msra.mxu0 %v716
    %718 = vmatprep.subr.mxu0 0.0
    %v719 = vand.u32 %v34, 4294901760
    %720 = vmatpush1.msra.mxu0 %v719
    %721 = vmatprep.subr.mxu0 0.0
    %v722 = vand.u32 %v35, 4294901760
    %723 = vmatpush1.msra.mxu0 %v722
    %724 = vmatprep.subr.mxu0 0.0
    %v725 = vand.u32 %v36, 4294901760
    %726 = vmatpush1.msra.mxu0 %v725
    %727 = vmatprep.subr.mxu0 0.0
    %v728 = vand.u32 %v37, 4294901760
    %729 = vmatpush1.msra.mxu0 %v728
    %730 = vmatprep.subr.mxu0 0.0
    %v731 = vand.u32 %v38, 4294901760
    %732 = vmatpush1.msra.mxu0 %v731
    %733 = vmatprep.subr.mxu0 0.0
    %v734 = vand.u32 %v39, 4294901760
    %735 = vmatpush1.msra.mxu0 %v734
    %736 = vmatprep.subr.mxu0 0.0
    %v737 = vand.u32 %v40, 4294901760
    %738 = vmatpush1.msra.mxu0 %v737
    %739 = vmatprep.subr.mxu0 0.0
    %v740 = vand.u32 %v41, 4294901760
    %741 = vmatpush1.msra.mxu0 %v740
    %742 = vmatprep.subr.mxu0 0.0
    %v743 = vand.u32 %v42, 4294901760
    %744 = vmatpush1.msra.mxu0 %v743
    %745 = vmatprep.subr.mxu0 0.0
    %v746 = vand.u32 %v43, 4294901760
    %747 = vmatpush1.msra.mxu0 %v746
    %748 = vmatprep.subr.mxu0 0.0
    %749 = vmatpush1.msra.mxu0 0.0
    %750 = vmatprep.subr.mxu0 0.0
    %751 = vmatpush1.msra.mxu0 0.0
    %752 = vmatprep.subr.mxu0 0.0
    %753 = vmatpush1.msra.mxu0 0.0
    %754 = vmatprep.subr.mxu0 0.0
    %755 = vmatpush1.msra.mxu0 0.0
    %756 = vmatprep.subr.mxu0 0.0
    %757 = vmatpush1.msra.mxu0 0.0
    %758 = vmatprep.subr.mxu0 0.0
    %759 = vmatpush1.msra.mxu0 0.0
    %760 = vmatprep.subr.mxu0 0.0
    %761 = vmatpush1.msra.mxu0 0.0
    %762 = vmatprep.subr.mxu0 0.0
    %763 = vmatpush1.msra.mxu0 0.0
    %764 = vmatprep.subr.mxu0 0.0
    %765 = vmatpush1.msra.mxu0 0.0
    %766 = vmatprep.subr.mxu0 0.0
    %767 = vmatpush1.msra.mxu0 0.0
    %768 = vmatprep.subr.mxu0 0.0
    %769 = vmatpush1.msra.mxu0 0.0
    %770 = vmatprep.subr.mxu0 0.0
    %771 = vmatpush1.msra.mxu0 0.0
    %772 = vmatprep.subr.mxu0 0.0
    %773 = vmatpush1.msra.mxu0 0.0
    %774 = vmatprep.subr.mxu0 0.0
    %775 = vmatpush1.msra.mxu0 0.0
    %776 = vmatprep.subr.mxu0 0.0
    %777 = vmatpush1.msra.mxu0 0.0
    %778 = vmatprep.subr.mxu0 0.0
    %779 = vmatpush1.msra.mxu0 0.0
    %780 = vmatprep.mubr.f32.mxu0 0.0
    %v781 = vand.u32 %v107, 4294901760
    %782 = vmatmul.mubr.f32.gmra.mrb[0].mxu0 %v781
    %v783 = vpop.f32.mrb[0].mxu0
    %v784 = vadd.f32 %v691, %v783
    %v785 = vpop.f32.mrb[0].mxu0
    %786 = vmatprep.mubr.f32.mxu0 0.0
    %v787 = vand.u32 %v108, 4294901760
    %788 = vmatmul.mubr.f32.gmra.mrb[0].mxu0 %v787
    %v789 = vpop.f32.mrb[0].mxu0
    %v790 = vadd.f32 %v697, %v789
    %v791 = vpop.f32.mrb[0].mxu0
    %792 = vdwg.mxu0
    %v793 = vtanh.pop %v784
    %v794 = vtanh.pop %v790
    %795 = vmatprep.subr.mxu0 0.0
    %v796 = vand.u32 %v44, 4294901760
    %797 = vmatpush1.msra.mxu0 %v796
    %798 = vmatprep.subr.mxu0 0.0
    %v799 = vand.u32 %v45, 4294901760
    %800 = vmatpush1.msra.mxu0 %v799
    %801 = vmatprep.subr.mxu0 0.0
    %v802 = vand.u32 %v46, 4294901760
    %803 = vmatpush1.msra.mxu0 %v802
    %804 = vmatprep.subr.mxu0 0.0
    %v805 = vand.u32 %v47, 4294901760
    %806 = vmatpush1.msra.mxu0 %v805
    %807 = vmatprep.subr.mxu0 0.0
    %v808 = vand.u32 %v48, 4294901760
    %809 = vmatpush1.msra.mxu0 %v808
    %810 = vmatprep.subr.mxu0 0.0
    %v811 = vand.u32 %v49, 4294901760
    %812 = vmatpush1.msra.mxu0 %v811
    %813 = vmatprep.subr.mxu0 0.0
    %v814 = vand.u32 %v50, 4294901760
    %815 = vmatpush1.msra.mxu0 %v814
    %816 = vmatprep.subr.mxu0 0.0
    %v817 = vand.u32 %v51, 4294901760
    %818 = vmatpush1.msra.mxu0 %v817
    %819 = vmatprep.subr.mxu0 0.0
    %v820 = vand.u32 %v52, 4294901760
    %821 = vmatpush1.msra.mxu0 %v820
    %822 = vmatprep.subr.mxu0 0.0
    %v823 = vand.u32 %v53, 4294901760
    %824 = vmatpush1.msra.mxu0 %v823
    %825 = vmatprep.subr.mxu0 0.0
    %v826 = vand.u32 %v54, 4294901760
    %827 = vmatpush1.msra.mxu0 %v826
    %828 = vmatprep.subr.mxu0 0.0
    %v829 = vand.u32 %v55, 4294901760
    %830 = vmatpush1.msra.mxu0 %v829
    %831 = vmatprep.subr.mxu0 0.0
    %v832 = vand.u32 %v56, 4294901760
    %833 = vmatpush1.msra.mxu0 %v832
    %834 = vmatprep.subr.mxu0 0.0
    %v835 = vand.u32 %v57, 4294901760
    %836 = vmatpush1.msra.mxu0 %v835
    %837 = vmatprep.subr.mxu0 0.0
    %v838 = vand.u32 %v58, 4294901760
    %839 = vmatpush1.msra.mxu0 %v838
    %840 = vmatprep.subr.mxu0 0.0
    %v841 = vand.u32 %v59, 4294901760
    %842 = vmatpush1.msra.mxu0 %v841
    %843 = vmatprep.subr.mxu0 0.0
    %844 = vmatpush1.msra.mxu0 0.0
    %845 = vmatprep.subr.mxu0 0.0
    %846 = vmatpush1.msra.mxu0 0.0
    %847 = vmatprep.subr.mxu0 0.0
    %848 = vmatpush1.msra.mxu0 0.0
    %849 = vmatprep.subr.mxu0 0.0
    %850 = vmatpush1.msra.mxu0 0.0
    %851 = vmatprep.subr.mxu0 0.0
    %852 = vmatpush1.msra.mxu0 0.0
    %853 = vmatprep.subr.mxu0 0.0
    %854 = vmatpush1.msra.mxu0 0.0
    %855 = vmatprep.subr.mxu0 0.0
    %856 = vmatpush1.msra.mxu0 0.0
    %857 = vmatprep.subr.mxu0 0.0
    %858 = vmatpush1.msra.mxu0 0.0
    %859 = vmatprep.subr.mxu0 0.0
    %860 = vmatpush1.msra.mxu0 0.0
    %861 = vmatprep.subr.mxu0 0.0
    %862 = vmatpush1.msra.mxu0 0.0
    %863 = vmatprep.subr.mxu0 0.0
    %864 = vmatpush1.msra.mxu0 0.0
    %865 = vmatprep.subr.mxu0 0.0
    %866 = vmatpush1.msra.mxu0 0.0
    %867 = vmatprep.subr.mxu0 0.0
    %868 = vmatpush1.msra.mxu0 0.0
    %869 = vmatprep.subr.mxu0 0.0
    %870 = vmatpush1.msra.mxu0 0.0
    %871 = vmatprep.subr.mxu0 0.0
    %872 = vmatpush1.msra.mxu0 0.0
    %873 = vmatprep.subr.mxu0 0.0
    %874 = vmatpush1.msra.mxu0 0.0
    %875 = vmatprep.mubr.f32.mxu0 0.0
    %v876 = vand.u32 %v793, 4294901760
    %v877 = vsub.f32 %v793, %v876
    %v878 = vand.u32 %v877, 4294901760
    %v879 = vsub.f32 %v877, %v878
    %v880 = vand.u32 %v879, 4294901760
    %881 = vmatmul.mubr.f32.gmra.mrb[0].mxu0 %v880
    %v882 = vpop.f32.mrb[0].mxu0
    %v883 = vadd.f32 0.0, %v882
    %v884 = vpop.f32.mrb[0].mxu0
    %885 = vmatprep.mubr.f32.mxu0 0.0
    %v886 = vand.u32 %v794, 4294901760
    %v887 = vsub.f32 %v794, %v886
    %v888 = vand.u32 %v887, 4294901760
    %v889 = vsub.f32 %v887, %v888
    %v890 = vand.u32 %v889, 4294901760
    %891 = vmatmul.mubr.f32.gmra.mrb[0].mxu0 %v890
    %v892 = vpop.f32.mrb[0].mxu0
    %v893 = vadd.f32 0.0, %v892
    %v894 = vpop.f32.mrb[0].mxu0
    %895 = vdwg.mxu0
    %896 = vmatprep.subr.mxu0 0.0
    %v897 = vand.u32 %v44, 4294901760
    %v898 = vsub.f32 %v44, %v897
    %v899 = vand.u32 %v898, 4294901760
    %v900 = vsub.f32 %v898, %v899
    %v901 = vand.u32 %v900, 4294901760
    %902 = vmatpush1.msra.mxu0 %v901
    %903 = vmatprep.subr.mxu0 0.0
    %v904 = vand.u32 %v45, 4294901760
    %v905 = vsub.f32 %v45, %v904
    %v906 = vand.u32 %v905, 4294901760
    %v907 = vsub.f32 %v905, %v906
    %v908 = vand.u32 %v907, 4294901760
    %909 = vmatpush1.msra.mxu0 %v908
    %910 = vmatprep.subr.mxu0 0.0
    %v911 = vand.u32 %v46, 4294901760
    %v912 = vsub.f32 %v46, %v911
    %v913 = vand.u32 %v912, 4294901760
    %v914 = vsub.f32 %v912, %v913
    %v915 = vand.u32 %v914, 4294901760
    %916 = vmatpush1.msra.mxu0 %v915
    %917 = vmatprep.subr.mxu0 0.0
    %v918 = vand.u32 %v47, 4294901760
    %v919 = vsub.f32 %v47, %v918
    %v920 = vand.u32 %v919, 4294901760
    %v921 = vsub.f32 %v919, %v920
    %v922 = vand.u32 %v921, 4294901760
    %923 = vmatpush1.msra.mxu0 %v922
    %924 = vmatprep.subr.mxu0 0.0
    %v925 = vand.u32 %v48, 4294901760
    %v926 = vsub.f32 %v48, %v925
    %v927 = vand.u32 %v926, 4294901760
    %v928 = vsub.f32 %v926, %v927
    %v929 = vand.u32 %v928, 4294901760
    %930 = vmatpush1.msra.mxu0 %v929
    %931 = vmatprep.subr.mxu0 0.0
    %v932 = vand.u32 %v49, 4294901760
    %v933 = vsub.f32 %v49, %v932
    %v934 = vand.u32 %v933, 4294901760
    %v935 = vsub.f32 %v933, %v934
    %v936 = vand.u32 %v935, 4294901760
    %937 = vmatpush1.msra.mxu0 %v936
    %938 = vmatprep.subr.mxu0 0.0
    %v939 = vand.u32 %v50, 4294901760
    %v940 = vsub.f32 %v50, %v939
    %v941 = vand.u32 %v940, 4294901760
    %v942 = vsub.f32 %v940, %v941
    %v943 = vand.u32 %v942, 4294901760
    %944 = vmatpush1.msra.mxu0 %v943
    %945 = vmatprep.subr.mxu0 0.0
    %v946 = vand.u32 %v51, 4294901760
    %v947 = vsub.f32 %v51, %v946
    %v948 = vand.u32 %v947, 4294901760
    %v949 = vsub.f32 %v947, %v948
    %v950 = vand.u32 %v949, 4294901760
    %951 = vmatpush1.msra.mxu0 %v950
    %952 = vmatprep.subr.mxu0 0.0
    %v953 = vand.u32 %v52, 4294901760
    %v954 = vsub.f32 %v52, %v953
    %v955 = vand.u32 %v954, 4294901760
    %v956 = vsub.f32 %v954, %v955
    %v957 = vand.u32 %v956, 4294901760
    %958 = vmatpush1.msra.mxu0 %v957
    %959 = vmatprep.subr.mxu0 0.0
    %v960 = vand.u32 %v53, 4294901760
    %v961 = vsub.f32 %v53, %v960
    %v962 = vand.u32 %v961, 4294901760
    %v963 = vsub.f32 %v961, %v962
    %v964 = vand.u32 %v963, 4294901760
    %965 = vmatpush1.msra.mxu0 %v964
    %966 = vmatprep.subr.mxu0 0.0
    %v967 = vand.u32 %v54, 4294901760
    %v968 = vsub.f32 %v54, %v967
    %v969 = vand.u32 %v968, 4294901760
    %v970 = vsub.f32 %v968, %v969
    %v971 = vand.u32 %v970, 4294901760
    %972 = vmatpush1.msra.mxu0 %v971
    %973 = vmatprep.subr.mxu0 0.0
    %v974 = vand.u32 %v55, 4294901760
    %v975 = vsub.f32 %v55, %v974
    %v976 = vand.u32 %v975, 4294901760
    %v977 = vsub.f32 %v975, %v976
    %v978 = vand.u32 %v977, 4294901760
    %979 = vmatpush1.msra.mxu0 %v978
    %980 = vmatprep.subr.mxu0 0.0
    %v981 = vand.u32 %v56, 4294901760
    %v982 = vsub.f32 %v56, %v981
    %v983 = vand.u32 %v982, 4294901760
    %v984 = vsub.f32 %v982, %v983
    %v985 = vand.u32 %v984, 4294901760
    %986 = vmatpush1.msra.mxu0 %v985
    %987 = vmatprep.subr.mxu0 0.0
    %v988 = vand.u32 %v57, 4294901760
    %v989 = vsub.f32 %v57, %v988
    %v990 = vand.u32 %v989, 4294901760
    %v991 = vsub.f32 %v989, %v990
    %v992 = vand.u32 %v991, 4294901760
    %993 = vmatpush1.msra.mxu0 %v992
    %994 = vmatprep.subr.mxu0 0.0
    %v995 = vand.u32 %v58, 4294901760
    %v996 = vsub.f32 %v58, %v995
    %v997 = vand.u32 %v996, 4294901760
    %v998 = vsub.f32 %v996, %v997
    %v999 = vand.u32 %v998, 4294901760
    %1000 = vmatpush1.msra.mxu0 %v999
    %1001 = vmatprep.subr.mxu0 0.0
    %v1002 = vand.u32 %v59, 4294901760
    %v1003 = vsub.f32 %v59, %v1002
    %v1004 = vand.u32 %v1003, 4294901760
    %v1005 = vsub.f32 %v1003, %v1004
    %v1006 = vand.u32 %v1005, 4294901760
    %1007 = vmatpush1.msra.mxu0 %v1006
    %1008 = vmatprep.subr.mxu0 0.0
    %1009 = vmatpush1.msra.mxu0 0.0
    %1010 = vmatprep.subr.mxu0 0.0
    %1011 = vmatpush1.msra.mxu0 0.0
    %1012 = vmatprep.subr.mxu0 0.0
    %1013 = vmatpush1.msra.mxu0 0.0
    %1014 = vmatprep.subr.mxu0 0.0
    %1015 = vmatpush1.msra.mxu0 0.0
    %1016 = vmatprep.subr.mxu0 0.0
    %1017 = vmatpush1.msra.mxu0 0.0
    %1018 = vmatprep.subr.mxu0 0.0
    %1019 = vmatpush1.msra.mxu0 0.0
    %1020 = vmatprep.subr.mxu0 0.0
    %1021 = vmatpush1.msra.mxu0 0.0
    %1022 = vmatprep.subr.mxu0 0.0
    %1023 = vmatpush1.msra.mxu0 0.0
    %1024 = vmatprep.subr.mxu0 0.0
    %1025 = vmatpush1.msra.mxu0 0.0
    %1026 = vmatprep.subr.mxu0 0.0
    %1027 = vmatpush1.msra.mxu0 0.0
    %1028 = vmatprep.subr.mxu0 0.0
    %1029 = vmatpush1.msra.mxu0 0.0
    %1030 = vmatprep.subr.mxu0 0.0
    %1031 = vmatpush1.msra.mxu0 0.0
    %1032 = vmatprep.subr.mxu0 0.0
    %1033 = vmatpush1.msra.mxu0 0.0
    %1034 = vmatprep.subr.mxu0 0.0
    %1035 = vmatpush1.msra.mxu0 0.0
    %1036 = vmatprep.subr.mxu0 0.0
    %1037 = vmatpush1.msra.mxu0 0.0
    %1038 = vmatprep.subr.mxu0 0.0
    %1039 = vmatpush1.msra.mxu0 0.0
    %1040 = vmatprep.mubr.f32.mxu0 0.0
    %v1041 = vand.u32 %v793, 4294901760
    %1042 = vmatmul.mubr.f32.gmra.mrb[0].mxu0 %v1041
    %v1043 = vpop.f32.mrb[0].mxu0
    %v1044 = vadd.f32 %v883, %v1043
    %v1045 = vpop.f32.mrb[0].mxu0
    %1046 = vmatprep.mubr.f32.mxu0 0.0
    %v1047 = vand.u32 %v794, 4294901760
    %1048 = vmatmul.mubr.f32.gmra.mrb[0].mxu0 %v1047
    %v1049 = vpop.f32.mrb[0].mxu0
    %v1050 = vadd.f32 %v893, %v1049
    %v1051 = vpop.f32.mrb[0].mxu0
    %1052 = vdwg.mxu0
    %1053 = vmatprep.subr.mxu0 0.0
    %v1054 = vand.u32 %v44, 4294901760
    %v1055 = vsub.f32 %v44, %v1054
    %1056 = vmatpush1.msra.mxu0 %v1055
    %1057 = vmatprep.subr.mxu0 0.0
    %v1058 = vand.u32 %v45, 4294901760
    %v1059 = vsub.f32 %v45, %v1058
    %1060 = vmatpush1.msra.mxu0 %v1059
    %1061 = vmatprep.subr.mxu0 0.0
    %v1062 = vand.u32 %v46, 4294901760
    %v1063 = vsub.f32 %v46, %v1062
    %1064 = vmatpush1.msra.mxu0 %v1063
    %1065 = vmatprep.subr.mxu0 0.0
    %v1066 = vand.u32 %v47, 4294901760
    %v1067 = vsub.f32 %v47, %v1066
    %1068 = vmatpush1.msra.mxu0 %v1067
    %1069 = vmatprep.subr.mxu0 0.0
    %v1070 = vand.u32 %v48, 4294901760
    %v1071 = vsub.f32 %v48, %v1070
    %1072 = vmatpush1.msra.mxu0 %v1071
    %1073 = vmatprep.subr.mxu0 0.0
    %v1074 = vand.u32 %v49, 4294901760
    %v1075 = vsub.f32 %v49, %v1074
    %1076 = vmatpush1.msra.mxu0 %v1075
    %1077 = vmatprep.subr.mxu0 0.0
    %v1078 = vand.u32 %v50, 4294901760
    %v1079 = vsub.f32 %v50, %v1078
    %1080 = vmatpush1.msra.mxu0 %v1079
    %1081 = vmatprep.subr.mxu0 0.0
    %v1082 = vand.u32 %v51, 4294901760
    %v1083 = vsub.f32 %v51, %v1082
    %1084 = vmatpush1.msra.mxu0 %v1083
    %1085 = vmatprep.subr.mxu0 0.0
    %v1086 = vand.u32 %v52, 4294901760
    %v1087 = vsub.f32 %v52, %v1086
    %1088 = vmatpush1.msra.mxu0 %v1087
    %1089 = vmatprep.subr.mxu0 0.0
    %v1090 = vand.u32 %v53, 4294901760
    %v1091 = vsub.f32 %v53, %v1090
    %1092 = vmatpush1.msra.mxu0 %v1091
    %1093 = vmatprep.subr.mxu0 0.0
    %v1094 = vand.u32 %v54, 4294901760
    %v1095 = vsub.f32 %v54, %v1094
    %1096 = vmatpush1.msra.mxu0 %v1095
    %1097 = vmatprep.subr.mxu0 0.0
    %v1098 = vand.u32 %v55, 4294901760
    %v1099 = vsub.f32 %v55, %v1098
    %1100 = vmatpush1.msra.mxu0 %v1099
    %1101 = vmatprep.subr.mxu0 0.0
    %v1102 = vand.u32 %v56, 4294901760
    %v1103 = vsub.f32 %v56, %v1102
    %1104 = vmatpush1.msra.mxu0 %v1103
    %1105 = vmatprep.subr.mxu0 0.0
    %v1106 = vand.u32 %v57, 4294901760
    %v1107 = vsub.f32 %v57, %v1106
    %1108 = vmatpush1.msra.mxu0 %v1107
    %1109 = vmatprep.subr.mxu0 0.0
    %v1110 = vand.u32 %v58, 4294901760
    %v1111 = vsub.f32 %v58, %v1110
    %1112 = vmatpush1.msra.mxu0 %v1111
    %1113 = vmatprep.subr.mxu0 0.0
    %v1114 = vand.u32 %v59, 4294901760
    %v1115 = vsub.f32 %v59, %v1114
    %1116 = vmatpush1.msra.mxu0 %v1115
    %1117 = vmatprep.subr.mxu0 0.0
    %1118 = vmatpush1.msra.mxu0 0.0
    %1119 = vmatprep.subr.mxu0 0.0
    %1120 = vmatpush1.msra.mxu0 0.0
    %1121 = vmatprep.subr.mxu0 0.0
    %1122 = vmatpush1.msra.mxu0 0.0
    %1123 = vmatprep.subr.mxu0 0.0
    %1124 = vmatpush1.msra.mxu0 0.0
    %1125 = vmatprep.subr.mxu0 0.0
    %1126 = vmatpush1.msra.mxu0 0.0
    %1127 = vmatprep.subr.mxu0 0.0
    %1128 = vmatpush1.msra.mxu0 0.0
    %1129 = vmatprep.subr.mxu0 0.0
    %1130 = vmatpush1.msra.mxu0 0.0
    %1131 = vmatprep.subr.mxu0 0.0
    %1132 = vmatpush1.msra.mxu0 0.0
    %1133 = vmatprep.subr.mxu0 0.0
    %1134 = vmatpush1.msra.mxu0 0.0
    %1135 = vmatprep.subr.mxu0 0.0
    %1136 = vmatpush1.msra.mxu0 0.0
    %1137 = vmatprep.subr.mxu0 0.0
    %1138 = vmatpush1.msra.mxu0 0.0
    %1139 = vmatprep.subr.mxu0 0.0
    %1140 = vmatpush1.msra.mxu0 0.0
    %1141 = vmatprep.subr.mxu0 0.0
    %1142 = vmatpush1.msra.mxu0 0.0
    %1143 = vmatprep.subr.mxu0 0.0
    %1144 = vmatpush1.msra.mxu0 0.0
    %1145 = vmatprep.subr.mxu0 0.0
    %1146 = vmatpush1.msra.mxu0 0.0
    %1147 = vmatprep.subr.mxu0 0.0
    %1148 = vmatpush1.msra.mxu0 0.0
    %1149 = vmatprep.mubr.f32.mxu0 0.0
    %v1150 = vand.u32 %v793, 4294901760
    %v1151 = vsub.f32 %v793, %v1150
    %1152 = vmatmul.mubr.f32.gmra.mrb[0].mxu0 %v1151
    %v1153 = vpop.f32.mrb[0].mxu0
    %v1154 = vadd.f32 %v1044, %v1153
    %v1155 = vpop.f32.mrb[0].mxu0
    %1156 = vmatprep.mubr.f32.mxu0 0.0
    %v1157 = vand.u32 %v794, 4294901760
    %v1158 = vsub.f32 %v794, %v1157
    %1159 = vmatmul.mubr.f32.gmra.mrb[0].mxu0 %v1158
    %v1160 = vpop.f32.mrb[0].mxu0
    %v1161 = vadd.f32 %v1050, %v1160
    %v1162 = vpop.f32.mrb[0].mxu0
    %1163 = vdwg.mxu0
    %1164 = vmatprep.subr.mxu0 0.0
    %v1165 = vand.u32 %v44, 4294901760
    %1166 = vmatpush1.msra.mxu0 %v1165
    %1167 = vmatprep.subr.mxu0 0.0
    %v1168 = vand.u32 %v45, 4294901760
    %1169 = vmatpush1.msra.mxu0 %v1168
    %1170 = vmatprep.subr.mxu0 0.0
    %v1171 = vand.u32 %v46, 4294901760
    %1172 = vmatpush1.msra.mxu0 %v1171
    %1173 = vmatprep.subr.mxu0 0.0
    %v1174 = vand.u32 %v47, 4294901760
    %1175 = vmatpush1.msra.mxu0 %v1174
    %1176 = vmatprep.subr.mxu0 0.0
    %v1177 = vand.u32 %v48, 4294901760
    %1178 = vmatpush1.msra.mxu0 %v1177
    %1179 = vmatprep.subr.mxu0 0.0
    %v1180 = vand.u32 %v49, 4294901760
    %1181 = vmatpush1.msra.mxu0 %v1180
    %1182 = vmatprep.subr.mxu0 0.0
    %v1183 = vand.u32 %v50, 4294901760
    %1184 = vmatpush1.msra.mxu0 %v1183
    %1185 = vmatprep.subr.mxu0 0.0
    %v1186 = vand.u32 %v51, 4294901760
    %1187 = vmatpush1.msra.mxu0 %v1186
    %1188 = vmatprep.subr.mxu0 0.0
    %v1189 = vand.u32 %v52, 4294901760
    %1190 = vmatpush1.msra.mxu0 %v1189
    %1191 = vmatprep.subr.mxu0 0.0
    %v1192 = vand.u32 %v53, 4294901760
    %1193 = vmatpush1.msra.mxu0 %v1192
    %1194 = vmatprep.subr.mxu0 0.0
    %v1195 = vand.u32 %v54, 4294901760
    %1196 = vmatpush1.msra.mxu0 %v1195
    %1197 = vmatprep.subr.mxu0 0.0
    %v1198 = vand.u32 %v55, 4294901760
    %1199 = vmatpush1.msra.mxu0 %v1198
    %1200 = vmatprep.subr.mxu0 0.0
    %v1201 = vand.u32 %v56, 4294901760
    %1202 = vmatpush1.msra.mxu0 %v1201
    %1203 = vmatprep.subr.mxu0 0.0
    %v1204 = vand.u32 %v57, 4294901760
    %1205 = vmatpush1.msra.mxu0 %v1204
    %1206 = vmatprep.subr.mxu0 0.0
    %v1207 = vand.u32 %v58, 4294901760
    %1208 = vmatpush1.msra.mxu0 %v1207
    %1209 = vmatprep.subr.mxu0 0.0
    %v1210 = vand.u32 %v59, 4294901760
    %1211 = vmatpush1.msra.mxu0 %v1210
    %1212 = vmatprep.subr.mxu0 0.0
    %1213 = vmatpush1.msra.mxu0 0.0
    %1214 = vmatprep.subr.mxu0 0.0
    %1215 = vmatpush1.msra.mxu0 0.0
    %1216 = vmatprep.subr.mxu0 0.0
    %1217 = vmatpush1.msra.mxu0 0.0
    %1218 = vmatprep.subr.mxu0 0.0
    %1219 = vmatpush1.msra.mxu0 0.0
    %1220 = vmatprep.subr.mxu0 0.0
    %1221 = vmatpush1.msra.mxu0 0.0
    %1222 = vmatprep.subr.mxu0 0.0
    %1223 = vmatpush1.msra.mxu0 0.0
    %1224 = vmatprep.subr.mxu0 0.0
    %1225 = vmatpush1.msra.mxu0 0.0
    %1226 = vmatprep.subr.mxu0 0.0
    %1227 = vmatpush1.msra.mxu0 0.0
    %1228 = vmatprep.subr.mxu0 0.0
    %1229 = vmatpush1.msra.mxu0 0.0
    %1230 = vmatprep.subr.mxu0 0.0
    %1231 = vmatpush1.msra.mxu0 0.0
    %1232 = vmatprep.subr.mxu0 0.0
    %1233 = vmatpush1.msra.mxu0 0.0
    %1234 = vmatprep.subr.mxu0 0.0
    %1235 = vmatpush1.msra.mxu0 0.0
    %1236 = vmatprep.subr.mxu0 0.0
    %1237 = vmatpush1.msra.mxu0 0.0
    %1238 = vmatprep.subr.mxu0 0.0
    %1239 = vmatpush1.msra.mxu0 0.0
    %1240 = vmatprep.subr.mxu0 0.0
    %1241 = vmatpush1.msra.mxu0 0.0
    %1242 = vmatprep.subr.mxu0 0.0
    %1243 = vmatpush1.msra.mxu0 0.0
    %1244 = vmatprep.mubr.f32.mxu0 0.0
    %v1245 = vand.u32 %v793, 4294901760
    %v1246 = vsub.f32 %v793, %v1245
    %v1247 = vand.u32 %v1246, 4294901760
    %1248 = vmatmul.mubr.f32.gmra.mrb[0].mxu0 %v1247
    %v1249 = vpop.f32.mrb[0].mxu0
    %v1250 = vadd.f32 %v1154, %v1249
    %v1251 = vpop.f32.mrb[0].mxu0
    %1252 = vmatprep.mubr.f32.mxu0 0.0
    %v1253 = vand.u32 %v794, 4294901760
    %v1254 = vsub.f32 %v794, %v1253
    %v1255 = vand.u32 %v1254, 4294901760
    %1256 = vmatmul.mubr.f32.gmra.mrb[0].mxu0 %v1255
    %v1257 = vpop.f32.mrb[0].mxu0
    %v1258 = vadd.f32 %v1161, %v1257
    %v1259 = vpop.f32.mrb[0].mxu0
    %1260 = vdwg.mxu0
    %1261 = vmatprep.subr.mxu0 0.0
    %v1262 = vand.u32 %v44, 4294901760
    %v1263 = vsub.f32 %v44, %v1262
    %v1264 = vand.u32 %v1263, 4294901760
    %1265 = vmatpush1.msra.mxu0 %v1264
    %1266 = vmatprep.subr.mxu0 0.0
    %v1267 = vand.u32 %v45, 4294901760
    %v1268 = vsub.f32 %v45, %v1267
    %v1269 = vand.u32 %v1268, 4294901760
    %1270 = vmatpush1.msra.mxu0 %v1269
    %1271 = vmatprep.subr.mxu0 0.0
    %v1272 = vand.u32 %v46, 4294901760
    %v1273 = vsub.f32 %v46, %v1272
    %v1274 = vand.u32 %v1273, 4294901760
    %1275 = vmatpush1.msra.mxu0 %v1274
    %1276 = vmatprep.subr.mxu0 0.0
    %v1277 = vand.u32 %v47, 4294901760
    %v1278 = vsub.f32 %v47, %v1277
    %v1279 = vand.u32 %v1278, 4294901760
    %1280 = vmatpush1.msra.mxu0 %v1279
    %1281 = vmatprep.subr.mxu0 0.0
    %v1282 = vand.u32 %v48, 4294901760
    %v1283 = vsub.f32 %v48, %v1282
    %v1284 = vand.u32 %v1283, 4294901760
    %1285 = vmatpush1.msra.mxu0 %v1284
    %1286 = vmatprep.subr.mxu0 0.0
    %v1287 = vand.u32 %v49, 4294901760
    %v1288 = vsub.f32 %v49, %v1287
    %v1289 = vand.u32 %v1288, 4294901760
    %1290 = vmatpush1.msra.mxu0 %v1289
    %1291 = vmatprep.subr.mxu0 0.0
    %v1292 = vand.u32 %v50, 4294901760
    %v1293 = vsub.f32 %v50, %v1292
    %v1294 = vand.u32 %v1293, 4294901760
    %1295 = vmatpush1.msra.mxu0 %v1294
    %1296 = vmatprep.subr.mxu0 0.0
    %v1297 = vand.u32 %v51, 4294901760
    %v1298 = vsub.f32 %v51, %v1297
    %v1299 = vand.u32 %v1298, 4294901760
    %1300 = vmatpush1.msra.mxu0 %v1299
    %1301 = vmatprep.subr.mxu0 0.0
    %v1302 = vand.u32 %v52, 4294901760
    %v1303 = vsub.f32 %v52, %v1302
    %v1304 = vand.u32 %v1303, 4294901760
    %1305 = vmatpush1.msra.mxu0 %v1304
    %1306 = vmatprep.subr.mxu0 0.0
    %v1307 = vand.u32 %v53, 4294901760
    %v1308 = vsub.f32 %v53, %v1307
    %v1309 = vand.u32 %v1308, 4294901760
    %1310 = vmatpush1.msra.mxu0 %v1309
    %1311 = vmatprep.subr.mxu0 0.0
    %v1312 = vand.u32 %v54, 4294901760
    %v1313 = vsub.f32 %v54, %v1312
    %v1314 = vand.u32 %v1313, 4294901760
    %1315 = vmatpush1.msra.mxu0 %v1314
    %1316 = vmatprep.subr.mxu0 0.0
    %v1317 = vand.u32 %v55, 4294901760
    %v1318 = vsub.f32 %v55, %v1317
    %v1319 = vand.u32 %v1318, 4294901760
    %1320 = vmatpush1.msra.mxu0 %v1319
    %1321 = vmatprep.subr.mxu0 0.0
    %v1322 = vand.u32 %v56, 4294901760
    %v1323 = vsub.f32 %v56, %v1322
    %v1324 = vand.u32 %v1323, 4294901760
    %1325 = vmatpush1.msra.mxu0 %v1324
    %1326 = vmatprep.subr.mxu0 0.0
    %v1327 = vand.u32 %v57, 4294901760
    %v1328 = vsub.f32 %v57, %v1327
    %v1329 = vand.u32 %v1328, 4294901760
    %1330 = vmatpush1.msra.mxu0 %v1329
    %1331 = vmatprep.subr.mxu0 0.0
    %v1332 = vand.u32 %v58, 4294901760
    %v1333 = vsub.f32 %v58, %v1332
    %v1334 = vand.u32 %v1333, 4294901760
    %1335 = vmatpush1.msra.mxu0 %v1334
    %1336 = vmatprep.subr.mxu0 0.0
    %v1337 = vand.u32 %v59, 4294901760
    %v1338 = vsub.f32 %v59, %v1337
    %v1339 = vand.u32 %v1338, 4294901760
    %1340 = vmatpush1.msra.mxu0 %v1339
    %1341 = vmatprep.subr.mxu0 0.0
    %1342 = vmatpush1.msra.mxu0 0.0
    %1343 = vmatprep.subr.mxu0 0.0
    %1344 = vmatpush1.msra.mxu0 0.0
    %1345 = vmatprep.subr.mxu0 0.0
    %1346 = vmatpush1.msra.mxu0 0.0
    %1347 = vmatprep.subr.mxu0 0.0
    %1348 = vmatpush1.msra.mxu0 0.0
    %1349 = vmatprep.subr.mxu0 0.0
    %1350 = vmatpush1.msra.mxu0 0.0
    %1351 = vmatprep.subr.mxu0 0.0
    %1352 = vmatpush1.msra.mxu0 0.0
    %1353 = vmatprep.subr.mxu0 0.0
    %1354 = vmatpush1.msra.mxu0 0.0
    %1355 = vmatprep.subr.mxu0 0.0
    %1356 = vmatpush1.msra.mxu0 0.0
    %1357 = vmatprep.subr.mxu0 0.0
    %1358 = vmatpush1.msra.mxu0 0.0
    %1359 = vmatprep.subr.mxu0 0.0
    %1360 = vmatpush1.msra.mxu0 0.0
    %1361 = vmatprep.subr.mxu0 0.0
    %1362 = vmatpush1.msra.mxu0 0.0
    %1363 = vmatprep.subr.mxu0 0.0
    %1364 = vmatpush1.msra.mxu0 0.0
    %1365 = vmatprep.subr.mxu0 0.0
    %1366 = vmatpush1.msra.mxu0 0.0
    %1367 = vmatprep.subr.mxu0 0.0
    %1368 = vmatpush1.msra.mxu0 0.0
    %1369 = vmatprep.subr.mxu0 0.0
    %1370 = vmatpush1.msra.mxu0 0.0
    %1371 = vmatprep.subr.mxu0 0.0
    %1372 = vmatpush1.msra.mxu0 0.0
    %1373 = vmatprep.mubr.f32.mxu0 0.0
    %v1374 = vand.u32 %v793, 4294901760
    %1375 = vmatmul.mubr.f32.gmra.mrb[0].mxu0 %v1374
    %v1376 = vpop.f32.mrb[0].mxu0
    %v1377 = vadd.f32 %v1250, %v1376
    %v1378 = vpop.f32.mrb[0].mxu0
    %1379 = vmatprep.mubr.f32.mxu0 0.0
    %v1380 = vand.u32 %v794, 4294901760
    %1381 = vmatmul.mubr.f32.gmra.mrb[0].mxu0 %v1380
    %v1382 = vpop.f32.mrb[0].mxu0
    %v1383 = vadd.f32 %v1258, %v1382
    %v1384 = vpop.f32.mrb[0].mxu0
    %1385 = vdwg.mxu0
    %1386 = vmatprep.subr.mxu0 0.0
    %v1387 = vand.u32 %v44, 4294901760
    %1388 = vmatpush1.msra.mxu0 %v1387
    %1389 = vmatprep.subr.mxu0 0.0
    %v1390 = vand.u32 %v45, 4294901760
    %1391 = vmatpush1.msra.mxu0 %v1390
    %1392 = vmatprep.subr.mxu0 0.0
    %v1393 = vand.u32 %v46, 4294901760
    %1394 = vmatpush1.msra.mxu0 %v1393
    %1395 = vmatprep.subr.mxu0 0.0
    %v1396 = vand.u32 %v47, 4294901760
    %1397 = vmatpush1.msra.mxu0 %v1396
    %1398 = vmatprep.subr.mxu0 0.0
    %v1399 = vand.u32 %v48, 4294901760
    %1400 = vmatpush1.msra.mxu0 %v1399
    %1401 = vmatprep.subr.mxu0 0.0
    %v1402 = vand.u32 %v49, 4294901760
    %1403 = vmatpush1.msra.mxu0 %v1402
    %1404 = vmatprep.subr.mxu0 0.0
    %v1405 = vand.u32 %v50, 4294901760
    %1406 = vmatpush1.msra.mxu0 %v1405
    %1407 = vmatprep.subr.mxu0 0.0
    %v1408 = vand.u32 %v51, 4294901760
    %1409 = vmatpush1.msra.mxu0 %v1408
    %1410 = vmatprep.subr.mxu0 0.0
    %v1411 = vand.u32 %v52, 4294901760
    %1412 = vmatpush1.msra.mxu0 %v1411
    %1413 = vmatprep.subr.mxu0 0.0
    %v1414 = vand.u32 %v53, 4294901760
    %1415 = vmatpush1.msra.mxu0 %v1414
    %1416 = vmatprep.subr.mxu0 0.0
    %v1417 = vand.u32 %v54, 4294901760
    %1418 = vmatpush1.msra.mxu0 %v1417
    %1419 = vmatprep.subr.mxu0 0.0
    %v1420 = vand.u32 %v55, 4294901760
    %1421 = vmatpush1.msra.mxu0 %v1420
    %1422 = vmatprep.subr.mxu0 0.0
    %v1423 = vand.u32 %v56, 4294901760
    %1424 = vmatpush1.msra.mxu0 %v1423
    %1425 = vmatprep.subr.mxu0 0.0
    %v1426 = vand.u32 %v57, 4294901760
    %1427 = vmatpush1.msra.mxu0 %v1426
    %1428 = vmatprep.subr.mxu0 0.0
    %v1429 = vand.u32 %v58, 4294901760
    %1430 = vmatpush1.msra.mxu0 %v1429
    %1431 = vmatprep.subr.mxu0 0.0
    %v1432 = vand.u32 %v59, 4294901760
    %1433 = vmatpush1.msra.mxu0 %v1432
    %1434 = vmatprep.subr.mxu0 0.0
    %1435 = vmatpush1.msra.mxu0 0.0
    %1436 = vmatprep.subr.mxu0 0.0
    %1437 = vmatpush1.msra.mxu0 0.0
    %1438 = vmatprep.subr.mxu0 0.0
    %1439 = vmatpush1.msra.mxu0 0.0
    %1440 = vmatprep.subr.mxu0 0.0
    %1441 = vmatpush1.msra.mxu0 0.0
    %1442 = vmatprep.subr.mxu0 0.0
    %1443 = vmatpush1.msra.mxu0 0.0
    %1444 = vmatprep.subr.mxu0 0.0
    %1445 = vmatpush1.msra.mxu0 0.0
    %1446 = vmatprep.subr.mxu0 0.0
    %1447 = vmatpush1.msra.mxu0 0.0
    %1448 = vmatprep.subr.mxu0 0.0
    %1449 = vmatpush1.msra.mxu0 0.0
    %1450 = vmatprep.subr.mxu0 0.0
    %1451 = vmatpush1.msra.mxu0 0.0
    %1452 = vmatprep.subr.mxu0 0.0
    %1453 = vmatpush1.msra.mxu0 0.0
    %1454 = vmatprep.subr.mxu0 0.0
    %1455 = vmatpush1.msra.mxu0 0.0
    %1456 = vmatprep.subr.mxu0 0.0
    %1457 = vmatpush1.msra.mxu0 0.0
    %1458 = vmatprep.subr.mxu0 0.0
    %1459 = vmatpush1.msra.mxu0 0.0
    %1460 = vmatprep.subr.mxu0 0.0
    %1461 = vmatpush1.msra.mxu0 0.0
    %1462 = vmatprep.subr.mxu0 0.0
    %1463 = vmatpush1.msra.mxu0 0.0
    %1464 = vmatprep.subr.mxu0 0.0
    %1465 = vmatpush1.msra.mxu0 0.0
    %1466 = vmatprep.mubr.f32.mxu0 0.0
    %v1467 = vand.u32 %v793, 4294901760
    %1468 = vmatmul.mubr.f32.gmra.mrb[0].mxu0 %v1467
    %v1469 = vpop.f32.mrb[0].mxu0
    %v1470 = vadd.f32 %v1377, %v1469
    %v1471 = vpop.f32.mrb[0].mxu0
    %1472 = vmatprep.mubr.f32.mxu0 0.0
    %v1473 = vand.u32 %v794, 4294901760
    %1474 = vmatmul.mubr.f32.gmra.mrb[0].mxu0 %v1473
    %v1475 = vpop.f32.mrb[0].mxu0
    %v1476 = vadd.f32 %v1383, %v1475
    %v1477 = vpop.f32.mrb[0].mxu0
    %1478 = vdwg.mxu0
    %v1479 = vmax.f32 %v1470, 0.0
    %v1480 = vmax.f32 %v1476, 0.0
    %1481 = vmatprep.subr.mxu0 0.0
    %v1482 = vand.u32 %v60, 4294901760
    %1483 = vmatpush1.msra.mxu0 %v1482
    %1484 = vmatprep.subr.mxu0 0.0
    %v1485 = vand.u32 %v61, 4294901760
    %1486 = vmatpush1.msra.mxu0 %v1485
    %1487 = vmatprep.subr.mxu0 0.0
    %v1488 = vand.u32 %v62, 4294901760
    %1489 = vmatpush1.msra.mxu0 %v1488
    %1490 = vmatprep.subr.mxu0 0.0
    %v1491 = vand.u32 %v63, 4294901760
    %1492 = vmatpush1.msra.mxu0 %v1491
    %1493 = vmatprep.subr.mxu0 0.0
    %v1494 = vand.u32 %v64, 4294901760
    %1495 = vmatpush1.msra.mxu0 %v1494
    %1496 = vmatprep.subr.mxu0 0.0
    %v1497 = vand.u32 %v65, 4294901760
    %1498 = vmatpush1.msra.mxu0 %v1497
    %1499 = vmatprep.subr.mxu0 0.0
    %v1500 = vand.u32 %v66, 4294901760
    %1501 = vmatpush1.msra.mxu0 %v1500
    %1502 = vmatprep.subr.mxu0 0.0
    %v1503 = vand.u32 %v67, 4294901760
    %1504 = vmatpush1.msra.mxu0 %v1503
    %1505 = vmatprep.subr.mxu0 0.0
    %v1506 = vand.u32 %v68, 4294901760
    %1507 = vmatpush1.msra.mxu0 %v1506
    %1508 = vmatprep.subr.mxu0 0.0
    %v1509 = vand.u32 %v69, 4294901760
    %1510 = vmatpush1.msra.mxu0 %v1509
    %1511 = vmatprep.subr.mxu0 0.0
    %v1512 = vand.u32 %v70, 4294901760
    %1513 = vmatpush1.msra.mxu0 %v1512
    %1514 = vmatprep.subr.mxu0 0.0
    %v1515 = vand.u32 %v71, 4294901760
    %1516 = vmatpush1.msra.mxu0 %v1515
    %1517 = vmatprep.subr.mxu0 0.0
    %v1518 = vand.u32 %v72, 4294901760
    %1519 = vmatpush1.msra.mxu0 %v1518
    %1520 = vmatprep.subr.mxu0 0.0
    %v1521 = vand.u32 %v73, 4294901760
    %1522 = vmatpush1.msra.mxu0 %v1521
    %1523 = vmatprep.subr.mxu0 0.0
    %v1524 = vand.u32 %v74, 4294901760
    %1525 = vmatpush1.msra.mxu0 %v1524
    %1526 = vmatprep.subr.mxu0 0.0
    %v1527 = vand.u32 %v75, 4294901760
    %1528 = vmatpush1.msra.mxu0 %v1527
    %1529 = vmatprep.subr.mxu0 0.0
    %1530 = vmatpush1.msra.mxu0 0.0
    %1531 = vmatprep.subr.mxu0 0.0
    %1532 = vmatpush1.msra.mxu0 0.0
    %1533 = vmatprep.subr.mxu0 0.0
    %1534 = vmatpush1.msra.mxu0 0.0
    %1535 = vmatprep.subr.mxu0 0.0
    %1536 = vmatpush1.msra.mxu0 0.0
    %1537 = vmatprep.subr.mxu0 0.0
    %1538 = vmatpush1.msra.mxu0 0.0
    %1539 = vmatprep.subr.mxu0 0.0
    %1540 = vmatpush1.msra.mxu0 0.0
    %1541 = vmatprep.subr.mxu0 0.0
    %1542 = vmatpush1.msra.mxu0 0.0
    %1543 = vmatprep.subr.mxu0 0.0
    %1544 = vmatpush1.msra.mxu0 0.0
    %1545 = vmatprep.subr.mxu0 0.0
    %1546 = vmatpush1.msra.mxu0 0.0
    %1547 = vmatprep.subr.mxu0 0.0
    %1548 = vmatpush1.msra.mxu0 0.0
    %1549 = vmatprep.subr.mxu0 0.0
    %1550 = vmatpush1.msra.mxu0 0.0
    %1551 = vmatprep.subr.mxu0 0.0
    %1552 = vmatpush1.msra.mxu0 0.0
    %1553 = vmatprep.subr.mxu0 0.0
    %1554 = vmatpush1.msra.mxu0 0.0
    %1555 = vmatprep.subr.mxu0 0.0
    %1556 = vmatpush1.msra.mxu0 0.0
    %1557 = vmatprep.subr.mxu0 0.0
    %1558 = vmatpush1.msra.mxu0 0.0
    %1559 = vmatprep.subr.mxu0 0.0
    %1560 = vmatpush1.msra.mxu0 0.0
    %1561 = vmatprep.mubr.f32.mxu0 0.0
    %v1562 = vand.u32 %v1479, 4294901760
    %v1563 = vsub.f32 %v1479, %v1562
    %v1564 = vand.u32 %v1563, 4294901760
    %v1565 = vsub.f32 %v1563, %v1564
    %v1566 = vand.u32 %v1565, 4294901760
    %1567 = vmatmul.mubr.f32.gmra.mrb[0].mxu0 %v1566
    %v1568 = vpop.f32.mrb[0].mxu0
    %v1569 = vadd.f32 0.0, %v1568
    %v1570 = vpop.f32.mrb[0].mxu0
    %1571 = vmatprep.mubr.f32.mxu0 0.0
    %v1572 = vand.u32 %v1480, 4294901760
    %v1573 = vsub.f32 %v1480, %v1572
    %v1574 = vand.u32 %v1573, 4294901760
    %v1575 = vsub.f32 %v1573, %v1574
    %v1576 = vand.u32 %v1575, 4294901760
    %1577 = vmatmul.mubr.f32.gmra.mrb[0].mxu0 %v1576
    %v1578 = vpop.f32.mrb[0].mxu0
    %v1579 = vadd.f32 0.0, %v1578
    %v1580 = vpop.f32.mrb[0].mxu0
    %1581 = vdwg.mxu0
    %1582 = vmatprep.subr.mxu0 0.0
    %v1583 = vand.u32 %v60, 4294901760
    %v1584 = vsub.f32 %v60, %v1583
    %v1585 = vand.u32 %v1584, 4294901760
    %v1586 = vsub.f32 %v1584, %v1585
    %v1587 = vand.u32 %v1586, 4294901760
    %1588 = vmatpush1.msra.mxu0 %v1587
    %1589 = vmatprep.subr.mxu0 0.0
    %v1590 = vand.u32 %v61, 4294901760
    %v1591 = vsub.f32 %v61, %v1590
    %v1592 = vand.u32 %v1591, 4294901760
    %v1593 = vsub.f32 %v1591, %v1592
    %v1594 = vand.u32 %v1593, 4294901760
    %1595 = vmatpush1.msra.mxu0 %v1594
    %1596 = vmatprep.subr.mxu0 0.0
    %v1597 = vand.u32 %v62, 4294901760
    %v1598 = vsub.f32 %v62, %v1597
    %v1599 = vand.u32 %v1598, 4294901760
    %v1600 = vsub.f32 %v1598, %v1599
    %v1601 = vand.u32 %v1600, 4294901760
    %1602 = vmatpush1.msra.mxu0 %v1601
    %1603 = vmatprep.subr.mxu0 0.0
    %v1604 = vand.u32 %v63, 4294901760
    %v1605 = vsub.f32 %v63, %v1604
    %v1606 = vand.u32 %v1605, 4294901760
    %v1607 = vsub.f32 %v1605, %v1606
    %v1608 = vand.u32 %v1607, 4294901760
    %1609 = vmatpush1.msra.mxu0 %v1608
    %1610 = vmatprep.subr.mxu0 0.0
    %v1611 = vand.u32 %v64, 4294901760
    %v1612 = vsub.f32 %v64, %v1611
    %v1613 = vand.u32 %v1612, 4294901760
    %v1614 = vsub.f32 %v1612, %v1613
    %v1615 = vand.u32 %v1614, 4294901760
    %1616 = vmatpush1.msra.mxu0 %v1615
    %1617 = vmatprep.subr.mxu0 0.0
    %v1618 = vand.u32 %v65, 4294901760
    %v1619 = vsub.f32 %v65, %v1618
    %v1620 = vand.u32 %v1619, 4294901760
    %v1621 = vsub.f32 %v1619, %v1620
    %v1622 = vand.u32 %v1621, 4294901760
    %1623 = vmatpush1.msra.mxu0 %v1622
    %1624 = vmatprep.subr.mxu0 0.0
    %v1625 = vand.u32 %v66, 4294901760
    %v1626 = vsub.f32 %v66, %v1625
    %v1627 = vand.u32 %v1626, 4294901760
    %v1628 = vsub.f32 %v1626, %v1627
    %v1629 = vand.u32 %v1628, 4294901760
    %1630 = vmatpush1.msra.mxu0 %v1629
    %1631 = vmatprep.subr.mxu0 0.0
    %v1632 = vand.u32 %v67, 4294901760
    %v1633 = vsub.f32 %v67, %v1632
    %v1634 = vand.u32 %v1633, 4294901760
    %v1635 = vsub.f32 %v1633, %v1634
    %v1636 = vand.u32 %v1635, 4294901760
    %1637 = vmatpush1.msra.mxu0 %v1636
    %1638 = vmatprep.subr.mxu0 0.0
    %v1639 = vand.u32 %v68, 4294901760
    %v1640 = vsub.f32 %v68, %v1639
    %v1641 = vand.u32 %v1640, 4294901760
    %v1642 = vsub.f32 %v1640, %v1641
    %v1643 = vand.u32 %v1642, 4294901760
    %1644 = vmatpush1.msra.mxu0 %v1643
    %1645 = vmatprep.subr.mxu0 0.0
    %v1646 = vand.u32 %v69, 4294901760
    %v1647 = vsub.f32 %v69, %v1646
    %v1648 = vand.u32 %v1647, 4294901760
    %v1649 = vsub.f32 %v1647, %v1648
    %v1650 = vand.u32 %v1649, 4294901760
    %1651 = vmatpush1.msra.mxu0 %v1650
    %1652 = vmatprep.subr.mxu0 0.0
    %v1653 = vand.u32 %v70, 4294901760
    %v1654 = vsub.f32 %v70, %v1653
    %v1655 = vand.u32 %v1654, 4294901760
    %v1656 = vsub.f32 %v1654, %v1655
    %v1657 = vand.u32 %v1656, 4294901760
    %1658 = vmatpush1.msra.mxu0 %v1657
    %1659 = vmatprep.subr.mxu0 0.0
    %v1660 = vand.u32 %v71, 4294901760
    %v1661 = vsub.f32 %v71, %v1660
    %v1662 = vand.u32 %v1661, 4294901760
    %v1663 = vsub.f32 %v1661, %v1662
    %v1664 = vand.u32 %v1663, 4294901760
    %1665 = vmatpush1.msra.mxu0 %v1664
    %1666 = vmatprep.subr.mxu0 0.0
    %v1667 = vand.u32 %v72, 4294901760
    %v1668 = vsub.f32 %v72, %v1667
    %v1669 = vand.u32 %v1668, 4294901760
    %v1670 = vsub.f32 %v1668, %v1669
    %v1671 = vand.u32 %v1670, 4294901760
    %1672 = vmatpush1.msra.mxu0 %v1671
    %1673 = vmatprep.subr.mxu0 0.0
    %v1674 = vand.u32 %v73, 4294901760
    %v1675 = vsub.f32 %v73, %v1674
    %v1676 = vand.u32 %v1675, 4294901760
    %v1677 = vsub.f32 %v1675, %v1676
    %v1678 = vand.u32 %v1677, 4294901760
    %1679 = vmatpush1.msra.mxu0 %v1678
    %1680 = vmatprep.subr.mxu0 0.0
    %v1681 = vand.u32 %v74, 4294901760
    %v1682 = vsub.f32 %v74, %v1681
    %v1683 = vand.u32 %v1682, 4294901760
    %v1684 = vsub.f32 %v1682, %v1683
    %v1685 = vand.u32 %v1684, 4294901760
    %1686 = vmatpush1.msra.mxu0 %v1685
    %1687 = vmatprep.subr.mxu0 0.0
    %v1688 = vand.u32 %v75, 4294901760
    %v1689 = vsub.f32 %v75, %v1688
    %v1690 = vand.u32 %v1689, 4294901760
    %v1691 = vsub.f32 %v1689, %v1690
    %v1692 = vand.u32 %v1691, 4294901760
    %1693 = vmatpush1.msra.mxu0 %v1692
    %1694 = vmatprep.subr.mxu0 0.0
    %1695 = vmatpush1.msra.mxu0 0.0
    %1696 = vmatprep.subr.mxu0 0.0
    %1697 = vmatpush1.msra.mxu0 0.0
    %1698 = vmatprep.subr.mxu0 0.0
    %1699 = vmatpush1.msra.mxu0 0.0
    %1700 = vmatprep.subr.mxu0 0.0
    %1701 = vmatpush1.msra.mxu0 0.0
    %1702 = vmatprep.subr.mxu0 0.0
    %1703 = vmatpush1.msra.mxu0 0.0
    %1704 = vmatprep.subr.mxu0 0.0
    %1705 = vmatpush1.msra.mxu0 0.0
    %1706 = vmatprep.subr.mxu0 0.0
    %1707 = vmatpush1.msra.mxu0 0.0
    %1708 = vmatprep.subr.mxu0 0.0
    %1709 = vmatpush1.msra.mxu0 0.0
    %1710 = vmatprep.subr.mxu0 0.0
    %1711 = vmatpush1.msra.mxu0 0.0
    %1712 = vmatprep.subr.mxu0 0.0
    %1713 = vmatpush1.msra.mxu0 0.0
    %1714 = vmatprep.subr.mxu0 0.0
    %1715 = vmatpush1.msra.mxu0 0.0
    %1716 = vmatprep.subr.mxu0 0.0
    %1717 = vmatpush1.msra.mxu0 0.0
    %1718 = vmatprep.subr.mxu0 0.0
    %1719 = vmatpush1.msra.mxu0 0.0
    %1720 = vmatprep.subr.mxu0 0.0
    %1721 = vmatpush1.msra.mxu0 0.0
    %1722 = vmatprep.subr.mxu0 0.0
    %1723 = vmatpush1.msra.mxu0 0.0
    %1724 = vmatprep.subr.mxu0 0.0
    %1725 = vmatpush1.msra.mxu0 0.0
    %1726 = vmatprep.mubr.f32.mxu0 0.0
    %v1727 = vand.u32 %v1479, 4294901760
    %1728 = vmatmul.mubr.f32.gmra.mrb[0].mxu0 %v1727
    %v1729 = vpop.f32.mrb[0].mxu0
    %v1730 = vadd.f32 %v1569, %v1729
    %v1731 = vpop.f32.mrb[0].mxu0
    %1732 = vmatprep.mubr.f32.mxu0 0.0
    %v1733 = vand.u32 %v1480, 4294901760
    %1734 = vmatmul.mubr.f32.gmra.mrb[0].mxu0 %v1733
    %v1735 = vpop.f32.mrb[0].mxu0
    %v1736 = vadd.f32 %v1579, %v1735
    %v1737 = vpop.f32.mrb[0].mxu0
    %1738 = vdwg.mxu0
    %1739 = vmatprep.subr.mxu0 0.0
    %v1740 = vand.u32 %v60, 4294901760
    %v1741 = vsub.f32 %v60, %v1740
    %1742 = vmatpush1.msra.mxu0 %v1741
    %1743 = vmatprep.subr.mxu0 0.0
    %v1744 = vand.u32 %v61, 4294901760
    %v1745 = vsub.f32 %v61, %v1744
    %1746 = vmatpush1.msra.mxu0 %v1745
    %1747 = vmatprep.subr.mxu0 0.0
    %v1748 = vand.u32 %v62, 4294901760
    %v1749 = vsub.f32 %v62, %v1748
    %1750 = vmatpush1.msra.mxu0 %v1749
    %1751 = vmatprep.subr.mxu0 0.0
    %v1752 = vand.u32 %v63, 4294901760
    %v1753 = vsub.f32 %v63, %v1752
    %1754 = vmatpush1.msra.mxu0 %v1753
    %1755 = vmatprep.subr.mxu0 0.0
    %v1756 = vand.u32 %v64, 4294901760
    %v1757 = vsub.f32 %v64, %v1756
    %1758 = vmatpush1.msra.mxu0 %v1757
    %1759 = vmatprep.subr.mxu0 0.0
    %v1760 = vand.u32 %v65, 4294901760
    %v1761 = vsub.f32 %v65, %v1760
    %1762 = vmatpush1.msra.mxu0 %v1761
    %1763 = vmatprep.subr.mxu0 0.0
    %v1764 = vand.u32 %v66, 4294901760
    %v1765 = vsub.f32 %v66, %v1764
    %1766 = vmatpush1.msra.mxu0 %v1765
    %1767 = vmatprep.subr.mxu0 0.0
    %v1768 = vand.u32 %v67, 4294901760
    %v1769 = vsub.f32 %v67, %v1768
    %1770 = vmatpush1.msra.mxu0 %v1769
    %1771 = vmatprep.subr.mxu0 0.0
    %v1772 = vand.u32 %v68, 4294901760
    %v1773 = vsub.f32 %v68, %v1772
    %1774 = vmatpush1.msra.mxu0 %v1773
    %1775 = vmatprep.subr.mxu0 0.0
    %v1776 = vand.u32 %v69, 4294901760
    %v1777 = vsub.f32 %v69, %v1776
    %1778 = vmatpush1.msra.mxu0 %v1777
    %1779 = vmatprep.subr.mxu0 0.0
    %v1780 = vand.u32 %v70, 4294901760
    %v1781 = vsub.f32 %v70, %v1780
    %1782 = vmatpush1.msra.mxu0 %v1781
    %1783 = vmatprep.subr.mxu0 0.0
    %v1784 = vand.u32 %v71, 4294901760
    %v1785 = vsub.f32 %v71, %v1784
    %1786 = vmatpush1.msra.mxu0 %v1785
    %1787 = vmatprep.subr.mxu0 0.0
    %v1788 = vand.u32 %v72, 4294901760
    %v1789 = vsub.f32 %v72, %v1788
    %1790 = vmatpush1.msra.mxu0 %v1789
    %1791 = vmatprep.subr.mxu0 0.0
    %v1792 = vand.u32 %v73, 4294901760
    %v1793 = vsub.f32 %v73, %v1792
    %1794 = vmatpush1.msra.mxu0 %v1793
    %1795 = vmatprep.subr.mxu0 0.0
    %v1796 = vand.u32 %v74, 4294901760
    %v1797 = vsub.f32 %v74, %v1796
    %1798 = vmatpush1.msra.mxu0 %v1797
    %1799 = vmatprep.subr.mxu0 0.0
    %v1800 = vand.u32 %v75, 4294901760
    %v1801 = vsub.f32 %v75, %v1800
    %1802 = vmatpush1.msra.mxu0 %v1801
    %1803 = vmatprep.subr.mxu0 0.0
    %1804 = vmatpush1.msra.mxu0 0.0
    %1805 = vmatprep.subr.mxu0 0.0
    %1806 = vmatpush1.msra.mxu0 0.0
    %1807 = vmatprep.subr.mxu0 0.0
    %1808 = vmatpush1.msra.mxu0 0.0
    %1809 = vmatprep.subr.mxu0 0.0
    %1810 = vmatpush1.msra.mxu0 0.0
    %1811 = vmatprep.subr.mxu0 0.0
    %1812 = vmatpush1.msra.mxu0 0.0
    %1813 = vmatprep.subr.mxu0 0.0
    %1814 = vmatpush1.msra.mxu0 0.0
    %1815 = vmatprep.subr.mxu0 0.0
    %1816 = vmatpush1.msra.mxu0 0.0
    %1817 = vmatprep.subr.mxu0 0.0
    %1818 = vmatpush1.msra.mxu0 0.0
    %1819 = vmatprep.subr.mxu0 0.0
    %1820 = vmatpush1.msra.mxu0 0.0
    %1821 = vmatprep.subr.mxu0 0.0
    %1822 = vmatpush1.msra.mxu0 0.0
    %1823 = vmatprep.subr.mxu0 0.0
    %1824 = vmatpush1.msra.mxu0 0.0
    %1825 = vmatprep.subr.mxu0 0.0
    %1826 = vmatpush1.msra.mxu0 0.0
    %1827 = vmatprep.subr.mxu0 0.0
    %1828 = vmatpush1.msra.mxu0 0.0
    %1829 = vmatprep.subr.mxu0 0.0
    %1830 = vmatpush1.msra.mxu0 0.0
    %1831 = vmatprep.subr.mxu0 0.0
    %1832 = vmatpush1.msra.mxu0 0.0
    %1833 = vmatprep.subr.mxu0 0.0
    %1834 = vmatpush1.msra.mxu0 0.0
    %1835 = vmatprep.mubr.f32.mxu0 0.0
    %v1836 = vand.u32 %v1479, 4294901760
    %v1837 = vsub.f32 %v1479, %v1836
    %1838 = vmatmul.mubr.f32.gmra.mrb[0].mxu0 %v1837
    %v1839 = vpop.f32.mrb[0].mxu0
    %v1840 = vadd.f32 %v1730, %v1839
    %v1841 = vpop.f32.mrb[0].mxu0
    %1842 = vmatprep.mubr.f32.mxu0 0.0
    %v1843 = vand.u32 %v1480, 4294901760
    %v1844 = vsub.f32 %v1480, %v1843
    %1845 = vmatmul.mubr.f32.gmra.mrb[0].mxu0 %v1844
    %v1846 = vpop.f32.mrb[0].mxu0
    %v1847 = vadd.f32 %v1736, %v1846
    %v1848 = vpop.f32.mrb[0].mxu0
    %1849 = vdwg.mxu0
    %1850 = vmatprep.subr.mxu0 0.0
    %v1851 = vand.u32 %v60, 4294901760
    %1852 = vmatpush1.msra.mxu0 %v1851
    %1853 = vmatprep.subr.mxu0 0.0
    %v1854 = vand.u32 %v61, 4294901760
    %1855 = vmatpush1.msra.mxu0 %v1854
    %1856 = vmatprep.subr.mxu0 0.0
    %v1857 = vand.u32 %v62, 4294901760
    %1858 = vmatpush1.msra.mxu0 %v1857
    %1859 = vmatprep.subr.mxu0 0.0
    %v1860 = vand.u32 %v63, 4294901760
    %1861 = vmatpush1.msra.mxu0 %v1860
    %1862 = vmatprep.subr.mxu0 0.0
    %v1863 = vand.u32 %v64, 4294901760
    %1864 = vmatpush1.msra.mxu0 %v1863
    %1865 = vmatprep.subr.mxu0 0.0
    %v1866 = vand.u32 %v65, 4294901760
    %1867 = vmatpush1.msra.mxu0 %v1866
    %1868 = vmatprep.subr.mxu0 0.0
    %v1869 = vand.u32 %v66, 4294901760
    %1870 = vmatpush1.msra.mxu0 %v1869
    %1871 = vmatprep.subr.mxu0 0.0
    %v1872 = vand.u32 %v67, 4294901760
    %1873 = vmatpush1.msra.mxu0 %v1872
    %1874 = vmatprep.subr.mxu0 0.0
    %v1875 = vand.u32 %v68, 4294901760
    %1876 = vmatpush1.msra.mxu0 %v1875
    %1877 = vmatprep.subr.mxu0 0.0
    %v1878 = vand.u32 %v69, 4294901760
    %1879 = vmatpush1.msra.mxu0 %v1878
    %1880 = vmatprep.subr.mxu0 0.0
    %v1881 = vand.u32 %v70, 4294901760
    %1882 = vmatpush1.msra.mxu0 %v1881
    %1883 = vmatprep.subr.mxu0 0.0
    %v1884 = vand.u32 %v71, 4294901760
    %1885 = vmatpush1.msra.mxu0 %v1884
    %1886 = vmatprep.subr.mxu0 0.0
    %v1887 = vand.u32 %v72, 4294901760
    %1888 = vmatpush1.msra.mxu0 %v1887
    %1889 = vmatprep.subr.mxu0 0.0
    %v1890 = vand.u32 %v73, 4294901760
    %1891 = vmatpush1.msra.mxu0 %v1890
    %1892 = vmatprep.subr.mxu0 0.0
    %v1893 = vand.u32 %v74, 4294901760
    %1894 = vmatpush1.msra.mxu0 %v1893
    %1895 = vmatprep.subr.mxu0 0.0
    %v1896 = vand.u32 %v75, 4294901760
    %1897 = vmatpush1.msra.mxu0 %v1896
    %1898 = vmatprep.subr.mxu0 0.0
    %1899 = vmatpush1.msra.mxu0 0.0
    %1900 = vmatprep.subr.mxu0 0.0
    %1901 = vmatpush1.msra.mxu0 0.0
    %1902 = vmatprep.subr.mxu0 0.0
    %1903 = vmatpush1.msra.mxu0 0.0
    %1904 = vmatprep.subr.mxu0 0.0
    %1905 = vmatpush1.msra.mxu0 0.0
    %1906 = vmatprep.subr.mxu0 0.0
    %1907 = vmatpush1.msra.mxu0 0.0
    %1908 = vmatprep.subr.mxu0 0.0
    %1909 = vmatpush1.msra.mxu0 0.0
    %1910 = vmatprep.subr.mxu0 0.0
    %1911 = vmatpush1.msra.mxu0 0.0
    %1912 = vmatprep.subr.mxu0 0.0
    %1913 = vmatpush1.msra.mxu0 0.0
    %1914 = vmatprep.subr.mxu0 0.0
    %1915 = vmatpush1.msra.mxu0 0.0
    %1916 = vmatprep.subr.mxu0 0.0
    %1917 = vmatpush1.msra.mxu0 0.0
    %1918 = vmatprep.subr.mxu0 0.0
    %1919 = vmatpush1.msra.mxu0 0.0
    %1920 = vmatprep.subr.mxu0 0.0
    %1921 = vmatpush1.msra.mxu0 0.0
    %1922 = vmatprep.subr.mxu0 0.0
    %1923 = vmatpush1.msra.mxu0 0.0
    %1924 = vmatprep.subr.mxu0 0.0
    %1925 = vmatpush1.msra.mxu0 0.0
    %1926 = vmatprep.subr.mxu0 0.0
    %1927 = vmatpush1.msra.mxu0 0.0
    %1928 = vmatprep.subr.mxu0 0.0
    %1929 = vmatpush1.msra.mxu0 0.0
    %1930 = vmatprep.mubr.f32.mxu0 0.0
    %v1931 = vand.u32 %v1479, 4294901760
    %v1932 = vsub.f32 %v1479, %v1931
    %v1933 = vand.u32 %v1932, 4294901760
    %1934 = vmatmul.mubr.f32.gmra.mrb[0].mxu0 %v1933
    %v1935 = vpop.f32.mrb[0].mxu0
    %v1936 = vadd.f32 %v1840, %v1935
    %v1937 = vpop.f32.mrb[0].mxu0
    %1938 = vmatprep.mubr.f32.mxu0 0.0
    %v1939 = vand.u32 %v1480, 4294901760
    %v1940 = vsub.f32 %v1480, %v1939
    %v1941 = vand.u32 %v1940, 4294901760
    %1942 = vmatmul.mubr.f32.gmra.mrb[0].mxu0 %v1941
    %v1943 = vpop.f32.mrb[0].mxu0
    %v1944 = vadd.f32 %v1847, %v1943
    %v1945 = vpop.f32.mrb[0].mxu0
    %1946 = vdwg.mxu0
    %1947 = vmatprep.subr.mxu0 0.0
    %v1948 = vand.u32 %v60, 4294901760
    %v1949 = vsub.f32 %v60, %v1948
    %v1950 = vand.u32 %v1949, 4294901760
    %1951 = vmatpush1.msra.mxu0 %v1950
    %1952 = vmatprep.subr.mxu0 0.0
    %v1953 = vand.u32 %v61, 4294901760
    %v1954 = vsub.f32 %v61, %v1953
    %v1955 = vand.u32 %v1954, 4294901760
    %1956 = vmatpush1.msra.mxu0 %v1955
    %1957 = vmatprep.subr.mxu0 0.0
    %v1958 = vand.u32 %v62, 4294901760
    %v1959 = vsub.f32 %v62, %v1958
    %v1960 = vand.u32 %v1959, 4294901760
    %1961 = vmatpush1.msra.mxu0 %v1960
    %1962 = vmatprep.subr.mxu0 0.0
    %v1963 = vand.u32 %v63, 4294901760
    %v1964 = vsub.f32 %v63, %v1963
    %v1965 = vand.u32 %v1964, 4294901760
    %1966 = vmatpush1.msra.mxu0 %v1965
    %1967 = vmatprep.subr.mxu0 0.0
    %v1968 = vand.u32 %v64, 4294901760
    %v1969 = vsub.f32 %v64, %v1968
    %v1970 = vand.u32 %v1969, 4294901760
    %1971 = vmatpush1.msra.mxu0 %v1970
    %1972 = vmatprep.subr.mxu0 0.0
    %v1973 = vand.u32 %v65, 4294901760
    %v1974 = vsub.f32 %v65, %v1973
    %v1975 = vand.u32 %v1974, 4294901760
    %1976 = vmatpush1.msra.mxu0 %v1975
    %1977 = vmatprep.subr.mxu0 0.0
    %v1978 = vand.u32 %v66, 4294901760
    %v1979 = vsub.f32 %v66, %v1978
    %v1980 = vand.u32 %v1979, 4294901760
    %1981 = vmatpush1.msra.mxu0 %v1980
    %1982 = vmatprep.subr.mxu0 0.0
    %v1983 = vand.u32 %v67, 4294901760
    %v1984 = vsub.f32 %v67, %v1983
    %v1985 = vand.u32 %v1984, 4294901760
    %1986 = vmatpush1.msra.mxu0 %v1985
    %1987 = vmatprep.subr.mxu0 0.0
    %v1988 = vand.u32 %v68, 4294901760
    %v1989 = vsub.f32 %v68, %v1988
    %v1990 = vand.u32 %v1989, 4294901760
    %1991 = vmatpush1.msra.mxu0 %v1990
    %1992 = vmatprep.subr.mxu0 0.0
    %v1993 = vand.u32 %v69, 4294901760
    %v1994 = vsub.f32 %v69, %v1993
    %v1995 = vand.u32 %v1994, 4294901760
    %1996 = vmatpush1.msra.mxu0 %v1995
    %1997 = vmatprep.subr.mxu0 0.0
    %v1998 = vand.u32 %v70, 4294901760
    %v1999 = vsub.f32 %v70, %v1998
    %v2000 = vand.u32 %v1999, 4294901760
    %2001 = vmatpush1.msra.mxu0 %v2000
    %2002 = vmatprep.subr.mxu0 0.0
    %v2003 = vand.u32 %v71, 4294901760
    %v2004 = vsub.f32 %v71, %v2003
    %v2005 = vand.u32 %v2004, 4294901760
    %2006 = vmatpush1.msra.mxu0 %v2005
    %2007 = vmatprep.subr.mxu0 0.0
    %v2008 = vand.u32 %v72, 4294901760
    %v2009 = vsub.f32 %v72, %v2008
    %v2010 = vand.u32 %v2009, 4294901760
    %2011 = vmatpush1.msra.mxu0 %v2010
    %2012 = vmatprep.subr.mxu0 0.0
    %v2013 = vand.u32 %v73, 4294901760
    %v2014 = vsub.f32 %v73, %v2013
    %v2015 = vand.u32 %v2014, 4294901760
    %2016 = vmatpush1.msra.mxu0 %v2015
    %2017 = vmatprep.subr.mxu0 0.0
    %v2018 = vand.u32 %v74, 4294901760
    %v2019 = vsub.f32 %v74, %v2018
    %v2020 = vand.u32 %v2019, 4294901760
    %2021 = vmatpush1.msra.mxu0 %v2020
    %2022 = vmatprep.subr.mxu0 0.0
    %v2023 = vand.u32 %v75, 4294901760
    %v2024 = vsub.f32 %v75, %v2023
    %v2025 = vand.u32 %v2024, 4294901760
    %2026 = vmatpush1.msra.mxu0 %v2025
    %2027 = vmatprep.subr.mxu0 0.0
    %2028 = vmatpush1.msra.mxu0 0.0
    %2029 = vmatprep.subr.mxu0 0.0
    %2030 = vmatpush1.msra.mxu0 0.0
    %2031 = vmatprep.subr.mxu0 0.0
    %2032 = vmatpush1.msra.mxu0 0.0
    %2033 = vmatprep.subr.mxu0 0.0
    %2034 = vmatpush1.msra.mxu0 0.0
    %2035 = vmatprep.subr.mxu0 0.0
    %2036 = vmatpush1.msra.mxu0 0.0
    %2037 = vmatprep.subr.mxu0 0.0
    %2038 = vmatpush1.msra.mxu0 0.0
    %2039 = vmatprep.subr.mxu0 0.0
    %2040 = vmatpush1.msra.mxu0 0.0
    %2041 = vmatprep.subr.mxu0 0.0
    %2042 = vmatpush1.msra.mxu0 0.0
    %2043 = vmatprep.subr.mxu0 0.0
    %2044 = vmatpush1.msra.mxu0 0.0
    %2045 = vmatprep.subr.mxu0 0.0
    %2046 = vmatpush1.msra.mxu0 0.0
    %2047 = vmatprep.subr.mxu0 0.0
    %2048 = vmatpush1.msra.mxu0 0.0
    %2049 = vmatprep.subr.mxu0 0.0
    %2050 = vmatpush1.msra.mxu0 0.0
    %2051 = vmatprep.subr.mxu0 0.0
    %2052 = vmatpush1.msra.mxu0 0.0
    %2053 = vmatprep.subr.mxu0 0.0
    %2054 = vmatpush1.msra.mxu0 0.0
    %2055 = vmatprep.subr.mxu0 0.0
    %2056 = vmatpush1.msra.mxu0 0.0
    %2057 = vmatprep.subr.mxu0 0.0
    %2058 = vmatpush1.msra.mxu0 0.0
    %2059 = vmatprep.mubr.f32.mxu0 0.0
    %v2060 = vand.u32 %v1479, 4294901760
    %2061 = vmatmul.mubr.f32.gmra.mrb[0].mxu0 %v2060
    %v2062 = vpop.f32.mrb[0].mxu0
    %v2063 = vadd.f32 %v1936, %v2062
    %v2064 = vpop.f32.mrb[0].mxu0
    %2065 = vmatprep.mubr.f32.mxu0 0.0
    %v2066 = vand.u32 %v1480, 4294901760
    %2067 = vmatmul.mubr.f32.gmra.mrb[0].mxu0 %v2066
    %v2068 = vpop.f32.mrb[0].mxu0
    %v2069 = vadd.f32 %v1944, %v2068
    %v2070 = vpop.f32.mrb[0].mxu0
    %2071 = vdwg.mxu0
    %2072 = vmatprep.subr.mxu0 0.0
    %v2073 = vand.u32 %v60, 4294901760
    %2074 = vmatpush1.msra.mxu0 %v2073
    %2075 = vmatprep.subr.mxu0 0.0
    %v2076 = vand.u32 %v61, 4294901760
    %2077 = vmatpush1.msra.mxu0 %v2076
    %2078 = vmatprep.subr.mxu0 0.0
    %v2079 = vand.u32 %v62, 4294901760
    %2080 = vmatpush1.msra.mxu0 %v2079
    %2081 = vmatprep.subr.mxu0 0.0
    %v2082 = vand.u32 %v63, 4294901760
    %2083 = vmatpush1.msra.mxu0 %v2082
    %2084 = vmatprep.subr.mxu0 0.0
    %v2085 = vand.u32 %v64, 4294901760
    %2086 = vmatpush1.msra.mxu0 %v2085
    %2087 = vmatprep.subr.mxu0 0.0
    %v2088 = vand.u32 %v65, 4294901760
    %2089 = vmatpush1.msra.mxu0 %v2088
    %2090 = vmatprep.subr.mxu0 0.0
    %v2091 = vand.u32 %v66, 4294901760
    %2092 = vmatpush1.msra.mxu0 %v2091
    %2093 = vmatprep.subr.mxu0 0.0
    %v2094 = vand.u32 %v67, 4294901760
    %2095 = vmatpush1.msra.mxu0 %v2094
    %2096 = vmatprep.subr.mxu0 0.0
    %v2097 = vand.u32 %v68, 4294901760
    %2098 = vmatpush1.msra.mxu0 %v2097
    %2099 = vmatprep.subr.mxu0 0.0
    %v2100 = vand.u32 %v69, 4294901760
    %2101 = vmatpush1.msra.mxu0 %v2100
    %2102 = vmatprep.subr.mxu0 0.0
    %v2103 = vand.u32 %v70, 4294901760
    %2104 = vmatpush1.msra.mxu0 %v2103
    %2105 = vmatprep.subr.mxu0 0.0
    %v2106 = vand.u32 %v71, 4294901760
    %2107 = vmatpush1.msra.mxu0 %v2106
    %2108 = vmatprep.subr.mxu0 0.0
    %v2109 = vand.u32 %v72, 4294901760
    %2110 = vmatpush1.msra.mxu0 %v2109
    %2111 = vmatprep.subr.mxu0 0.0
    %v2112 = vand.u32 %v73, 4294901760
    %2113 = vmatpush1.msra.mxu0 %v2112
    %2114 = vmatprep.subr.mxu0 0.0
    %v2115 = vand.u32 %v74, 4294901760
    %2116 = vmatpush1.msra.mxu0 %v2115
    %2117 = vmatprep.subr.mxu0 0.0
    %v2118 = vand.u32 %v75, 4294901760
    %2119 = vmatpush1.msra.mxu0 %v2118
    %2120 = vmatprep.subr.mxu0 0.0
    %2121 = vmatpush1.msra.mxu0 0.0
    %2122 = vmatprep.subr.mxu0 0.0
    %2123 = vmatpush1.msra.mxu0 0.0
    %2124 = vmatprep.subr.mxu0 0.0
    %2125 = vmatpush1.msra.mxu0 0.0
    %2126 = vmatprep.subr.mxu0 0.0
    %2127 = vmatpush1.msra.mxu0 0.0
    %2128 = vmatprep.subr.mxu0 0.0
    %2129 = vmatpush1.msra.mxu0 0.0
    %2130 = vmatprep.subr.mxu0 0.0
    %2131 = vmatpush1.msra.mxu0 0.0
    %2132 = vmatprep.subr.mxu0 0.0
    %2133 = vmatpush1.msra.mxu0 0.0
    %2134 = vmatprep.subr.mxu0 0.0
    %2135 = vmatpush1.msra.mxu0 0.0
    %2136 = vmatprep.subr.mxu0 0.0
    %2137 = vmatpush1.msra.mxu0 0.0
    %2138 = vmatprep.subr.mxu0 0.0
    %2139 = vmatpush1.msra.mxu0 0.0
    %2140 = vmatprep.subr.mxu0 0.0
    %2141 = vmatpush1.msra.mxu0 0.0
    %2142 = vmatprep.subr.mxu0 0.0
    %2143 = vmatpush1.msra.mxu0 0.0
    %2144 = vmatprep.subr.mxu0 0.0
    %2145 = vmatpush1.msra.mxu0 0.0
    %2146 = vmatprep.subr.mxu0 0.0
    %2147 = vmatpush1.msra.mxu0 0.0
    %2148 = vmatprep.subr.mxu0 0.0
    %2149 = vmatpush1.msra.mxu0 0.0
    %2150 = vmatprep.subr.mxu0 0.0
    %2151 = vmatpush1.msra.mxu0 0.0
    %2152 = vmatprep.mubr.f32.mxu0 0.0
    %v2153 = vand.u32 %v1479, 4294901760
    %2154 = vmatmul.mubr.f32.gmra.mrb[0].mxu0 %v2153
    %v2155 = vpop.f32.mrb[0].mxu0
    %v2156 = vadd.f32 %v2063, %v2155
    %v2157 = vpop.f32.mrb[0].mxu0
    %2158 = vmatprep.mubr.f32.mxu0 0.0
    %v2159 = vand.u32 %v1480, 4294901760
    %2160 = vmatmul.mubr.f32.gmra.mrb[0].mxu0 %v2159
    %v2161 = vpop.f32.mrb[0].mxu0
    %v2162 = vadd.f32 %v2069, %v2161
    %v2163 = vpop.f32.mrb[0].mxu0
    %2164 = vdwg.mxu0
    %v2165 = vadd.f32 %v793, %v2156
    %v2166 = vadd.f32 %v794, %v2162
    %v2167 = vld [vmem:[%s1] sm:$0x3]
    %vm2168 = vcmask 58368
    %v2169 = vsel %vm2168, %v2167, 0.0
    %2170 = vadd.xlane.f32.xlu0 %v2169
    %v2171 = vpop.xlane.xlu0 %2170
    %v2172 = vmax.f32 %v2171, 1e-09
    %v2173 = vrcp.pop %v2172
    %v2174 = vmul.f32 %v2167, %v2173
    %v2175 = vlaneseq
    %v2176 = vshrl.u32 %v2175, 7
    %v2177 = vmul.u32 %v2176, 8
    %vm2178 = vcmp.ge.s32.totalorder %v96, %v2177
    %v2179 = vadd.s32 %v2177, 8
    %vm2180 = vcmp.lt.s32.totalorder %v96, %v2179
    %vm2181 = vmand %vm2178, %vm2180
    %2183 = vrot.lane.b32.xlu0 %v2174, 8
    %v2184 = vpop.permute.xlu0 %2183
    %vm2186 = vcmask 64512
    %v2187 = vsel %vm2186, %v2174, %v2184
    %v2188 = vsel %vm2181, %v2187, 0.0
    %vm2189 = vcmask 130048
    %v2191 = vsel %vm2189, %v2188, 0
    %2193 = vmatprep.subr.mxu0 0.0
    %v2194 = vand.u32 %v2165, 4294901760
    %2195 = vmatpush1.msra.mxu0 %v2194
    %2196 = vmatprep.subr.mxu0 0.0
    %v2197 = vand.u32 %v2166, 4294901760
    %2198 = vmatpush1.msra.mxu0 %v2197
    %2199 = vmatprep.subr.mxu0 0.0
    %2200 = vmatpush1.msra.mxu0 0.0
    %2201 = vmatprep.subr.mxu0 0.0
    %2202 = vmatpush1.msra.mxu0 0.0
    %2203 = vmatprep.subr.mxu0 0.0
    %2204 = vmatpush1.msra.mxu0 0.0
    %2205 = vmatprep.subr.mxu0 0.0
    %2206 = vmatpush1.msra.mxu0 0.0
    %2207 = vmatprep.subr.mxu0 0.0
    %2208 = vmatpush1.msra.mxu0 0.0
    %2209 = vmatprep.subr.mxu0 0.0
    %2210 = vmatpush1.msra.mxu0 0.0
    %2211 = vmatprep.subr.mxu0 0.0
    %2212 = vmatpush1.msra.mxu0 0.0
    %2213 = vmatprep.subr.mxu0 0.0
    %2214 = vmatpush1.msra.mxu0 0.0
    %2215 = vmatprep.subr.mxu0 0.0
    %2216 = vmatpush1.msra.mxu0 0.0
    %2217 = vmatprep.subr.mxu0 0.0
    %2218 = vmatpush1.msra.mxu0 0.0
    %2219 = vmatprep.subr.mxu0 0.0
    %2220 = vmatpush1.msra.mxu0 0.0
    %2221 = vmatprep.subr.mxu0 0.0
    %2222 = vmatpush1.msra.mxu0 0.0
    %2223 = vmatprep.subr.mxu0 0.0
    %2224 = vmatpush1.msra.mxu0 0.0
    %2225 = vmatprep.subr.mxu0 0.0
    %2226 = vmatpush1.msra.mxu0 0.0
    %2227 = vmatprep.subr.mxu0 0.0
    %2228 = vmatpush1.msra.mxu0 0.0
    %2229 = vmatprep.subr.mxu0 0.0
    %2230 = vmatpush1.msra.mxu0 0.0
    %2231 = vmatprep.subr.mxu0 0.0
    %2232 = vmatpush1.msra.mxu0 0.0
    %2233 = vmatprep.subr.mxu0 0.0
    %2234 = vmatpush1.msra.mxu0 0.0
    %2235 = vmatprep.subr.mxu0 0.0
    %2236 = vmatpush1.msra.mxu0 0.0
    %2237 = vmatprep.subr.mxu0 0.0
    %2238 = vmatpush1.msra.mxu0 0.0
    %2239 = vmatprep.subr.mxu0 0.0
    %2240 = vmatpush1.msra.mxu0 0.0
    %2241 = vmatprep.subr.mxu0 0.0
    %2242 = vmatpush1.msra.mxu0 0.0
    %2243 = vmatprep.subr.mxu0 0.0
    %2244 = vmatpush1.msra.mxu0 0.0
    %2245 = vmatprep.subr.mxu0 0.0
    %2246 = vmatpush1.msra.mxu0 0.0
    %2247 = vmatprep.subr.mxu0 0.0
    %2248 = vmatpush1.msra.mxu0 0.0
    %2249 = vmatprep.subr.mxu0 0.0
    %2250 = vmatpush1.msra.mxu0 0.0
    %2251 = vmatprep.subr.mxu0 0.0
    %2252 = vmatpush1.msra.mxu0 0.0
    %2253 = vmatprep.subr.mxu0 0.0
    %2254 = vmatpush1.msra.mxu0 0.0
    %2255 = vmatprep.subr.mxu0 0.0
    %2256 = vmatpush1.msra.mxu0 0.0
    %2257 = vmatprep.subr.mxu0 0.0
    %2258 = vmatpush1.msra.mxu0 0.0
    %2259 = vmatprep.mubr.f32.mxu0 0.0
    %v2260 = vand.u32 %v2191, 4294901760
    %v2261 = vsub.f32 %v2191, %v2260
    %v2262 = vand.u32 %v2261, 4294901760
    %v2263 = vsub.f32 %v2261, %v2262
    %v2264 = vand.u32 %v2263, 4294901760
    %2265 = vmatmul.mubr.f32.gmra.mrb[0].mxu0 %v2264
    %v2266 = vpop.f32.mrb[0].mxu0
    %v2267 = vadd.f32 0.0, %v2266
    %v2268 = vpop.f32.mrb[0].mxu0
    %2269 = vdwg.mxu0
    %2270 = vmatprep.subr.mxu0 0.0
    %v2271 = vand.u32 %v2165, 4294901760
    %v2272 = vsub.f32 %v2165, %v2271
    %v2273 = vand.u32 %v2272, 4294901760
    %v2274 = vsub.f32 %v2272, %v2273
    %v2275 = vand.u32 %v2274, 4294901760
    %2276 = vmatpush1.msra.mxu0 %v2275
    %2277 = vmatprep.subr.mxu0 0.0
    %v2278 = vand.u32 %v2166, 4294901760
    %v2279 = vsub.f32 %v2166, %v2278
    %v2280 = vand.u32 %v2279, 4294901760
    %v2281 = vsub.f32 %v2279, %v2280
    %v2282 = vand.u32 %v2281, 4294901760
    %2283 = vmatpush1.msra.mxu0 %v2282
    %2284 = vmatprep.subr.mxu0 0.0
    %2285 = vmatpush1.msra.mxu0 0.0
    %2286 = vmatprep.subr.mxu0 0.0
    %2287 = vmatpush1.msra.mxu0 0.0
    %2288 = vmatprep.subr.mxu0 0.0
    %2289 = vmatpush1.msra.mxu0 0.0
    %2290 = vmatprep.subr.mxu0 0.0
    %2291 = vmatpush1.msra.mxu0 0.0
    %2292 = vmatprep.subr.mxu0 0.0
    %2293 = vmatpush1.msra.mxu0 0.0
    %2294 = vmatprep.subr.mxu0 0.0
    %2295 = vmatpush1.msra.mxu0 0.0
    %2296 = vmatprep.subr.mxu0 0.0
    %2297 = vmatpush1.msra.mxu0 0.0
    %2298 = vmatprep.subr.mxu0 0.0
    %2299 = vmatpush1.msra.mxu0 0.0
    %2300 = vmatprep.subr.mxu0 0.0
    %2301 = vmatpush1.msra.mxu0 0.0
    %2302 = vmatprep.subr.mxu0 0.0
    %2303 = vmatpush1.msra.mxu0 0.0
    %2304 = vmatprep.subr.mxu0 0.0
    %2305 = vmatpush1.msra.mxu0 0.0
    %2306 = vmatprep.subr.mxu0 0.0
    %2307 = vmatpush1.msra.mxu0 0.0
    %2308 = vmatprep.subr.mxu0 0.0
    %2309 = vmatpush1.msra.mxu0 0.0
    %2310 = vmatprep.subr.mxu0 0.0
    %2311 = vmatpush1.msra.mxu0 0.0
    %2312 = vmatprep.subr.mxu0 0.0
    %2313 = vmatpush1.msra.mxu0 0.0
    %2314 = vmatprep.subr.mxu0 0.0
    %2315 = vmatpush1.msra.mxu0 0.0
    %2316 = vmatprep.subr.mxu0 0.0
    %2317 = vmatpush1.msra.mxu0 0.0
    %2318 = vmatprep.subr.mxu0 0.0
    %2319 = vmatpush1.msra.mxu0 0.0
    %2320 = vmatprep.subr.mxu0 0.0
    %2321 = vmatpush1.msra.mxu0 0.0
    %2322 = vmatprep.subr.mxu0 0.0
    %2323 = vmatpush1.msra.mxu0 0.0
    %2324 = vmatprep.subr.mxu0 0.0
    %2325 = vmatpush1.msra.mxu0 0.0
    %2326 = vmatprep.subr.mxu0 0.0
    %2327 = vmatpush1.msra.mxu0 0.0
    %2328 = vmatprep.subr.mxu0 0.0
    %2329 = vmatpush1.msra.mxu0 0.0
    %2330 = vmatprep.subr.mxu0 0.0
    %2331 = vmatpush1.msra.mxu0 0.0
    %2332 = vmatprep.subr.mxu0 0.0
    %2333 = vmatpush1.msra.mxu0 0.0
    %2334 = vmatprep.subr.mxu0 0.0
    %2335 = vmatpush1.msra.mxu0 0.0
    %2336 = vmatprep.subr.mxu0 0.0
    %2337 = vmatpush1.msra.mxu0 0.0
    %2338 = vmatprep.subr.mxu0 0.0
    %2339 = vmatpush1.msra.mxu0 0.0
    %2340 = vmatprep.subr.mxu0 0.0
    %2341 = vmatpush1.msra.mxu0 0.0
    %2342 = vmatprep.subr.mxu0 0.0
    %2343 = vmatpush1.msra.mxu0 0.0
    %2344 = vmatprep.mubr.f32.mxu0 0.0
    %v2345 = vand.u32 %v2191, 4294901760
    %2346 = vmatmul.mubr.f32.gmra.mrb[0].mxu0 %v2345
    %v2347 = vpop.f32.mrb[0].mxu0
    %v2348 = vadd.f32 %v2267, %v2347
    %v2349 = vpop.f32.mrb[0].mxu0
    %2350 = vdwg.mxu0
    %2351 = vmatprep.subr.mxu0 0.0
    %v2352 = vand.u32 %v2165, 4294901760
    %v2353 = vsub.f32 %v2165, %v2352
    %2354 = vmatpush1.msra.mxu0 %v2353
    %2355 = vmatprep.subr.mxu0 0.0
    %v2356 = vand.u32 %v2166, 4294901760
    %v2357 = vsub.f32 %v2166, %v2356
    %2358 = vmatpush1.msra.mxu0 %v2357
    %2359 = vmatprep.subr.mxu0 0.0
    %2360 = vmatpush1.msra.mxu0 0.0
    %2361 = vmatprep.subr.mxu0 0.0
    %2362 = vmatpush1.msra.mxu0 0.0
    %2363 = vmatprep.subr.mxu0 0.0
    %2364 = vmatpush1.msra.mxu0 0.0
    %2365 = vmatprep.subr.mxu0 0.0
    %2366 = vmatpush1.msra.mxu0 0.0
    %2367 = vmatprep.subr.mxu0 0.0
    %2368 = vmatpush1.msra.mxu0 0.0
    %2369 = vmatprep.subr.mxu0 0.0
    %2370 = vmatpush1.msra.mxu0 0.0
    %2371 = vmatprep.subr.mxu0 0.0
    %2372 = vmatpush1.msra.mxu0 0.0
    %2373 = vmatprep.subr.mxu0 0.0
    %2374 = vmatpush1.msra.mxu0 0.0
    %2375 = vmatprep.subr.mxu0 0.0
    %2376 = vmatpush1.msra.mxu0 0.0
    %2377 = vmatprep.subr.mxu0 0.0
    %2378 = vmatpush1.msra.mxu0 0.0
    %2379 = vmatprep.subr.mxu0 0.0
    %2380 = vmatpush1.msra.mxu0 0.0
    %2381 = vmatprep.subr.mxu0 0.0
    %2382 = vmatpush1.msra.mxu0 0.0
    %2383 = vmatprep.subr.mxu0 0.0
    %2384 = vmatpush1.msra.mxu0 0.0
    %2385 = vmatprep.subr.mxu0 0.0
    %2386 = vmatpush1.msra.mxu0 0.0
    %2387 = vmatprep.subr.mxu0 0.0
    %2388 = vmatpush1.msra.mxu0 0.0
    %2389 = vmatprep.subr.mxu0 0.0
    %2390 = vmatpush1.msra.mxu0 0.0
    %2391 = vmatprep.subr.mxu0 0.0
    %2392 = vmatpush1.msra.mxu0 0.0
    %2393 = vmatprep.subr.mxu0 0.0
    %2394 = vmatpush1.msra.mxu0 0.0
    %2395 = vmatprep.subr.mxu0 0.0
    %2396 = vmatpush1.msra.mxu0 0.0
    %2397 = vmatprep.subr.mxu0 0.0
    %2398 = vmatpush1.msra.mxu0 0.0
    %2399 = vmatprep.subr.mxu0 0.0
    %2400 = vmatpush1.msra.mxu0 0.0
    %2401 = vmatprep.subr.mxu0 0.0
    %2402 = vmatpush1.msra.mxu0 0.0
    %2403 = vmatprep.subr.mxu0 0.0
    %2404 = vmatpush1.msra.mxu0 0.0
    %2405 = vmatprep.subr.mxu0 0.0
    %2406 = vmatpush1.msra.mxu0 0.0
    %2407 = vmatprep.subr.mxu0 0.0
    %2408 = vmatpush1.msra.mxu0 0.0
    %2409 = vmatprep.subr.mxu0 0.0
    %2410 = vmatpush1.msra.mxu0 0.0
    %2411 = vmatprep.subr.mxu0 0.0
    %2412 = vmatpush1.msra.mxu0 0.0
    %2413 = vmatprep.subr.mxu0 0.0
    %2414 = vmatpush1.msra.mxu0 0.0
    %2415 = vmatprep.subr.mxu0 0.0
    %2416 = vmatpush1.msra.mxu0 0.0
    %2417 = vmatprep.subr.mxu0 0.0
    %2418 = vmatpush1.msra.mxu0 0.0
    %2419 = vmatprep.mubr.f32.mxu0 0.0
    %v2420 = vand.u32 %v2191, 4294901760
    %v2421 = vsub.f32 %v2191, %v2420
    %2422 = vmatmul.mubr.f32.gmra.mrb[0].mxu0 %v2421
    %v2423 = vpop.f32.mrb[0].mxu0
    %v2424 = vadd.f32 %v2348, %v2423
    %v2425 = vpop.f32.mrb[0].mxu0
    %2426 = vdwg.mxu0
    %2427 = vmatprep.subr.mxu0 0.0
    %v2428 = vand.u32 %v2165, 4294901760
    %2429 = vmatpush1.msra.mxu0 %v2428
    %2430 = vmatprep.subr.mxu0 0.0
    %v2431 = vand.u32 %v2166, 4294901760
    %2432 = vmatpush1.msra.mxu0 %v2431
    %2433 = vmatprep.subr.mxu0 0.0
    %2434 = vmatpush1.msra.mxu0 0.0
    %2435 = vmatprep.subr.mxu0 0.0
    %2436 = vmatpush1.msra.mxu0 0.0
    %2437 = vmatprep.subr.mxu0 0.0
    %2438 = vmatpush1.msra.mxu0 0.0
    %2439 = vmatprep.subr.mxu0 0.0
    %2440 = vmatpush1.msra.mxu0 0.0
    %2441 = vmatprep.subr.mxu0 0.0
    %2442 = vmatpush1.msra.mxu0 0.0
    %2443 = vmatprep.subr.mxu0 0.0
    %2444 = vmatpush1.msra.mxu0 0.0
    %2445 = vmatprep.subr.mxu0 0.0
    %2446 = vmatpush1.msra.mxu0 0.0
    %2447 = vmatprep.subr.mxu0 0.0
    %2448 = vmatpush1.msra.mxu0 0.0
    %2449 = vmatprep.subr.mxu0 0.0
    %2450 = vmatpush1.msra.mxu0 0.0
    %2451 = vmatprep.subr.mxu0 0.0
    %2452 = vmatpush1.msra.mxu0 0.0
    %2453 = vmatprep.subr.mxu0 0.0
    %2454 = vmatpush1.msra.mxu0 0.0
    %2455 = vmatprep.subr.mxu0 0.0
    %2456 = vmatpush1.msra.mxu0 0.0
    %2457 = vmatprep.subr.mxu0 0.0
    %2458 = vmatpush1.msra.mxu0 0.0
    %2459 = vmatprep.subr.mxu0 0.0
    %2460 = vmatpush1.msra.mxu0 0.0
    %2461 = vmatprep.subr.mxu0 0.0
    %2462 = vmatpush1.msra.mxu0 0.0
    %2463 = vmatprep.subr.mxu0 0.0
    %2464 = vmatpush1.msra.mxu0 0.0
    %2465 = vmatprep.subr.mxu0 0.0
    %2466 = vmatpush1.msra.mxu0 0.0
    %2467 = vmatprep.subr.mxu0 0.0
    %2468 = vmatpush1.msra.mxu0 0.0
    %2469 = vmatprep.subr.mxu0 0.0
    %2470 = vmatpush1.msra.mxu0 0.0
    %2471 = vmatprep.subr.mxu0 0.0
    %2472 = vmatpush1.msra.mxu0 0.0
    %2473 = vmatprep.subr.mxu0 0.0
    %2474 = vmatpush1.msra.mxu0 0.0
    %2475 = vmatprep.subr.mxu0 0.0
    %2476 = vmatpush1.msra.mxu0 0.0
    %2477 = vmatprep.subr.mxu0 0.0
    %2478 = vmatpush1.msra.mxu0 0.0
    %2479 = vmatprep.subr.mxu0 0.0
    %2480 = vmatpush1.msra.mxu0 0.0
    %2481 = vmatprep.subr.mxu0 0.0
    %2482 = vmatpush1.msra.mxu0 0.0
    %2483 = vmatprep.subr.mxu0 0.0
    %2484 = vmatpush1.msra.mxu0 0.0
    %2485 = vmatprep.subr.mxu0 0.0
    %2486 = vmatpush1.msra.mxu0 0.0
    %2487 = vmatprep.subr.mxu0 0.0
    %2488 = vmatpush1.msra.mxu0 0.0
    %2489 = vmatprep.subr.mxu0 0.0
    %2490 = vmatpush1.msra.mxu0 0.0
    %2491 = vmatprep.subr.mxu0 0.0
    %2492 = vmatpush1.msra.mxu0 0.0
    %2493 = vmatprep.mubr.f32.mxu0 0.0
    %v2494 = vand.u32 %v2191, 4294901760
    %v2495 = vsub.f32 %v2191, %v2494
    %v2496 = vand.u32 %v2495, 4294901760
    %2497 = vmatmul.mubr.f32.gmra.mrb[0].mxu0 %v2496
    %v2498 = vpop.f32.mrb[0].mxu0
    %v2499 = vadd.f32 %v2424, %v2498
    %v2500 = vpop.f32.mrb[0].mxu0
    %2501 = vdwg.mxu0
    %2502 = vmatprep.subr.mxu0 0.0
    %v2503 = vand.u32 %v2165, 4294901760
    %v2504 = vsub.f32 %v2165, %v2503
    %v2505 = vand.u32 %v2504, 4294901760
    %2506 = vmatpush1.msra.mxu0 %v2505
    %2507 = vmatprep.subr.mxu0 0.0
    %v2508 = vand.u32 %v2166, 4294901760
    %v2509 = vsub.f32 %v2166, %v2508
    %v2510 = vand.u32 %v2509, 4294901760
    %2511 = vmatpush1.msra.mxu0 %v2510
    %2512 = vmatprep.subr.mxu0 0.0
    %2513 = vmatpush1.msra.mxu0 0.0
    %2514 = vmatprep.subr.mxu0 0.0
    %2515 = vmatpush1.msra.mxu0 0.0
    %2516 = vmatprep.subr.mxu0 0.0
    %2517 = vmatpush1.msra.mxu0 0.0
    %2518 = vmatprep.subr.mxu0 0.0
    %2519 = vmatpush1.msra.mxu0 0.0
    %2520 = vmatprep.subr.mxu0 0.0
    %2521 = vmatpush1.msra.mxu0 0.0
    %2522 = vmatprep.subr.mxu0 0.0
    %2523 = vmatpush1.msra.mxu0 0.0
    %2524 = vmatprep.subr.mxu0 0.0
    %2525 = vmatpush1.msra.mxu0 0.0
    %2526 = vmatprep.subr.mxu0 0.0
    %2527 = vmatpush1.msra.mxu0 0.0
    %2528 = vmatprep.subr.mxu0 0.0
    %2529 = vmatpush1.msra.mxu0 0.0
    %2530 = vmatprep.subr.mxu0 0.0
    %2531 = vmatpush1.msra.mxu0 0.0
    %2532 = vmatprep.subr.mxu0 0.0
    %2533 = vmatpush1.msra.mxu0 0.0
    %2534 = vmatprep.subr.mxu0 0.0
    %2535 = vmatpush1.msra.mxu0 0.0
    %2536 = vmatprep.subr.mxu0 0.0
    %2537 = vmatpush1.msra.mxu0 0.0
    %2538 = vmatprep.subr.mxu0 0.0
    %2539 = vmatpush1.msra.mxu0 0.0
    %2540 = vmatprep.subr.mxu0 0.0
    %2541 = vmatpush1.msra.mxu0 0.0
    %2542 = vmatprep.subr.mxu0 0.0
    %2543 = vmatpush1.msra.mxu0 0.0
    %2544 = vmatprep.subr.mxu0 0.0
    %2545 = vmatpush1.msra.mxu0 0.0
    %2546 = vmatprep.subr.mxu0 0.0
    %2547 = vmatpush1.msra.mxu0 0.0
    %2548 = vmatprep.subr.mxu0 0.0
    %2549 = vmatpush1.msra.mxu0 0.0
    %2550 = vmatprep.subr.mxu0 0.0
    %2551 = vmatpush1.msra.mxu0 0.0
    %2552 = vmatprep.subr.mxu0 0.0
    %2553 = vmatpush1.msra.mxu0 0.0
    %2554 = vmatprep.subr.mxu0 0.0
    %2555 = vmatpush1.msra.mxu0 0.0
    %2556 = vmatprep.subr.mxu0 0.0
    %2557 = vmatpush1.msra.mxu0 0.0
    %2558 = vmatprep.subr.mxu0 0.0
    %2559 = vmatpush1.msra.mxu0 0.0
    %2560 = vmatprep.subr.mxu0 0.0
    %2561 = vmatpush1.msra.mxu0 0.0
    %2562 = vmatprep.subr.mxu0 0.0
    %2563 = vmatpush1.msra.mxu0 0.0
    %2564 = vmatprep.subr.mxu0 0.0
    %2565 = vmatpush1.msra.mxu0 0.0
    %2566 = vmatprep.subr.mxu0 0.0
    %2567 = vmatpush1.msra.mxu0 0.0
    %2568 = vmatprep.subr.mxu0 0.0
    %2569 = vmatpush1.msra.mxu0 0.0
    %2570 = vmatprep.subr.mxu0 0.0
    %2571 = vmatpush1.msra.mxu0 0.0
    %2572 = vmatprep.mubr.f32.mxu0 0.0
    %v2573 = vand.u32 %v2191, 4294901760
    %2574 = vmatmul.mubr.f32.gmra.mrb[0].mxu0 %v2573
    %v2575 = vpop.f32.mrb[0].mxu0
    %v2576 = vadd.f32 %v2499, %v2575
    %v2577 = vpop.f32.mrb[0].mxu0
    %2578 = vdwg.mxu0
    %2579 = vmatprep.subr.mxu0 0.0
    %v2580 = vand.u32 %v2165, 4294901760
    %2581 = vmatpush1.msra.mxu0 %v2580
    %2582 = vmatprep.subr.mxu0 0.0
    %v2583 = vand.u32 %v2166, 4294901760
    %2584 = vmatpush1.msra.mxu0 %v2583
    %2585 = vmatprep.subr.mxu0 0.0
    %2586 = vmatpush1.msra.mxu0 0.0
    %2587 = vmatprep.subr.mxu0 0.0
    %2588 = vmatpush1.msra.mxu0 0.0
    %2589 = vmatprep.subr.mxu0 0.0
    %2590 = vmatpush1.msra.mxu0 0.0
    %2591 = vmatprep.subr.mxu0 0.0
    %2592 = vmatpush1.msra.mxu0 0.0
    %2593 = vmatprep.subr.mxu0 0.0
    %2594 = vmatpush1.msra.mxu0 0.0
    %2595 = vmatprep.subr.mxu0 0.0
    %2596 = vmatpush1.msra.mxu0 0.0
    %2597 = vmatprep.subr.mxu0 0.0
    %2598 = vmatpush1.msra.mxu0 0.0
    %2599 = vmatprep.subr.mxu0 0.0
    %2600 = vmatpush1.msra.mxu0 0.0
    %2601 = vmatprep.subr.mxu0 0.0
    %2602 = vmatpush1.msra.mxu0 0.0
    %2603 = vmatprep.subr.mxu0 0.0
    %2604 = vmatpush1.msra.mxu0 0.0
    %2605 = vmatprep.subr.mxu0 0.0
    %2606 = vmatpush1.msra.mxu0 0.0
    %2607 = vmatprep.subr.mxu0 0.0
    %2608 = vmatpush1.msra.mxu0 0.0
    %2609 = vmatprep.subr.mxu0 0.0
    %2610 = vmatpush1.msra.mxu0 0.0
    %2611 = vmatprep.subr.mxu0 0.0
    %2612 = vmatpush1.msra.mxu0 0.0
    %2613 = vmatprep.subr.mxu0 0.0
    %2614 = vmatpush1.msra.mxu0 0.0
    %2615 = vmatprep.subr.mxu0 0.0
    %2616 = vmatpush1.msra.mxu0 0.0
    %2617 = vmatprep.subr.mxu0 0.0
    %2618 = vmatpush1.msra.mxu0 0.0
    %2619 = vmatprep.subr.mxu0 0.0
    %2620 = vmatpush1.msra.mxu0 0.0
    %2621 = vmatprep.subr.mxu0 0.0
    %2622 = vmatpush1.msra.mxu0 0.0
    %2623 = vmatprep.subr.mxu0 0.0
    %2624 = vmatpush1.msra.mxu0 0.0
    %2625 = vmatprep.subr.mxu0 0.0
    %2626 = vmatpush1.msra.mxu0 0.0
    %2627 = vmatprep.subr.mxu0 0.0
    %2628 = vmatpush1.msra.mxu0 0.0
    %2629 = vmatprep.subr.mxu0 0.0
    %2630 = vmatpush1.msra.mxu0 0.0
    %2631 = vmatprep.subr.mxu0 0.0
    %2632 = vmatpush1.msra.mxu0 0.0
    %2633 = vmatprep.subr.mxu0 0.0
    %2634 = vmatpush1.msra.mxu0 0.0
    %2635 = vmatprep.subr.mxu0 0.0
    %2636 = vmatpush1.msra.mxu0 0.0
    %2637 = vmatprep.subr.mxu0 0.0
    %2638 = vmatpush1.msra.mxu0 0.0
    %2639 = vmatprep.subr.mxu0 0.0
    %2640 = vmatpush1.msra.mxu0 0.0
    %2641 = vmatprep.subr.mxu0 0.0
    %2642 = vmatpush1.msra.mxu0 0.0
    %2643 = vmatprep.subr.mxu0 0.0
    %2644 = vmatpush1.msra.mxu0 0.0
    %2645 = vmatprep.mubr.f32.mxu0 0.0
    %v2646 = vand.u32 %v2191, 4294901760
    %2647 = vmatmul.mubr.f32.gmra.mrb[0].mxu0 %v2646
    %v2648 = vpop.f32.mrb[0].mxu0
    %v2649 = vadd.f32 %v2576, %v2648
    %v2650 = vpop.f32.mrb[0].mxu0
    %2651 = vdwg.mxu0
    %v2652 = vlaneseq
    %v2653 = vshrl.u32 %v2652, 7
    %v2654 = vsub.s32 0, %v2653
    %v2655 = vrot.slane %v92, %v2654
    %2656 = vmatprep.subr.mxu0 0.0
    %v2657 = vand.u32 %v76, 4294901760
    %2658 = vmatpush1.msra.mxu0 %v2657
    %2659 = vmatprep.subr.mxu0 0.0
    %v2660 = vand.u32 %v77, 4294901760
    %2661 = vmatpush1.msra.mxu0 %v2660
    %2662 = vmatprep.subr.mxu0 0.0
    %v2663 = vand.u32 %v78, 4294901760
    %2664 = vmatpush1.msra.mxu0 %v2663
    %2665 = vmatprep.subr.mxu0 0.0
    %v2666 = vand.u32 %v79, 4294901760
    %2667 = vmatpush1.msra.mxu0 %v2666
    %2668 = vmatprep.subr.mxu0 0.0
    %v2669 = vand.u32 %v80, 4294901760
    %2670 = vmatpush1.msra.mxu0 %v2669
    %2671 = vmatprep.subr.mxu0 0.0
    %v2672 = vand.u32 %v81, 4294901760
    %2673 = vmatpush1.msra.mxu0 %v2672
    %2674 = vmatprep.subr.mxu0 0.0
    %v2675 = vand.u32 %v82, 4294901760
    %2676 = vmatpush1.msra.mxu0 %v2675
    %2677 = vmatprep.subr.mxu0 0.0
    %v2678 = vand.u32 %v83, 4294901760
    %2679 = vmatpush1.msra.mxu0 %v2678
    %2680 = vmatprep.subr.mxu0 0.0
    %v2681 = vand.u32 %v84, 4294901760
    %2682 = vmatpush1.msra.mxu0 %v2681
    %2683 = vmatprep.subr.mxu0 0.0
    %v2684 = vand.u32 %v85, 4294901760
    %2685 = vmatpush1.msra.mxu0 %v2684
    %2686 = vmatprep.subr.mxu0 0.0
    %v2687 = vand.u32 %v86, 4294901760
    %2688 = vmatpush1.msra.mxu0 %v2687
    %2689 = vmatprep.subr.mxu0 0.0
    %v2690 = vand.u32 %v87, 4294901760
    %2691 = vmatpush1.msra.mxu0 %v2690
    %2692 = vmatprep.subr.mxu0 0.0
    %v2693 = vand.u32 %v88, 4294901760
    %2694 = vmatpush1.msra.mxu0 %v2693
    %2695 = vmatprep.subr.mxu0 0.0
    %v2696 = vand.u32 %v89, 4294901760
    %2697 = vmatpush1.msra.mxu0 %v2696
    %2698 = vmatprep.subr.mxu0 0.0
    %v2699 = vand.u32 %v90, 4294901760
    %2700 = vmatpush1.msra.mxu0 %v2699
    %2701 = vmatprep.subr.mxu0 0.0
    %v2702 = vand.u32 %v91, 4294901760
    %2703 = vmatpush1.msra.mxu0 %v2702
    %2704 = vmatprep.subr.mxu0 0.0
    %2705 = vmatpush1.msra.mxu0 0.0
    %2706 = vmatprep.subr.mxu0 0.0
    %2707 = vmatpush1.msra.mxu0 0.0
    %2708 = vmatprep.subr.mxu0 0.0
    %2709 = vmatpush1.msra.mxu0 0.0
    %2710 = vmatprep.subr.mxu0 0.0
    %2711 = vmatpush1.msra.mxu0 0.0
    %2712 = vmatprep.subr.mxu0 0.0
    %2713 = vmatpush1.msra.mxu0 0.0
    %2714 = vmatprep.subr.mxu0 0.0
    %2715 = vmatpush1.msra.mxu0 0.0
    %2716 = vmatprep.subr.mxu0 0.0
    %2717 = vmatpush1.msra.mxu0 0.0
    %2718 = vmatprep.subr.mxu0 0.0
    %2719 = vmatpush1.msra.mxu0 0.0
    %2720 = vmatprep.subr.mxu0 0.0
    %2721 = vmatpush1.msra.mxu0 0.0
    %2722 = vmatprep.subr.mxu0 0.0
    %2723 = vmatpush1.msra.mxu0 0.0
    %2724 = vmatprep.subr.mxu0 0.0
    %2725 = vmatpush1.msra.mxu0 0.0
    %2726 = vmatprep.subr.mxu0 0.0
    %2727 = vmatpush1.msra.mxu0 0.0
    %2728 = vmatprep.subr.mxu0 0.0
    %2729 = vmatpush1.msra.mxu0 0.0
    %2730 = vmatprep.subr.mxu0 0.0
    %2731 = vmatpush1.msra.mxu0 0.0
    %2732 = vmatprep.subr.mxu0 0.0
    %2733 = vmatpush1.msra.mxu0 0.0
    %2734 = vmatprep.subr.mxu0 0.0
    %2735 = vmatpush1.msra.mxu0 0.0
    %2736 = vmatprep.mubr.f32.mxu0 0.0
    %v2737 = vand.u32 %v2649, 4294901760
    %v2738 = vsub.f32 %v2649, %v2737
    %v2739 = vand.u32 %v2738, 4294901760
    %v2740 = vsub.f32 %v2738, %v2739
    %v2741 = vand.u32 %v2740, 4294901760
    %2742 = vmatmul.mubr.f32.gmra.mrb[0].mxu0 %v2741
    %v2743 = vpop.f32.mrb[0].mxu0
    %v2744 = vadd.f32 %v2655, %v2743
    %v2745 = vpop.f32.mrb[0].mxu0
    %2746 = vdwg.mxu0
    %2747 = vmatprep.subr.mxu0 0.0
    %v2748 = vand.u32 %v76, 4294901760
    %v2749 = vsub.f32 %v76, %v2748
    %v2750 = vand.u32 %v2749, 4294901760
    %v2751 = vsub.f32 %v2749, %v2750
    %v2752 = vand.u32 %v2751, 4294901760
    %2753 = vmatpush1.msra.mxu0 %v2752
    %2754 = vmatprep.subr.mxu0 0.0
    %v2755 = vand.u32 %v77, 4294901760
    %v2756 = vsub.f32 %v77, %v2755
    %v2757 = vand.u32 %v2756, 4294901760
    %v2758 = vsub.f32 %v2756, %v2757
    %v2759 = vand.u32 %v2758, 4294901760
    %2760 = vmatpush1.msra.mxu0 %v2759
    %2761 = vmatprep.subr.mxu0 0.0
    %v2762 = vand.u32 %v78, 4294901760
    %v2763 = vsub.f32 %v78, %v2762
    %v2764 = vand.u32 %v2763, 4294901760
    %v2765 = vsub.f32 %v2763, %v2764
    %v2766 = vand.u32 %v2765, 4294901760
    %2767 = vmatpush1.msra.mxu0 %v2766
    %2768 = vmatprep.subr.mxu0 0.0
    %v2769 = vand.u32 %v79, 4294901760
    %v2770 = vsub.f32 %v79, %v2769
    %v2771 = vand.u32 %v2770, 4294901760
    %v2772 = vsub.f32 %v2770, %v2771
    %v2773 = vand.u32 %v2772, 4294901760
    %2774 = vmatpush1.msra.mxu0 %v2773
    %2775 = vmatprep.subr.mxu0 0.0
    %v2776 = vand.u32 %v80, 4294901760
    %v2777 = vsub.f32 %v80, %v2776
    %v2778 = vand.u32 %v2777, 4294901760
    %v2779 = vsub.f32 %v2777, %v2778
    %v2780 = vand.u32 %v2779, 4294901760
    %2781 = vmatpush1.msra.mxu0 %v2780
    %2782 = vmatprep.subr.mxu0 0.0
    %v2783 = vand.u32 %v81, 4294901760
    %v2784 = vsub.f32 %v81, %v2783
    %v2785 = vand.u32 %v2784, 4294901760
    %v2786 = vsub.f32 %v2784, %v2785
    %v2787 = vand.u32 %v2786, 4294901760
    %2788 = vmatpush1.msra.mxu0 %v2787
    %2789 = vmatprep.subr.mxu0 0.0
    %v2790 = vand.u32 %v82, 4294901760
    %v2791 = vsub.f32 %v82, %v2790
    %v2792 = vand.u32 %v2791, 4294901760
    %v2793 = vsub.f32 %v2791, %v2792
    %v2794 = vand.u32 %v2793, 4294901760
    %2795 = vmatpush1.msra.mxu0 %v2794
    %2796 = vmatprep.subr.mxu0 0.0
    %v2797 = vand.u32 %v83, 4294901760
    %v2798 = vsub.f32 %v83, %v2797
    %v2799 = vand.u32 %v2798, 4294901760
    %v2800 = vsub.f32 %v2798, %v2799
    %v2801 = vand.u32 %v2800, 4294901760
    %2802 = vmatpush1.msra.mxu0 %v2801
    %2803 = vmatprep.subr.mxu0 0.0
    %v2804 = vand.u32 %v84, 4294901760
    %v2805 = vsub.f32 %v84, %v2804
    %v2806 = vand.u32 %v2805, 4294901760
    %v2807 = vsub.f32 %v2805, %v2806
    %v2808 = vand.u32 %v2807, 4294901760
    %2809 = vmatpush1.msra.mxu0 %v2808
    %2810 = vmatprep.subr.mxu0 0.0
    %v2811 = vand.u32 %v85, 4294901760
    %v2812 = vsub.f32 %v85, %v2811
    %v2813 = vand.u32 %v2812, 4294901760
    %v2814 = vsub.f32 %v2812, %v2813
    %v2815 = vand.u32 %v2814, 4294901760
    %2816 = vmatpush1.msra.mxu0 %v2815
    %2817 = vmatprep.subr.mxu0 0.0
    %v2818 = vand.u32 %v86, 4294901760
    %v2819 = vsub.f32 %v86, %v2818
    %v2820 = vand.u32 %v2819, 4294901760
    %v2821 = vsub.f32 %v2819, %v2820
    %v2822 = vand.u32 %v2821, 4294901760
    %2823 = vmatpush1.msra.mxu0 %v2822
    %2824 = vmatprep.subr.mxu0 0.0
    %v2825 = vand.u32 %v87, 4294901760
    %v2826 = vsub.f32 %v87, %v2825
    %v2827 = vand.u32 %v2826, 4294901760
    %v2828 = vsub.f32 %v2826, %v2827
    %v2829 = vand.u32 %v2828, 4294901760
    %2830 = vmatpush1.msra.mxu0 %v2829
    %2831 = vmatprep.subr.mxu0 0.0
    %v2832 = vand.u32 %v88, 4294901760
    %v2833 = vsub.f32 %v88, %v2832
    %v2834 = vand.u32 %v2833, 4294901760
    %v2835 = vsub.f32 %v2833, %v2834
    %v2836 = vand.u32 %v2835, 4294901760
    %2837 = vmatpush1.msra.mxu0 %v2836
    %2838 = vmatprep.subr.mxu0 0.0
    %v2839 = vand.u32 %v89, 4294901760
    %v2840 = vsub.f32 %v89, %v2839
    %v2841 = vand.u32 %v2840, 4294901760
    %v2842 = vsub.f32 %v2840, %v2841
    %v2843 = vand.u32 %v2842, 4294901760
    %2844 = vmatpush1.msra.mxu0 %v2843
    %2845 = vmatprep.subr.mxu0 0.0
    %v2846 = vand.u32 %v90, 4294901760
    %v2847 = vsub.f32 %v90, %v2846
    %v2848 = vand.u32 %v2847, 4294901760
    %v2849 = vsub.f32 %v2847, %v2848
    %v2850 = vand.u32 %v2849, 4294901760
    %2851 = vmatpush1.msra.mxu0 %v2850
    %2852 = vmatprep.subr.mxu0 0.0
    %v2853 = vand.u32 %v91, 4294901760
    %v2854 = vsub.f32 %v91, %v2853
    %v2855 = vand.u32 %v2854, 4294901760
    %v2856 = vsub.f32 %v2854, %v2855
    %v2857 = vand.u32 %v2856, 4294901760
    %2858 = vmatpush1.msra.mxu0 %v2857
    %2859 = vmatprep.subr.mxu0 0.0
    %2860 = vmatpush1.msra.mxu0 0.0
    %2861 = vmatprep.subr.mxu0 0.0
    %2862 = vmatpush1.msra.mxu0 0.0
    %2863 = vmatprep.subr.mxu0 0.0
    %2864 = vmatpush1.msra.mxu0 0.0
    %2865 = vmatprep.subr.mxu0 0.0
    %2866 = vmatpush1.msra.mxu0 0.0
    %2867 = vmatprep.subr.mxu0 0.0
    %2868 = vmatpush1.msra.mxu0 0.0
    %2869 = vmatprep.subr.mxu0 0.0
    %2870 = vmatpush1.msra.mxu0 0.0
    %2871 = vmatprep.subr.mxu0 0.0
    %2872 = vmatpush1.msra.mxu0 0.0
    %2873 = vmatprep.subr.mxu0 0.0
    %2874 = vmatpush1.msra.mxu0 0.0
    %2875 = vmatprep.subr.mxu0 0.0
    %2876 = vmatpush1.msra.mxu0 0.0
    %2877 = vmatprep.subr.mxu0 0.0
    %2878 = vmatpush1.msra.mxu0 0.0
    %2879 = vmatprep.subr.mxu0 0.0
    %2880 = vmatpush1.msra.mxu0 0.0
    %2881 = vmatprep.subr.mxu0 0.0
    %2882 = vmatpush1.msra.mxu0 0.0
    %2883 = vmatprep.subr.mxu0 0.0
    %2884 = vmatpush1.msra.mxu0 0.0
    %2885 = vmatprep.subr.mxu0 0.0
    %2886 = vmatpush1.msra.mxu0 0.0
    %2887 = vmatprep.subr.mxu0 0.0
    %2888 = vmatpush1.msra.mxu0 0.0
    %2889 = vmatprep.subr.mxu0 0.0
    %2890 = vmatpush1.msra.mxu0 0.0
    %2891 = vmatprep.mubr.f32.mxu0 0.0
    %v2892 = vand.u32 %v2649, 4294901760
    %2893 = vmatmul.mubr.f32.gmra.mrb[0].mxu0 %v2892
    %v2894 = vpop.f32.mrb[0].mxu0
    %v2895 = vadd.f32 %v2744, %v2894
    %v2896 = vpop.f32.mrb[0].mxu0
    %2897 = vdwg.mxu0
    %2898 = vmatprep.subr.mxu0 0.0
    %v2899 = vand.u32 %v76, 4294901760
    %v2900 = vsub.f32 %v76, %v2899
    %2901 = vmatpush1.msra.mxu0 %v2900
    %2902 = vmatprep.subr.mxu0 0.0
    %v2903 = vand.u32 %v77, 4294901760
    %v2904 = vsub.f32 %v77, %v2903
    %2905 = vmatpush1.msra.mxu0 %v2904
    %2906 = vmatprep.subr.mxu0 0.0
    %v2907 = vand.u32 %v78, 4294901760
    %v2908 = vsub.f32 %v78, %v2907
    %2909 = vmatpush1.msra.mxu0 %v2908
    %2910 = vmatprep.subr.mxu0 0.0
    %v2911 = vand.u32 %v79, 4294901760
    %v2912 = vsub.f32 %v79, %v2911
    %2913 = vmatpush1.msra.mxu0 %v2912
    %2914 = vmatprep.subr.mxu0 0.0
    %v2915 = vand.u32 %v80, 4294901760
    %v2916 = vsub.f32 %v80, %v2915
    %2917 = vmatpush1.msra.mxu0 %v2916
    %2918 = vmatprep.subr.mxu0 0.0
    %v2919 = vand.u32 %v81, 4294901760
    %v2920 = vsub.f32 %v81, %v2919
    %2921 = vmatpush1.msra.mxu0 %v2920
    %2922 = vmatprep.subr.mxu0 0.0
    %v2923 = vand.u32 %v82, 4294901760
    %v2924 = vsub.f32 %v82, %v2923
    %2925 = vmatpush1.msra.mxu0 %v2924
    %2926 = vmatprep.subr.mxu0 0.0
    %v2927 = vand.u32 %v83, 4294901760
    %v2928 = vsub.f32 %v83, %v2927
    %2929 = vmatpush1.msra.mxu0 %v2928
    %2930 = vmatprep.subr.mxu0 0.0
    %v2931 = vand.u32 %v84, 4294901760
    %v2932 = vsub.f32 %v84, %v2931
    %2933 = vmatpush1.msra.mxu0 %v2932
    %2934 = vmatprep.subr.mxu0 0.0
    %v2935 = vand.u32 %v85, 4294901760
    %v2936 = vsub.f32 %v85, %v2935
    %2937 = vmatpush1.msra.mxu0 %v2936
    %2938 = vmatprep.subr.mxu0 0.0
    %v2939 = vand.u32 %v86, 4294901760
    %v2940 = vsub.f32 %v86, %v2939
    %2941 = vmatpush1.msra.mxu0 %v2940
    %2942 = vmatprep.subr.mxu0 0.0
    %v2943 = vand.u32 %v87, 4294901760
    %v2944 = vsub.f32 %v87, %v2943
    %2945 = vmatpush1.msra.mxu0 %v2944
    %2946 = vmatprep.subr.mxu0 0.0
    %v2947 = vand.u32 %v88, 4294901760
    %v2948 = vsub.f32 %v88, %v2947
    %2949 = vmatpush1.msra.mxu0 %v2948
    %2950 = vmatprep.subr.mxu0 0.0
    %v2951 = vand.u32 %v89, 4294901760
    %v2952 = vsub.f32 %v89, %v2951
    %2953 = vmatpush1.msra.mxu0 %v2952
    %2954 = vmatprep.subr.mxu0 0.0
    %v2955 = vand.u32 %v90, 4294901760
    %v2956 = vsub.f32 %v90, %v2955
    %2957 = vmatpush1.msra.mxu0 %v2956
    %2958 = vmatprep.subr.mxu0 0.0
    %v2959 = vand.u32 %v91, 4294901760
    %v2960 = vsub.f32 %v91, %v2959
    %2961 = vmatpush1.msra.mxu0 %v2960
    %2962 = vmatprep.subr.mxu0 0.0
    %2963 = vmatpush1.msra.mxu0 0.0
    %2964 = vmatprep.subr.mxu0 0.0
    %2965 = vmatpush1.msra.mxu0 0.0
    %2966 = vmatprep.subr.mxu0 0.0
    %2967 = vmatpush1.msra.mxu0 0.0
    %2968 = vmatprep.subr.mxu0 0.0
    %2969 = vmatpush1.msra.mxu0 0.0
    %2970 = vmatprep.subr.mxu0 0.0
    %2971 = vmatpush1.msra.mxu0 0.0
    %2972 = vmatprep.subr.mxu0 0.0
    %2973 = vmatpush1.msra.mxu0 0.0
    %2974 = vmatprep.subr.mxu0 0.0
    %2975 = vmatpush1.msra.mxu0 0.0
    %2976 = vmatprep.subr.mxu0 0.0
    %2977 = vmatpush1.msra.mxu0 0.0
    %2978 = vmatprep.subr.mxu0 0.0
    %2979 = vmatpush1.msra.mxu0 0.0
    %2980 = vmatprep.subr.mxu0 0.0
    %2981 = vmatpush1.msra.mxu0 0.0
    %2982 = vmatprep.subr.mxu0 0.0
    %2983 = vmatpush1.msra.mxu0 0.0
    %2984 = vmatprep.subr.mxu0 0.0
    %2985 = vmatpush1.msra.mxu0 0.0
    %2986 = vmatprep.subr.mxu0 0.0
    %2987 = vmatpush1.msra.mxu0 0.0
    %2988 = vmatprep.subr.mxu0 0.0
    %2989 = vmatpush1.msra.mxu0 0.0
    %2990 = vmatprep.subr.mxu0 0.0
    %2991 = vmatpush1.msra.mxu0 0.0
    %2992 = vmatprep.subr.mxu0 0.0
    %2993 = vmatpush1.msra.mxu0 0.0
    %2994 = vmatprep.mubr.f32.mxu0 0.0
    %v2995 = vand.u32 %v2649, 4294901760
    %v2996 = vsub.f32 %v2649, %v2995
    %2997 = vmatmul.mubr.f32.gmra.mrb[0].mxu0 %v2996
    %v2998 = vpop.f32.mrb[0].mxu0
    %v2999 = vadd.f32 %v2895, %v2998
    %v3000 = vpop.f32.mrb[0].mxu0
    %3001 = vdwg.mxu0
    %3002 = vmatprep.subr.mxu0 0.0
    %v3003 = vand.u32 %v76, 4294901760
    %3004 = vmatpush1.msra.mxu0 %v3003
    %3005 = vmatprep.subr.mxu0 0.0
    %v3006 = vand.u32 %v77, 4294901760
    %3007 = vmatpush1.msra.mxu0 %v3006
    %3008 = vmatprep.subr.mxu0 0.0
    %v3009 = vand.u32 %v78, 4294901760
    %3010 = vmatpush1.msra.mxu0 %v3009
    %3011 = vmatprep.subr.mxu0 0.0
    %v3012 = vand.u32 %v79, 4294901760
    %3013 = vmatpush1.msra.mxu0 %v3012
    %3014 = vmatprep.subr.mxu0 0.0
    %v3015 = vand.u32 %v80, 4294901760
    %3016 = vmatpush1.msra.mxu0 %v3015
    %3017 = vmatprep.subr.mxu0 0.0
    %v3018 = vand.u32 %v81, 4294901760
    %3019 = vmatpush1.msra.mxu0 %v3018
    %3020 = vmatprep.subr.mxu0 0.0
    %v3021 = vand.u32 %v82, 4294901760
    %3022 = vmatpush1.msra.mxu0 %v3021
    %3023 = vmatprep.subr.mxu0 0.0
    %v3024 = vand.u32 %v83, 4294901760
    %3025 = vmatpush1.msra.mxu0 %v3024
    %3026 = vmatprep.subr.mxu0 0.0
    %v3027 = vand.u32 %v84, 4294901760
    %3028 = vmatpush1.msra.mxu0 %v3027
    %3029 = vmatprep.subr.mxu0 0.0
    %v3030 = vand.u32 %v85, 4294901760
    %3031 = vmatpush1.msra.mxu0 %v3030
    %3032 = vmatprep.subr.mxu0 0.0
    %v3033 = vand.u32 %v86, 4294901760
    %3034 = vmatpush1.msra.mxu0 %v3033
    %3035 = vmatprep.subr.mxu0 0.0
    %v3036 = vand.u32 %v87, 4294901760
    %3037 = vmatpush1.msra.mxu0 %v3036
    %3038 = vmatprep.subr.mxu0 0.0
    %v3039 = vand.u32 %v88, 4294901760
    %3040 = vmatpush1.msra.mxu0 %v3039
    %3041 = vmatprep.subr.mxu0 0.0
    %v3042 = vand.u32 %v89, 4294901760
    %3043 = vmatpush1.msra.mxu0 %v3042
    %3044 = vmatprep.subr.mxu0 0.0
    %v3045 = vand.u32 %v90, 4294901760
    %3046 = vmatpush1.msra.mxu0 %v3045
    %3047 = vmatprep.subr.mxu0 0.0
    %v3048 = vand.u32 %v91, 4294901760
    %3049 = vmatpush1.msra.mxu0 %v3048
    %3050 = vmatprep.subr.mxu0 0.0
    %3051 = vmatpush1.msra.mxu0 0.0
    %3052 = vmatprep.subr.mxu0 0.0
    %3053 = vmatpush1.msra.mxu0 0.0
    %3054 = vmatprep.subr.mxu0 0.0
    %3055 = vmatpush1.msra.mxu0 0.0
    %3056 = vmatprep.subr.mxu0 0.0
    %3057 = vmatpush1.msra.mxu0 0.0
    %3058 = vmatprep.subr.mxu0 0.0
    %3059 = vmatpush1.msra.mxu0 0.0
    %3060 = vmatprep.subr.mxu0 0.0
    %3061 = vmatpush1.msra.mxu0 0.0
    %3062 = vmatprep.subr.mxu0 0.0
    %3063 = vmatpush1.msra.mxu0 0.0
    %3064 = vmatprep.subr.mxu0 0.0
    %3065 = vmatpush1.msra.mxu0 0.0
    %3066 = vmatprep.subr.mxu0 0.0
    %3067 = vmatpush1.msra.mxu0 0.0
    %3068 = vmatprep.subr.mxu0 0.0
    %3069 = vmatpush1.msra.mxu0 0.0
    %3070 = vmatprep.subr.mxu0 0.0
    %3071 = vmatpush1.msra.mxu0 0.0
    %3072 = vmatprep.subr.mxu0 0.0
    %3073 = vmatpush1.msra.mxu0 0.0
    %3074 = vmatprep.subr.mxu0 0.0
    %3075 = vmatpush1.msra.mxu0 0.0
    %3076 = vmatprep.subr.mxu0 0.0
    %3077 = vmatpush1.msra.mxu0 0.0
    %3078 = vmatprep.subr.mxu0 0.0
    %3079 = vmatpush1.msra.mxu0 0.0
    %3080 = vmatprep.subr.mxu0 0.0
    %3081 = vmatpush1.msra.mxu0 0.0
    %3082 = vmatprep.mubr.f32.mxu0 0.0
    %v3083 = vand.u32 %v2649, 4294901760
    %v3084 = vsub.f32 %v2649, %v3083
    %v3085 = vand.u32 %v3084, 4294901760
    %3086 = vmatmul.mubr.f32.gmra.mrb[0].mxu0 %v3085
    %v3087 = vpop.f32.mrb[0].mxu0
    %v3088 = vadd.f32 %v2999, %v3087
    %v3089 = vpop.f32.mrb[0].mxu0
    %3090 = vdwg.mxu0
    %3091 = vmatprep.subr.mxu0 0.0
    %v3092 = vand.u32 %v76, 4294901760
    %v3093 = vsub.f32 %v76, %v3092
    %v3094 = vand.u32 %v3093, 4294901760
    %3095 = vmatpush1.msra.mxu0 %v3094
    %3096 = vmatprep.subr.mxu0 0.0
    %v3097 = vand.u32 %v77, 4294901760
    %v3098 = vsub.f32 %v77, %v3097
    %v3099 = vand.u32 %v3098, 4294901760
    %3100 = vmatpush1.msra.mxu0 %v3099
    %3101 = vmatprep.subr.mxu0 0.0
    %v3102 = vand.u32 %v78, 4294901760
    %v3103 = vsub.f32 %v78, %v3102
    %v3104 = vand.u32 %v3103, 4294901760
    %3105 = vmatpush1.msra.mxu0 %v3104
    %3106 = vmatprep.subr.mxu0 0.0
    %v3107 = vand.u32 %v79, 4294901760
    %v3108 = vsub.f32 %v79, %v3107
    %v3109 = vand.u32 %v3108, 4294901760
    %3110 = vmatpush1.msra.mxu0 %v3109
    %3111 = vmatprep.subr.mxu0 0.0
    %v3112 = vand.u32 %v80, 4294901760
    %v3113 = vsub.f32 %v80, %v3112
    %v3114 = vand.u32 %v3113, 4294901760
    %3115 = vmatpush1.msra.mxu0 %v3114
    %3116 = vmatprep.subr.mxu0 0.0
    %v3117 = vand.u32 %v81, 4294901760
    %v3118 = vsub.f32 %v81, %v3117
    %v3119 = vand.u32 %v3118, 4294901760
    %3120 = vmatpush1.msra.mxu0 %v3119
    %3121 = vmatprep.subr.mxu0 0.0
    %v3122 = vand.u32 %v82, 4294901760
    %v3123 = vsub.f32 %v82, %v3122
    %v3124 = vand.u32 %v3123, 4294901760
    %3125 = vmatpush1.msra.mxu0 %v3124
    %3126 = vmatprep.subr.mxu0 0.0
    %v3127 = vand.u32 %v83, 4294901760
    %v3128 = vsub.f32 %v83, %v3127
    %v3129 = vand.u32 %v3128, 4294901760
    %3130 = vmatpush1.msra.mxu0 %v3129
    %3131 = vmatprep.subr.mxu0 0.0
    %v3132 = vand.u32 %v84, 4294901760
    %v3133 = vsub.f32 %v84, %v3132
    %v3134 = vand.u32 %v3133, 4294901760
    %3135 = vmatpush1.msra.mxu0 %v3134
    %3136 = vmatprep.subr.mxu0 0.0
    %v3137 = vand.u32 %v85, 4294901760
    %v3138 = vsub.f32 %v85, %v3137
    %v3139 = vand.u32 %v3138, 4294901760
    %3140 = vmatpush1.msra.mxu0 %v3139
    %3141 = vmatprep.subr.mxu0 0.0
    %v3142 = vand.u32 %v86, 4294901760
    %v3143 = vsub.f32 %v86, %v3142
    %v3144 = vand.u32 %v3143, 4294901760
    %3145 = vmatpush1.msra.mxu0 %v3144
    %3146 = vmatprep.subr.mxu0 0.0
    %v3147 = vand.u32 %v87, 4294901760
    %v3148 = vsub.f32 %v87, %v3147
    %v3149 = vand.u32 %v3148, 4294901760
    %3150 = vmatpush1.msra.mxu0 %v3149
    %3151 = vmatprep.subr.mxu0 0.0
    %v3152 = vand.u32 %v88, 4294901760
    %v3153 = vsub.f32 %v88, %v3152
    %v3154 = vand.u32 %v3153, 4294901760
    %3155 = vmatpush1.msra.mxu0 %v3154
    %3156 = vmatprep.subr.mxu0 0.0
    %v3157 = vand.u32 %v89, 4294901760
    %v3158 = vsub.f32 %v89, %v3157
    %v3159 = vand.u32 %v3158, 4294901760
    %3160 = vmatpush1.msra.mxu0 %v3159
    %3161 = vmatprep.subr.mxu0 0.0
    %v3162 = vand.u32 %v90, 4294901760
    %v3163 = vsub.f32 %v90, %v3162
    %v3164 = vand.u32 %v3163, 4294901760
    %3165 = vmatpush1.msra.mxu0 %v3164
    %3166 = vmatprep.subr.mxu0 0.0
    %v3167 = vand.u32 %v91, 4294901760
    %v3168 = vsub.f32 %v91, %v3167
    %v3169 = vand.u32 %v3168, 4294901760
    %3170 = vmatpush1.msra.mxu0 %v3169
    %3171 = vmatprep.subr.mxu0 0.0
    %3172 = vmatpush1.msra.mxu0 0.0
    %3173 = vmatprep.subr.mxu0 0.0
    %3174 = vmatpush1.msra.mxu0 0.0
    %3175 = vmatprep.subr.mxu0 0.0
    %3176 = vmatpush1.msra.mxu0 0.0
    %3177 = vmatprep.subr.mxu0 0.0
    %3178 = vmatpush1.msra.mxu0 0.0
    %3179 = vmatprep.subr.mxu0 0.0
    %3180 = vmatpush1.msra.mxu0 0.0
    %3181 = vmatprep.subr.mxu0 0.0
    %3182 = vmatpush1.msra.mxu0 0.0
    %3183 = vmatprep.subr.mxu0 0.0
    %3184 = vmatpush1.msra.mxu0 0.0
    %3185 = vmatprep.subr.mxu0 0.0
    %3186 = vmatpush1.msra.mxu0 0.0
    %3187 = vmatprep.subr.mxu0 0.0
    %3188 = vmatpush1.msra.mxu0 0.0
    %3189 = vmatprep.subr.mxu0 0.0
    %3190 = vmatpush1.msra.mxu0 0.0
    %3191 = vmatprep.subr.mxu0 0.0
    %3192 = vmatpush1.msra.mxu0 0.0
    %3193 = vmatprep.subr.mxu0 0.0
    %3194 = vmatpush1.msra.mxu0 0.0
    %3195 = vmatprep.subr.mxu0 0.0
    %3196 = vmatpush1.msra.mxu0 0.0
    %3197 = vmatprep.subr.mxu0 0.0
    %3198 = vmatpush1.msra.mxu0 0.0
    %3199 = vmatprep.subr.mxu0 0.0
    %3200 = vmatpush1.msra.mxu0 0.0
    %3201 = vmatprep.subr.mxu0 0.0
    %3202 = vmatpush1.msra.mxu0 0.0
    %3203 = vmatprep.mubr.f32.mxu0 0.0
    %v3204 = vand.u32 %v2649, 4294901760
    %3205 = vmatmul.mubr.f32.gmra.mrb[0].mxu0 %v3204
    %v3206 = vpop.f32.mrb[0].mxu0
    %v3207 = vadd.f32 %v3088, %v3206
    %v3208 = vpop.f32.mrb[0].mxu0
    %3209 = vdwg.mxu0
    %3210 = vmatprep.subr.mxu0 0.0
    %v3211 = vand.u32 %v76, 4294901760
    %3212 = vmatpush1.msra.mxu0 %v3211
    %3213 = vmatprep.subr.mxu0 0.0
    %v3214 = vand.u32 %v77, 4294901760
    %3215 = vmatpush1.msra.mxu0 %v3214
    %3216 = vmatprep.subr.mxu0 0.0
    %v3217 = vand.u32 %v78, 4294901760
    %3218 = vmatpush1.msra.mxu0 %v3217
    %3219 = vmatprep.subr.mxu0 0.0
    %v3220 = vand.u32 %v79, 4294901760
    %3221 = vmatpush1.msra.mxu0 %v3220
    %3222 = vmatprep.subr.mxu0 0.0
    %v3223 = vand.u32 %v80, 4294901760
    %3224 = vmatpush1.msra.mxu0 %v3223
    %3225 = vmatprep.subr.mxu0 0.0
    %v3226 = vand.u32 %v81, 4294901760
    %3227 = vmatpush1.msra.mxu0 %v3226
    %3228 = vmatprep.subr.mxu0 0.0
    %v3229 = vand.u32 %v82, 4294901760
    %3230 = vmatpush1.msra.mxu0 %v3229
    %3231 = vmatprep.subr.mxu0 0.0
    %v3232 = vand.u32 %v83, 4294901760
    %3233 = vmatpush1.msra.mxu0 %v3232
    %3234 = vmatprep.subr.mxu0 0.0
    %v3235 = vand.u32 %v84, 4294901760
    %3236 = vmatpush1.msra.mxu0 %v3235
    %3237 = vmatprep.subr.mxu0 0.0
    %v3238 = vand.u32 %v85, 4294901760
    %3239 = vmatpush1.msra.mxu0 %v3238
    %3240 = vmatprep.subr.mxu0 0.0
    %v3241 = vand.u32 %v86, 4294901760
    %3242 = vmatpush1.msra.mxu0 %v3241
    %3243 = vmatprep.subr.mxu0 0.0
    %v3244 = vand.u32 %v87, 4294901760
    %3245 = vmatpush1.msra.mxu0 %v3244
    %3246 = vmatprep.subr.mxu0 0.0
    %v3247 = vand.u32 %v88, 4294901760
    %3248 = vmatpush1.msra.mxu0 %v3247
    %3249 = vmatprep.subr.mxu0 0.0
    %v3250 = vand.u32 %v89, 4294901760
    %3251 = vmatpush1.msra.mxu0 %v3250
    %3252 = vmatprep.subr.mxu0 0.0
    %v3253 = vand.u32 %v90, 4294901760
    %3254 = vmatpush1.msra.mxu0 %v3253
    %3255 = vmatprep.subr.mxu0 0.0
    %v3256 = vand.u32 %v91, 4294901760
    %3257 = vmatpush1.msra.mxu0 %v3256
    %3258 = vmatprep.subr.mxu0 0.0
    %3259 = vmatpush1.msra.mxu0 0.0
    %3260 = vmatprep.subr.mxu0 0.0
    %3261 = vmatpush1.msra.mxu0 0.0
    %3262 = vmatprep.subr.mxu0 0.0
    %3263 = vmatpush1.msra.mxu0 0.0
    %3264 = vmatprep.subr.mxu0 0.0
    %3265 = vmatpush1.msra.mxu0 0.0
    %3266 = vmatprep.subr.mxu0 0.0
    %3267 = vmatpush1.msra.mxu0 0.0
    %3268 = vmatprep.subr.mxu0 0.0
    %3269 = vmatpush1.msra.mxu0 0.0
    %3270 = vmatprep.subr.mxu0 0.0
    %3271 = vmatpush1.msra.mxu0 0.0
    %3272 = vmatprep.subr.mxu0 0.0
    %3273 = vmatpush1.msra.mxu0 0.0
    %3274 = vmatprep.subr.mxu0 0.0
    %3275 = vmatpush1.msra.mxu0 0.0
    %3276 = vmatprep.subr.mxu0 0.0
    %3277 = vmatpush1.msra.mxu0 0.0
    %3278 = vmatprep.subr.mxu0 0.0
    %3279 = vmatpush1.msra.mxu0 0.0
    %3280 = vmatprep.subr.mxu0 0.0
    %3281 = vmatpush1.msra.mxu0 0.0
    %3282 = vmatprep.subr.mxu0 0.0
    %3283 = vmatpush1.msra.mxu0 0.0
    %3284 = vmatprep.subr.mxu0 0.0
    %3285 = vmatpush1.msra.mxu0 0.0
    %3286 = vmatprep.subr.mxu0 0.0
    %3287 = vmatpush1.msra.mxu0 0.0
    %3288 = vmatprep.subr.mxu0 0.0
    %3289 = vmatpush1.msra.mxu0 0.0
    %3290 = vmatprep.mubr.f32.mxu0 0.0
    %v3291 = vand.u32 %v2649, 4294901760
    %3292 = vmatmul.mubr.f32.gmra.mrb[0].mxu0 %v3291
    %v3293 = vpop.f32.mrb[0].mxu0
    %v3294 = vadd.f32 %v3207, %v3293
    %v3295 = vpop.f32.mrb[0].mxu0
    %3296 = vdwg.mxu0
    %3297 = vst [vmem:[%s3] sm:$0x3] %v3294
    // Predicated region
    $region18: #{_forward_impl.1} parent=1 // pred_check
      _
    $region19: #{_forward_impl.1} parent=1 // pred_check_branch
      %3299 = sbr.rel (0) target = $region21
    $region20: #{_forward_impl.1} parent=1 // pred_region
      _
    $region21: #{_forward_impl.1} parent=1 // pred_fallthru
      _
    // Predicated region
    $region22: #{_forward_impl.1} parent=1 // pred_check
      _
    $region23: #{_forward_impl.1} parent=1 // pred_check_branch
      %3301 = sbr.rel (0) target = $region25
    $region24: #{_forward_impl.1} parent=1 // pred_region
      _
    $region25: #{_forward_impl.1} parent=1 // pred_fallthru
      _
    %3302 = vsyncpa [#allocation3], 1

</llo_original>
